<compile_context>
chip_gen: v7x
topology: tpu7x:2x2x1
jax: 0.10.0
libtpu: 0.0.40
codegen_flags: <defaults>
</compile_context>

<pallas_src>
import functools

import jax
import jax.numpy as jnp
from jax.experimental import pallas as pl
from jax.experimental.pallas import tpu as pltpu

_EPS = 1e-5
_LANE = 128
_MAX_TILE_ROWS = 1024          # cap on th*W rows fed to the MXU per grid step


def _ceil_to(x, m):
    return (x + m - 1) // m * m


def _pick_th(n, h, w, *, min_steps=4, max_rows=_MAX_TILE_ROWS):
    """Largest divisor of H giving >= min_steps grid steps and <= max_rows rows."""
    divisors = sorted((d for d in range(1, h + 1) if h % d == 0), reverse=True)
    for d in divisors:
        if d * w <= max_rows and n * (h // d) >= min_steps:
            return d
    for d in divisors:
        if d * w <= max_rows:
            return d
    return 1


# ----------------------------------------------------------------------------
# Kernel 1: fused [optional BN+ReLU prologue] -> 3x3 conv (in-VMEM taps)
#           -> raw conv output + per-tile BN partial statistics.
# ----------------------------------------------------------------------------
def _conv_bn_stats_kernel(top_ref, mid_ref, bot_ref, scale_ref, shift_ref,
                          w_ref, y_ref, sum_ref, sq_ref,
                          *, th, width, nh, fuse_input_bn_relu):
    h = pl.program_id(1)
    cin = mid_ref.shape[-1]
    coutp = y_ref.shape[-1]

    def _prep(ref):
        v = ref[0]                                       # (rows, W, Cin) bf16
        if fuse_input_bn_relu:                           # fused stage-1 BN+ReLU
            s = scale_ref[...].reshape(1, 1, cin)
            b = shift_ref[...].reshape(1, 1, cin)
            v = jnp.maximum(v.astype(jnp.float32) * s + b, 0.0)
            v = v.astype(jnp.bfloat16)
        return v

    top = _prep(top_ref)                                 # (1,  W, Cin)
    mid = _prep(mid_ref)                                 # (th, W, Cin)
    bot = _prep(bot_ref)                                 # (1,  W, Cin)

    # Conv zero-padding rows at the image top / bottom (post-prologue zeros).
    top = jnp.where(h == 0, jnp.zeros_like(top), top)
    bot = jnp.where(h == nh - 1, jnp.zeros_like(bot), bot)

    slab = jnp.concatenate([top, mid, bot], axis=0)      # (th+2, W,   Cin)
    zcol = jnp.zeros((th + 2, 1, cin), slab.dtype)
    slab = jnp.concatenate([zcol, slab, zcol], axis=1)   # (th+2, W+2, Cin)

    # 9 conv taps built by static slicing; accumulate in f32 on the MXU.
    acc = jnp.zeros((th * width, coutp), jnp.float32)
    for ky in range(3):
        for kx in range(3):
            tap = slab[ky:ky + th, kx:kx + width, :].reshape(th * width, cin)
            acc = acc + jnp.dot(tap, w_ref[ky * 3 + kx],
                                preferred_element_type=jnp.float32)

    y_ref[...] = acc.reshape(1, th, width, coutp).astype(y_ref.dtype)
    sum_ref[...] = jnp.sum(acc, axis=0, keepdims=True).reshape(1, 1, coutp)
    sq_ref[...] = jnp.sum(acc * acc, axis=0, keepdims=True).reshape(1, 1, coutp)


def _conv_bn_stats(src, w, gamma_p, beta_p, *, th, in_scale=None, in_shift=None):
    """3x3 'same' conv on NHWC `src` (optionally preceded by a fused BN+ReLU on
    the input).  Returns (raw conv output bf16 channel-padded, scale, shift)."""
    n, hdim, wdim, cin = src.shape
    coutp = w.shape[-1]
    assert hdim % th == 0
    nh = hdim // th

    fuse = in_scale is not None
    if in_scale is None:
        in_scale = jnp.ones((cin,), jnp.float32)
        in_shift = jnp.zeros((cin,), jnp.float32)

    kernel = functools.partial(_conv_bn_stats_kernel, th=th, width=wdim, nh=nh,
                               fuse_input_bn_relu=fuse)

    flops = 2 * n * hdim * wdim * 9 * cin * coutp
    bytes_accessed = ((n * hdim * wdim + 2 * n * nh * wdim) * cin * 2   # reads
                      + int(w.size) * 2 + 2 * cin * 4                   # weights, scale/shift
                      + n * hdim * wdim * coutp * 2                     # y out
                      + 2 * n * nh * coutp * 4)                         # stats

    y, psum, psq = pl.pallas_call(
        kernel,
        out_shape=(
            jax.ShapeDtypeStruct((n, hdim, wdim, coutp), jnp.bfloat16),
            jax.ShapeDtypeStruct((n * nh, 1, coutp), jnp.float32),
            jax.ShapeDtypeStruct((n * nh, 1, coutp), jnp.float32),
        ),
        grid=(n, nh),
        in_specs=[
            # 1-row top halo (clamped; zeroed in-kernel at the image border).
            pl.BlockSpec((1, 1, wdim, cin),
                         lambda i, j: (i, jnp.maximum(j * th - 1, 0), 0, 0)),
            # main row tile
            pl.BlockSpec((1, th, wdim, cin), lambda i, j: (i, j, 0, 0)),
            # 1-row bottom halo
            pl.BlockSpec((1, 1, wdim, cin),
                         lambda i, j: (i, jnp.minimum(j * th + th, hdim - 1), 0, 0)),
            # previous-stage BN scale / shift (resident)
            pl.BlockSpec((1, cin), lambda i, j: (0, 0)),
            pl.BlockSpec((1, cin), lambda i, j: (0, 0)),
            # conv weights (resident across the whole grid)
            pl.BlockSpec((9, cin, coutp), lambda i, j: (0, 0, 0)),
        ],
        out_specs=(
            pl.BlockSpec((1, th, wdim, coutp), lambda i, j: (i, j, 0, 0)),
            pl.BlockSpec((1, 1, coutp), lambda i, j: (i * nh + j, 0, 0)),
            pl.BlockSpec((1, 1, coutp), lambda i, j: (i * nh + j, 0, 0)),
        ),
        compiler_params=pltpu.CompilerParams(
            dimension_semantics=("parallel", "parallel")),
        cost_estimate=pl.CostEstimate(
            flops=flops, transcendentals=0, bytes_accessed=bytes_accessed),
    )(src, src, src, in_scale.reshape(1, cin), in_shift.reshape(1, cin), w)

    # Finalize training-mode BatchNorm batch statistics (tiny, plain JAX).
    cnt = n * hdim * wdim
    s = jnp.sum(psum[:, 0, :], axis=0)
    sq = jnp.sum(psq[:, 0, :], axis=0)
    mean = s / cnt
    var = jnp.maximum(sq / cnt - mean * mean, 0.0)         # biased variance
    scale = gamma_p * jax.lax.rsqrt(var + _EPS)
    shift = beta_p - mean * scale
    return y, scale, shift


# ----------------------------------------------------------------------------
# Kernel 2: final tiled BN-apply + ReLU:  relu(y * scale + shift)  (lane-dense)
# ----------------------------------------------------------------------------
def _bn_relu_kernel(y_ref, scale_ref, shift_ref, o_ref):
    cp = y_ref.shape[-1]
    y = y_ref[...].astype(jnp.float32)
    s = scale_ref[...].reshape(1, 1, 1, cp)
    b = shift_ref[...].reshape(1, 1, 1, cp)
    o_ref[...] = jnp.maximum(y * s + b, 0.0).astype(o_ref.dtype)


def _bn_relu_apply(y, scale, shift, *, th):
    n, hdim, wdim, cp = y.shape
    nh = hdim // th
    return pl.pallas_call(
        _bn_relu_kernel,
        out_shape=jax.ShapeDtypeStruct((n, hdim, wdim, cp), jnp.bfloat16),
        grid=(n, nh),
        in_specs=[
            pl.BlockSpec((1, th, wdim, cp), lambda i, j: (i, j, 0, 0)),
            pl.BlockSpec((1, cp), lambda i, j: (0, 0)),
            pl.BlockSpec((1, cp), lambda i, j: (0, 0)),
        ],
        out_specs=pl.BlockSpec((1, th, wdim, cp), lambda i, j: (i, j, 0, 0)),
        compiler_params=pltpu.CompilerParams(
            dimension_semantics=("parallel", "parallel")),
        cost_estimate=pl.CostEstimate(
            flops=2 * n * hdim * wdim * cp, transcendentals=0,
            bytes_accessed=2 * n * hdim * wdim * cp * 2 + 2 * cp * 4),
    )(y, scale.reshape(1, cp), shift.reshape(1, cp))


# ----------------------------------------------------------------------------
# DoubleConv forward:  (conv3x3 => BN => ReLU) * 2
# ----------------------------------------------------------------------------
def double_conv(x, p, *, th=None):
    """NHWC input (bf16) -> NHWC channel-padded bf16 output."""
    n, hdim, wdim, _ = x.shape
    if th is None:
        th = _pick_th(n, hdim, wdim)
    y1, s1, b1 = _conv_bn_stats(x, p["w1"], p["g1"], p["be1"], th=th)
    # Stage-1 BN+ReLU is applied inside stage-2's conv prologue (fused).
    y2, s2, b2 = _conv_bn_stats(y1, p["w2"], p["g2"], p["be2"], th=th,
                                in_scale=s1, in_shift=b1)
    return _bn_relu_apply(y2, s2, b2, th=th)


# ----------------------------------------------------------------------------
# Deterministic parameter init (mirrors DoubleConv(in, out) with mid = out).
# Weights are stored kernel-ready: (9, Cin_pad, Cout_pad) bf16, tap-major.
# ----------------------------------------------------------------------------
def _init_conv_w(key, cin, cout, cin_p, cout_p):
    # PyTorch (cout, cin, 3, 3) -> (kh, kw, cin, cout) -> (9, cin_p, cout_p)
    w = jax.random.normal(key, (cout, cin, 3, 3), jnp.float32)
    w = w * (1.0 / jnp.sqrt(jnp.float32(cin * 9)))
    w = jnp.transpose(w, (2, 3, 1, 0)).reshape(9, cin, cout)
    w = jnp.pad(w, ((0, 0), (0, cin_p - cin), (0, cout_p - cout)))
    return w.astype(jnp.bfloat16)


def _pad_vec(v, n):
    return jnp.pad(v, (0, n - v.shape[0])).astype(jnp.float32)


def init_double_conv(key, cin, cout, cmid=None):
    if cmid is None:
        cmid = cout
    cmid_p = _ceil_to(cmid, _LANE)
    cout_p = _ceil_to(cout, _LANE)
    k1, k2, k3, k4, k5, k6 = jax.random.split(key, 6)
    return dict(
        w1=_init_conv_w(k1, cin, cmid, cin, cmid_p),
        g1=_pad_vec(1.0 + 0.1 * jax.random.normal(k3, (cmid,), jnp.float32), cmid_p),
        be1=_pad_vec(0.1 * jax.random.normal(k4, (cmid,), jnp.float32), cmid_p),
        w2=_init_conv_w(k2, cmid, cout, cmid_p, cout_p),
        g2=_pad_vec(1.0 + 0.1 * jax.random.normal(k5, (cout,), jnp.float32), cout_p),
        be2=_pad_vec(0.1 * jax.random.normal(k6, (cout,), jnp.float32), cout_p),
    )


# ----------------------------------------------------------------------------
# Plain-JAX f32 reference (loose correctness check).
# ----------------------------------------------------------------------------
def _reference_double_conv(x, p, cin, cmid, cout):
    def stage(x, w_p, g, b, ci, co):
        w = w_p[:, :ci, :co].astype(jnp.float32).reshape(3, 3, ci, co)
        y = jax.lax.conv_general_dilated(
            x, w, window_strides=(1, 1), padding=((1, 1), (1, 1)),
            dimension_numbers=("NHWC", "HWIO", "NHWC"))
        mean = jnp.mean(y, axis=(0, 1, 2))
        var = jnp.var(y, axis=(0, 1, 2))
        yhat = (y - mean) * jax.lax.rsqrt(var + _EPS)
        return jnp.maximum(yhat * g[:co] + b[:co], 0.0)

    h = stage(x, p["w1"], p["g1"], p["be1"], cin, cmid)
    return stage(h, p["w2"], p["g2"], p["be2"], cmid, cout)


if __name__ == "__main__":
    key = jax.random.PRNGKey(0)
    kp, kx = jax.random.split(key)

    in_channels, out_channels = 4, 64
    N, H, W = 2, 16, 16

    params = init_double_conv(kp, in_channels, out_channels)
    x_nchw = jax.random.normal(kx, (N, in_channels, H, W), jnp.float32)

    @jax.jit
    def forward(p, x):
        x_nhwc = jnp.transpose(x, (0, 2, 3, 1)).astype(jnp.bfloat16)
        y = double_conv(x_nhwc, p)[..., :out_channels]       # bf16 NHWC
        y = jnp.transpose(y, (0, 3, 1, 2))                    # NHWC -> NCHW
        return y.astype(jnp.float32)                          # upcast after transpose

    out = forward(params, x_nchw)
    jax.block_until_ready(out)

    assert out.shape == (N, out_channels, H, W), out.shape
    assert out.dtype == jnp.float32
    assert bool(jnp.all(jnp.isfinite(out)))

    # Loose-tolerance check vs. a plain-JAX f32 reference (kernel path uses
    # bf16 activations/weights on the MXU and a bf16 final store).
    ref = jnp.transpose(
        _reference_double_conv(
            jnp.transpose(x_nchw, (0, 2, 3, 1)), params,
            in_channels, out_channels, out_channels),
        (0, 3, 1, 2))
    err = float(jnp.max(jnp.abs(out - ref)))
    assert err < 0.2, f"max abs err vs reference: {err}"

    print("KERNEL_OK")
</pallas_src>

<mosaic_0001>
module attributes {stable_mosaic.version = 11 : i64} {
  func.func @_conv_bn_stats_kernel(%arg0: i32, %arg1: i32, %arg2: memref<1x1x16x4xbf16, #tpu.memory_space<vmem>>, %arg3: memref<1x8x16x4xbf16, #tpu.memory_space<vmem>>, %arg4: memref<1x1x16x4xbf16, #tpu.memory_space<vmem>>, %arg5: memref<1x4xf32, #tpu.memory_space<vmem>>, %arg6: memref<1x4xf32, #tpu.memory_space<vmem>>, %arg7: memref<9x4x128xbf16, #tpu.memory_space<vmem>>, %arg8: memref<1x8x16x128xbf16, #tpu.memory_space<vmem>>, %arg9: memref<1x1x128xf32, #tpu.memory_space<vmem>>, %arg10: memref<1x1x128xf32, #tpu.memory_space<vmem>>) attributes {dimension_semantics = [#tpu.dimension_semantics<parallel>, #tpu.dimension_semantics<parallel>], iteration_bounds = array<i64: 2, 2>, scalar_prefetch = 0 : i64, scratch_operands = 0 : i64, tpu.core_type = #tpu.core_type<tc>, window_params = [{transform_indices = @transform_0, window_bounds = array<i64: 1, 1, 16, 4>}, {transform_indices = @transform_1, window_bounds = array<i64: 1, 8, 16, 4>}, {transform_indices = @transform_2, window_bounds = array<i64: 1, 1, 16, 4>}, {pipeline_mode = #tpu.pipeline_mode<synchronous>, transform_indices = @transform_3, window_bounds = array<i64: 1, 4>}, {pipeline_mode = #tpu.pipeline_mode<synchronous>, transform_indices = @transform_4, window_bounds = array<i64: 1, 4>}, {pipeline_mode = #tpu.pipeline_mode<synchronous>, transform_indices = @transform_5, window_bounds = array<i64: 9, 4, 128>}, {transform_indices = @transform_6, window_bounds = array<i64: 1, 8, 16, 128>}, {transform_indices = @transform_7, window_bounds = array<i64: 1, 1, 128>}, {transform_indices = @transform_8, window_bounds = array<i64: 1, 1, 128>}]} {
    %c0 = arith.constant 0 : index
    %c0_0 = arith.constant 0 : index
    %c0_1 = arith.constant 0 : index
    %c0_2 = arith.constant 0 : index
    %0 = vector.load %arg2[%c0, %c0_0, %c0_1, %c0_2] : memref<1x1x16x4xbf16, #tpu.memory_space<vmem>>, vector<1x1x16x4xbf16>
    %1 = vector.shape_cast %0 : vector<1x1x16x4xbf16> to vector<1x16x4xbf16>
    %c0_3 = arith.constant 0 : index
    %c0_4 = arith.constant 0 : index
    %c0_5 = arith.constant 0 : index
    %c0_6 = arith.constant 0 : index
    %2 = vector.load %arg3[%c0_3, %c0_4, %c0_5, %c0_6] : memref<1x8x16x4xbf16, #tpu.memory_space<vmem>>, vector<1x8x16x4xbf16>
    %3 = vector.shape_cast %2 : vector<1x8x16x4xbf16> to vector<8x16x4xbf16>
    %c0_7 = arith.constant 0 : index
    %c0_8 = arith.constant 0 : index
    %c0_9 = arith.constant 0 : index
    %c0_10 = arith.constant 0 : index
    %4 = vector.load %arg4[%c0_7, %c0_8, %c0_9, %c0_10] : memref<1x1x16x4xbf16, #tpu.memory_space<vmem>>, vector<1x1x16x4xbf16>
    %5 = vector.shape_cast %4 : vector<1x1x16x4xbf16> to vector<1x16x4xbf16>
    %c0_i32 = arith.constant 0 : i32
    %6 = arith.cmpi eq, %arg1, %c0_i32 : i32
    %cst = arith.constant 0.000000e+00 : bf16
    %7 = vector.broadcast %cst : bf16 to vector<1x16x4xbf16>
    %8 = arith.select %6, %7, %1 : vector<1x16x4xbf16>
    %c1_i32 = arith.constant 1 : i32
    %9 = arith.cmpi eq, %arg1, %c1_i32 : i32
    %cst_11 = arith.constant 0.000000e+00 : bf16
    %10 = vector.broadcast %cst_11 : bf16 to vector<1x16x4xbf16>
    %11 = arith.select %9, %10, %5 : vector<1x16x4xbf16>
    %12 = tpu.concatenate %8, %3, %11 in 0 : vector<1x16x4xbf16>, vector<8x16x4xbf16>, vector<1x16x4xbf16> -> vector<10x16x4xbf16>
    %cst_12 = arith.constant 0.000000e+00 : bf16
    %13 = vector.broadcast %cst_12 : bf16 to vector<10x1x4xbf16>
    %14 = tpu.concatenate %13, %12, %13 in 1 : vector<10x1x4xbf16>, vector<10x16x4xbf16>, vector<10x1x4xbf16> -> vector<10x18x4xbf16>
    %cst_13 = arith.constant 0.000000e+00 : f32
    %15 = vector.broadcast %cst_13 : f32 to vector<128x128xf32>
    %16 = vector.extract_strided_slice %14 {offsets = [0, 0, 0], sizes = [8, 16, 4], strides = [1, 1, 1]} : vector<10x18x4xbf16> to vector<8x16x4xbf16>
    %17 = vector.shape_cast %16 : vector<8x16x4xbf16> to vector<128x4xbf16>
    %c0_14 = arith.constant 0 : index
    %c0_15 = arith.constant 0 : index
    %c0_16 = arith.constant 0 : index
    %18 = vector.load %arg7[%c0_14, %c0_15, %c0_16] : memref<9x4x128xbf16, #tpu.memory_space<vmem>>, vector<1x4x128xbf16>
    %19 = vector.shape_cast %18 : vector<1x4x128xbf16> to vector<4x128xbf16>
    %cst_17 = arith.constant dense<0.000000e+00> : vector<128x128xf32>
    %20 = tpu.matmul %17, %19, %cst_17 {dimension_numbers = #tpu.dot_dimension_numbers<[1], [0], [0], [1], [0, 0, 1, 1], [], []>} : vector<128x4xbf16>, vector<4x128xbf16>, vector<128x128xf32> -> vector<128x128xf32>
    %21 = arith.addf %15, %20 : vector<128x128xf32>
    %22 = vector.extract_strided_slice %14 {offsets = [0, 1, 0], sizes = [8, 16, 4], strides = [1, 1, 1]} : vector<10x18x4xbf16> to vector<8x16x4xbf16>
    %23 = vector.shape_cast %22 : vector<8x16x4xbf16> to vector<128x4xbf16>
    %c1 = arith.constant 1 : index
    %c0_18 = arith.constant 0 : index
    %c0_19 = arith.constant 0 : index
    %24 = vector.load %arg7[%c1, %c0_18, %c0_19] : memref<9x4x128xbf16, #tpu.memory_space<vmem>>, vector<1x4x128xbf16>
    %25 = vector.shape_cast %24 : vector<1x4x128xbf16> to vector<4x128xbf16>
    %cst_20 = arith.constant dense<0.000000e+00> : vector<128x128xf32>
    %26 = tpu.matmul %23, %25, %cst_20 {dimension_numbers = #tpu.dot_dimension_numbers<[1], [0], [0], [1], [0, 0, 1, 1], [], []>} : vector<128x4xbf16>, vector<4x128xbf16>, vector<128x128xf32> -> vector<128x128xf32>
    %27 = arith.addf %21, %26 : vector<128x128xf32>
    %28 = vector.extract_strided_slice %14 {offsets = [0, 2, 0], sizes = [8, 16, 4], strides = [1, 1, 1]} : vector<10x18x4xbf16> to vector<8x16x4xbf16>
    %29 = vector.shape_cast %28 : vector<8x16x4xbf16> to vector<128x4xbf16>
    %c2 = arith.constant 2 : index
    %c0_21 = arith.constant 0 : index
    %c0_22 = arith.constant 0 : index
    %30 = vector.load %arg7[%c2, %c0_21, %c0_22] : memref<9x4x128xbf16, #tpu.memory_space<vmem>>, vector<1x4x128xbf16>
    %31 = vector.shape_cast %30 : vector<1x4x128xbf16> to vector<4x128xbf16>
    %cst_23 = arith.constant dense<0.000000e+00> : vector<128x128xf32>
    %32 = tpu.matmul %29, %31, %cst_23 {dimension_numbers = #tpu.dot_dimension_numbers<[1], [0], [0], [1], [0, 0, 1, 1], [], []>} : vector<128x4xbf16>, vector<4x128xbf16>, vector<128x128xf32> -> vector<128x128xf32>
    %33 = arith.addf %27, %32 : vector<128x128xf32>
    %34 = vector.extract_strided_slice %14 {offsets = [1, 0, 0], sizes = [8, 16, 4], strides = [1, 1, 1]} : vector<10x18x4xbf16> to vector<8x16x4xbf16>
    %35 = vector.shape_cast %34 : vector<8x16x4xbf16> to vector<128x4xbf16>
    %c3 = arith.constant 3 : index
    %c0_24 = arith.constant 0 : index
    %c0_25 = arith.constant 0 : index
    %36 = vector.load %arg7[%c3, %c0_24, %c0_25] : memref<9x4x128xbf16, #tpu.memory_space<vmem>>, vector<1x4x128xbf16>
    %37 = vector.shape_cast %36 : vector<1x4x128xbf16> to vector<4x128xbf16>
    %cst_26 = arith.constant dense<0.000000e+00> : vector<128x128xf32>
    %38 = tpu.matmul %35, %37, %cst_26 {dimension_numbers = #tpu.dot_dimension_numbers<[1], [0], [0], [1], [0, 0, 1, 1], [], []>} : vector<128x4xbf16>, vector<4x128xbf16>, vector<128x128xf32> -> vector<128x128xf32>
    %39 = arith.addf %33, %38 : vector<128x128xf32>
    %40 = vector.extract_strided_slice %14 {offsets = [1, 1, 0], sizes = [8, 16, 4], strides = [1, 1, 1]} : vector<10x18x4xbf16> to vector<8x16x4xbf16>
    %41 = vector.shape_cast %40 : vector<8x16x4xbf16> to vector<128x4xbf16>
    %c4 = arith.constant 4 : index
    %c0_27 = arith.constant 0 : index
    %c0_28 = arith.constant 0 : index
    %42 = vector.load %arg7[%c4, %c0_27, %c0_28] : memref<9x4x128xbf16, #tpu.memory_space<vmem>>, vector<1x4x128xbf16>
    %43 = vector.shape_cast %42 : vector<1x4x128xbf16> to vector<4x128xbf16>
    %cst_29 = arith.constant dense<0.000000e+00> : vector<128x128xf32>
    %44 = tpu.matmul %41, %43, %cst_29 {dimension_numbers = #tpu.dot_dimension_numbers<[1], [0], [0], [1], [0, 0, 1, 1], [], []>} : vector<128x4xbf16>, vector<4x128xbf16>, vector<128x128xf32> -> vector<128x128xf32>
    %45 = arith.addf %39, %44 : vector<128x128xf32>
    %46 = vector.extract_strided_slice %14 {offsets = [1, 2, 0], sizes = [8, 16, 4], strides = [1, 1, 1]} : vector<10x18x4xbf16> to vector<8x16x4xbf16>
    %47 = vector.shape_cast %46 : vector<8x16x4xbf16> to vector<128x4xbf16>
    %c5 = arith.constant 5 : index
    %c0_30 = arith.constant 0 : index
    %c0_31 = arith.constant 0 : index
    %48 = vector.load %arg7[%c5, %c0_30, %c0_31] : memref<9x4x128xbf16, #tpu.memory_space<vmem>>, vector<1x4x128xbf16>
    %49 = vector.shape_cast %48 : vector<1x4x128xbf16> to vector<4x128xbf16>
    %cst_32 = arith.constant dense<0.000000e+00> : vector<128x128xf32>
    %50 = tpu.matmul %47, %49, %cst_32 {dimension_numbers = #tpu.dot_dimension_numbers<[1], [0], [0], [1], [0, 0, 1, 1], [], []>} : vector<128x4xbf16>, vector<4x128xbf16>, vector<128x128xf32> -> vector<128x128xf32>
    %51 = arith.addf %45, %50 : vector<128x128xf32>
    %52 = vector.extract_strided_slice %14 {offsets = [2, 0, 0], sizes = [8, 16, 4], strides = [1, 1, 1]} : vector<10x18x4xbf16> to vector<8x16x4xbf16>
    %53 = vector.shape_cast %52 : vector<8x16x4xbf16> to vector<128x4xbf16>
    %c6 = arith.constant 6 : index
    %c0_33 = arith.constant 0 : index
    %c0_34 = arith.constant 0 : index
    %54 = vector.load %arg7[%c6, %c0_33, %c0_34] : memref<9x4x128xbf16, #tpu.memory_space<vmem>>, vector<1x4x128xbf16>
    %55 = vector.shape_cast %54 : vector<1x4x128xbf16> to vector<4x128xbf16>
    %cst_35 = arith.constant dense<0.000000e+00> : vector<128x128xf32>
    %56 = tpu.matmul %53, %55, %cst_35 {dimension_numbers = #tpu.dot_dimension_numbers<[1], [0], [0], [1], [0, 0, 1, 1], [], []>} : vector<128x4xbf16>, vector<4x128xbf16>, vector<128x128xf32> -> vector<128x128xf32>
    %57 = arith.addf %51, %56 : vector<128x128xf32>
    %58 = vector.extract_strided_slice %14 {offsets = [2, 1, 0], sizes = [8, 16, 4], strides = [1, 1, 1]} : vector<10x18x4xbf16> to vector<8x16x4xbf16>
    %59 = vector.shape_cast %58 : vector<8x16x4xbf16> to vector<128x4xbf16>
    %c7 = arith.constant 7 : index
    %c0_36 = arith.constant 0 : index
    %c0_37 = arith.constant 0 : index
    %60 = vector.load %arg7[%c7, %c0_36, %c0_37] : memref<9x4x128xbf16, #tpu.memory_space<vmem>>, vector<1x4x128xbf16>
    %61 = vector.shape_cast %60 : vector<1x4x128xbf16> to vector<4x128xbf16>
    %cst_38 = arith.constant dense<0.000000e+00> : vector<128x128xf32>
    %62 = tpu.matmul %59, %61, %cst_38 {dimension_numbers = #tpu.dot_dimension_numbers<[1], [0], [0], [1], [0, 0, 1, 1], [], []>} : vector<128x4xbf16>, vector<4x128xbf16>, vector<128x128xf32> -> vector<128x128xf32>
    %63 = arith.addf %57, %62 : vector<128x128xf32>
    %64 = vector.extract_strided_slice %14 {offsets = [2, 2, 0], sizes = [8, 16, 4], strides = [1, 1, 1]} : vector<10x18x4xbf16> to vector<8x16x4xbf16>
    %65 = vector.shape_cast %64 : vector<8x16x4xbf16> to vector<128x4xbf16>
    %c8 = arith.constant 8 : index
    %c0_39 = arith.constant 0 : index
    %c0_40 = arith.constant 0 : index
    %66 = vector.load %arg7[%c8, %c0_39, %c0_40] : memref<9x4x128xbf16, #tpu.memory_space<vmem>>, vector<1x4x128xbf16>
    %67 = vector.shape_cast %66 : vector<1x4x128xbf16> to vector<4x128xbf16>
    %cst_41 = arith.constant dense<0.000000e+00> : vector<128x128xf32>
    %68 = tpu.matmul %65, %67, %cst_41 {dimension_numbers = #tpu.dot_dimension_numbers<[1], [0], [0], [1], [0, 0, 1, 1], [], []>} : vector<128x4xbf16>, vector<4x128xbf16>, vector<128x128xf32> -> vector<128x128xf32>
    %69 = arith.addf %63, %68 : vector<128x128xf32>
    %70 = vector.shape_cast %69 : vector<128x128xf32> to vector<1x8x16x128xf32>
    %71 = arith.truncf %70 : vector<1x8x16x128xf32> to vector<1x8x16x128xbf16>
    %c0_42 = arith.constant 0 : index
    %c0_43 = arith.constant 0 : index
    %c0_44 = arith.constant 0 : index
    %c0_45 = arith.constant 0 : index
    %72 = vector.load %arg8[%c0_42, %c0_43, %c0_44, %c0_45] : memref<1x8x16x128xbf16, #tpu.memory_space<vmem>>, vector<1x8x16x128xbf16>
    tpu.vector_store %arg8[%c0_42, %c0_43, %c0_44, %c0_45], %71 {strides = array<i32>} : memref<1x8x16x128xbf16, #tpu.memory_space<vmem>>, vector<1x8x16x128xbf16>,
    %cst_46 = arith.constant dense<0.000000e+00> : vector<128xf32>
    %73 = vector.multi_reduction <add>, %69, %cst_46 [0] : vector<128x128xf32> to vector<128xf32>
    %74 = vector.shape_cast %73 : vector<128xf32> to vector<1x128xf32>
    %75 = vector.shape_cast %74 : vector<1x128xf32> to vector<1x1x128xf32>
    %c0_47 = arith.constant 0 : index
    %c0_48 = arith.constant 0 : index
    %c0_49 = arith.constant 0 : index
    %76 = vector.load %arg9[%c0_47, %c0_48, %c0_49] : memref<1x1x128xf32, #tpu.memory_space<vmem>>, vector<1x1x128xf32>
    tpu.vector_store %arg9[%c0_47, %c0_48, %c0_49], %75 {strides = array<i32>} : memref<1x1x128xf32, #tpu.memory_space<vmem>>, vector<1x1x128xf32>,
    %77 = arith.mulf %69, %69 : vector<128x128xf32>
    %cst_50 = arith.constant dense<0.000000e+00> : vector<128xf32>
    %78 = vector.multi_reduction <add>, %77, %cst_50 [0] : vector<128x128xf32> to vector<128xf32>
    %79 = vector.shape_cast %78 : vector<128xf32> to vector<1x128xf32>
    %80 = vector.shape_cast %79 : vector<1x128xf32> to vector<1x1x128xf32>
    %c0_51 = arith.constant 0 : index
    %c0_52 = arith.constant 0 : index
    %c0_53 = arith.constant 0 : index
    %81 = vector.load %arg10[%c0_51, %c0_52, %c0_53] : memref<1x1x128xf32, #tpu.memory_space<vmem>>, vector<1x1x128xf32>
    tpu.vector_store %arg10[%c0_51, %c0_52, %c0_53], %80 {strides = array<i32>} : memref<1x1x128xf32, #tpu.memory_space<vmem>>, vector<1x1x128xf32>,
    return
  }
  func.func @transform_0(%arg0: i32, %arg1: i32) -> (i32, i32, i32, i32) {
    %c8_i32 = arith.constant 8 : i32
    %0 = arith.muli %arg1, %c8_i32 : i32
    %c1_i32 = arith.constant 1 : i32
    %1 = arith.subi %0, %c1_i32 : i32
    %c0_i32 = arith.constant 0 : i32
    %2 = arith.maxsi %1, %c0_i32 : i32
    %c0_i32_0 = arith.constant 0 : i32
    %c0_i32_1 = arith.constant 0 : i32
    %c0_i32_2 = arith.constant 0 : i32
    return %arg0, %2, %c0_i32_0, %c0_i32_1 : i32, i32, i32, i32
  }
  func.func @transform_1(%arg0: i32, %arg1: i32) -> (i32, i32, i32, i32) {
    %c0_i32 = arith.constant 0 : i32
    %c0_i32_0 = arith.constant 0 : i32
    %c0_i32_1 = arith.constant 0 : i32
    return %arg0, %arg1, %c0_i32, %c0_i32_0 : i32, i32, i32, i32
  }
  func.func @transform_2(%arg0: i32, %arg1: i32) -> (i32, i32, i32, i32) {
    %c8_i32 = arith.constant 8 : i32
    %0 = arith.muli %arg1, %c8_i32 : i32
    %c8_i32_0 = arith.constant 8 : i32
    %1 = arith.addi %0, %c8_i32_0 : i32
    %c15_i32 = arith.constant 15 : i32
    %2 = arith.minsi %1, %c15_i32 : i32
    %c0_i32 = arith.constant 0 : i32
    %c0_i32_1 = arith.constant 0 : i32
    %c0_i32_2 = arith.constant 0 : i32
    return %arg0, %2, %c0_i32, %c0_i32_1 : i32, i32, i32, i32
  }
  func.func @transform_3(%arg0: i32, %arg1: i32) -> (i32, i32) {
    %c0_i32 = arith.constant 0 : i32
    %c0_i32_0 = arith.constant 0 : i32
    %c0_i32_1 = arith.constant 0 : i32
    return %c0_i32, %c0_i32_0 : i32, i32
  }
  func.func @transform_4(%arg0: i32, %arg1: i32) -> (i32, i32) {
    %c0_i32 = arith.constant 0 : i32
    %c0_i32_0 = arith.constant 0 : i32
    %c0_i32_1 = arith.constant 0 : i32
    return %c0_i32, %c0_i32_0 : i32, i32
  }
  func.func @transform_5(%arg0: i32, %arg1: i32) -> (i32, i32, i32) {
    %c0_i32 = arith.constant 0 : i32
    %c0_i32_0 = arith.constant 0 : i32
    %c0_i32_1 = arith.constant 0 : i32
    %c0_i32_2 = arith.constant 0 : i32
    return %c0_i32, %c0_i32_0, %c0_i32_1 : i32, i32, i32
  }
  func.func @transform_6(%arg0: i32, %arg1: i32) -> (i32, i32, i32, i32) {
    %c0_i32 = arith.constant 0 : i32
    %c0_i32_0 = arith.constant 0 : i32
    %c0_i32_1 = arith.constant 0 : i32
    return %arg0, %arg1, %c0_i32, %c0_i32_0 : i32, i32, i32, i32
  }
  func.func @transform_7(%arg0: i32, %arg1: i32) -> (i32, i32, i32) {
    %c2_i32 = arith.constant 2 : i32
    %0 = arith.muli %arg0, %c2_i32 : i32
    %1 = arith.addi %0, %arg1 : i32
    %c0_i32 = arith.constant 0 : i32
    %c0_i32_0 = arith.constant 0 : i32
    %c0_i32_1 = arith.constant 0 : i32
    return %1, %c0_i32, %c0_i32_0 : i32, i32, i32
  }
  func.func @transform_8(%arg0: i32, %arg1: i32) -> (i32, i32, i32) {
    %c2_i32 = arith.constant 2 : i32
    %0 = arith.muli %arg0, %c2_i32 : i32
    %1 = arith.addi %0, %arg1 : i32
    %c0_i32 = arith.constant 0 : i32
    %c0_i32_0 = arith.constant 0 : i32
    %c0_i32_1 = arith.constant 0 : i32
    return %1, %c0_i32, %c0_i32_0 : i32, i32, i32
  }
}

module attributes {stable_mosaic.version = 11 : i64} {
  func.func @_conv_bn_stats_kernel(%arg0: i32, %arg1: i32, %arg2: memref<1x1x16x128xbf16, #tpu.memory_space<vmem>>, %arg3: memref<1x8x16x128xbf16, #tpu.memory_space<vmem>>, %arg4: memref<1x1x16x128xbf16, #tpu.memory_space<vmem>>, %arg5: memref<1x128xf32, #tpu.memory_space<vmem>>, %arg6: memref<1x128xf32, #tpu.memory_space<vmem>>, %arg7: memref<9x128x128xbf16, #tpu.memory_space<vmem>>, %arg8: memref<1x8x16x128xbf16, #tpu.memory_space<vmem>>, %arg9: memref<1x1x128xf32, #tpu.memory_space<vmem>>, %arg10: memref<1x1x128xf32, #tpu.memory_space<vmem>>) attributes {dimension_semantics = [#tpu.dimension_semantics<parallel>, #tpu.dimension_semantics<parallel>], iteration_bounds = array<i64: 2, 2>, scalar_prefetch = 0 : i64, scratch_operands = 0 : i64, tpu.core_type = #tpu.core_type<tc>, window_params = [{transform_indices = @transform_0, window_bounds = array<i64: 1, 1, 16, 128>}, {transform_indices = @transform_1, window_bounds = array<i64: 1, 8, 16, 128>}, {transform_indices = @transform_2, window_bounds = array<i64: 1, 1, 16, 128>}, {pipeline_mode = #tpu.pipeline_mode<synchronous>, transform_indices = @transform_3, window_bounds = array<i64: 1, 128>}, {pipeline_mode = #tpu.pipeline_mode<synchronous>, transform_indices = @transform_4, window_bounds = array<i64: 1, 128>}, {pipeline_mode = #tpu.pipeline_mode<synchronous>, transform_indices = @transform_5, window_bounds = array<i64: 9, 128, 128>}, {transform_indices = @transform_6, window_bounds = array<i64: 1, 8, 16, 128>}, {transform_indices = @transform_7, window_bounds = array<i64: 1, 1, 128>}, {transform_indices = @transform_8, window_bounds = array<i64: 1, 1, 128>}]} {
    %c0 = arith.constant 0 : index
    %c0_0 = arith.constant 0 : index
    %c0_1 = arith.constant 0 : index
    %c0_2 = arith.constant 0 : index
    %0 = vector.load %arg2[%c0, %c0_0, %c0_1, %c0_2] : memref<1x1x16x128xbf16, #tpu.memory_space<vmem>>, vector<1x1x16x128xbf16>
    %1 = vector.shape_cast %0 : vector<1x1x16x128xbf16> to vector<1x16x128xbf16>
    %c0_3 = arith.constant 0 : index
    %c0_4 = arith.constant 0 : index
    %2 = vector.load %arg5[%c0_3, %c0_4] : memref<1x128xf32, #tpu.memory_space<vmem>>, vector<1x128xf32>
    %3 = vector.shape_cast %2 : vector<1x128xf32> to vector<1x1x128xf32>
    %c0_5 = arith.constant 0 : index
    %c0_6 = arith.constant 0 : index
    %4 = vector.load %arg6[%c0_5, %c0_6] : memref<1x128xf32, #tpu.memory_space<vmem>>, vector<1x128xf32>
    %5 = vector.shape_cast %4 : vector<1x128xf32> to vector<1x1x128xf32>
    %6 = arith.extf %1 : vector<1x16x128xbf16> to vector<1x16x128xf32>
    %7 = vector.broadcast %3 : vector<1x1x128xf32> to vector<1x16x128xf32>
    %8 = arith.mulf %6, %7 : vector<1x16x128xf32>
    %9 = vector.broadcast %5 : vector<1x1x128xf32> to vector<1x16x128xf32>
    %10 = arith.addf %8, %9 : vector<1x16x128xf32>
    %cst = arith.constant 0.000000e+00 : f32
    %11 = vector.broadcast %cst : f32 to vector<1x16x128xf32>
    %12 = arith.maximumf %10, %11 : vector<1x16x128xf32>
    %13 = arith.truncf %12 : vector<1x16x128xf32> to vector<1x16x128xbf16>
    %c0_7 = arith.constant 0 : index
    %c0_8 = arith.constant 0 : index
    %c0_9 = arith.constant 0 : index
    %c0_10 = arith.constant 0 : index
    %14 = vector.load %arg3[%c0_7, %c0_8, %c0_9, %c0_10] : memref<1x8x16x128xbf16, #tpu.memory_space<vmem>>, vector<1x8x16x128xbf16>
    %15 = vector.shape_cast %14 : vector<1x8x16x128xbf16> to vector<8x16x128xbf16>
    %c0_11 = arith.constant 0 : index
    %c0_12 = arith.constant 0 : index
    %16 = vector.load %arg5[%c0_11, %c0_12] : memref<1x128xf32, #tpu.memory_space<vmem>>, vector<1x128xf32>
    %17 = vector.shape_cast %16 : vector<1x128xf32> to vector<1x1x128xf32>
    %c0_13 = arith.constant 0 : index
    %c0_14 = arith.constant 0 : index
    %18 = vector.load %arg6[%c0_13, %c0_14] : memref<1x128xf32, #tpu.memory_space<vmem>>, vector<1x128xf32>
    %19 = vector.shape_cast %18 : vector<1x128xf32> to vector<1x1x128xf32>
    %20 = arith.extf %15 : vector<8x16x128xbf16> to vector<8x16x128xf32>
    %21 = vector.broadcast %17 : vector<1x1x128xf32> to vector<8x16x128xf32>
    %22 = arith.mulf %20, %21 : vector<8x16x128xf32>
    %23 = vector.broadcast %19 : vector<1x1x128xf32> to vector<8x16x128xf32>
    %24 = arith.addf %22, %23 : vector<8x16x128xf32>
    %cst_15 = arith.constant 0.000000e+00 : f32
    %25 = vector.broadcast %cst_15 : f32 to vector<8x16x128xf32>
    %26 = arith.maximumf %24, %25 : vector<8x16x128xf32>
    %27 = arith.truncf %26 : vector<8x16x128xf32> to vector<8x16x128xbf16>
    %c0_16 = arith.constant 0 : index
    %c0_17 = arith.constant 0 : index
    %c0_18 = arith.constant 0 : index
    %c0_19 = arith.constant 0 : index
    %28 = vector.load %arg4[%c0_16, %c0_17, %c0_18, %c0_19] : memref<1x1x16x128xbf16, #tpu.memory_space<vmem>>, vector<1x1x16x128xbf16>
    %29 = vector.shape_cast %28 : vector<1x1x16x128xbf16> to vector<1x16x128xbf16>
    %c0_20 = arith.constant 0 : index
    %c0_21 = arith.constant 0 : index
    %30 = vector.load %arg5[%c0_20, %c0_21] : memref<1x128xf32, #tpu.memory_space<vmem>>, vector<1x128xf32>
    %31 = vector.shape_cast %30 : vector<1x128xf32> to vector<1x1x128xf32>
    %c0_22 = arith.constant 0 : index
    %c0_23 = arith.constant 0 : index
    %32 = vector.load %arg6[%c0_22, %c0_23] : memref<1x128xf32, #tpu.memory_space<vmem>>, vector<1x128xf32>
    %33 = vector.shape_cast %32 : vector<1x128xf32> to vector<1x1x128xf32>
    %34 = arith.extf %29 : vector<1x16x128xbf16> to vector<1x16x128xf32>
    %35 = vector.broadcast %31 : vector<1x1x128xf32> to vector<1x16x128xf32>
    %36 = arith.mulf %34, %35 : vector<1x16x128xf32>
    %37 = vector.broadcast %33 : vector<1x1x128xf32> to vector<1x16x128xf32>
    %38 = arith.addf %36, %37 : vector<1x16x128xf32>
    %cst_24 = arith.constant 0.000000e+00 : f32
    %39 = vector.broadcast %cst_24 : f32 to vector<1x16x128xf32>
    %40 = arith.maximumf %38, %39 : vector<1x16x128xf32>
    %41 = arith.truncf %40 : vector<1x16x128xf32> to vector<1x16x128xbf16>
    %c0_i32 = arith.constant 0 : i32
    %42 = arith.cmpi eq, %arg1, %c0_i32 : i32
    %cst_25 = arith.constant 0.000000e+00 : bf16
    %43 = vector.broadcast %cst_25 : bf16 to vector<1x16x128xbf16>
    %44 = arith.select %42, %43, %13 : vector<1x16x128xbf16>
    %c1_i32 = arith.constant 1 : i32
    %45 = arith.cmpi eq, %arg1, %c1_i32 : i32
    %cst_26 = arith.constant 0.000000e+00 : bf16
    %46 = vector.broadcast %cst_26 : bf16 to vector<1x16x128xbf16>
    %47 = arith.select %45, %46, %41 : vector<1x16x128xbf16>
    %48 = tpu.concatenate %44, %27, %47 in 0 : vector<1x16x128xbf16>, vector<8x16x128xbf16>, vector<1x16x128xbf16> -> vector<10x16x128xbf16>
    %cst_27 = arith.constant 0.000000e+00 : bf16
    %49 = vector.broadcast %cst_27 : bf16 to vector<10x1x128xbf16>
    %50 = tpu.concatenate %49, %48, %49 in 1 : vector<10x1x128xbf16>, vector<10x16x128xbf16>, vector<10x1x128xbf16> -> vector<10x18x128xbf16>
    %cst_28 = arith.constant 0.000000e+00 : f32
    %51 = vector.broadcast %cst_28 : f32 to vector<128x128xf32>
    %52 = vector.extract_strided_slice %50 {offsets = [0, 0, 0], sizes = [8, 16, 128], strides = [1, 1, 1]} : vector<10x18x128xbf16> to vector<8x16x128xbf16>
    %53 = vector.shape_cast %52 : vector<8x16x128xbf16> to vector<128x128xbf16>
    %c0_29 = arith.constant 0 : index
    %c0_30 = arith.constant 0 : index
    %c0_31 = arith.constant 0 : index
    %54 = vector.load %arg7[%c0_29, %c0_30, %c0_31] : memref<9x128x128xbf16, #tpu.memory_space<vmem>>, vector<1x128x128xbf16>
    %55 = vector.shape_cast %54 : vector<1x128x128xbf16> to vector<128x128xbf16>
    %cst_32 = arith.constant dense<0.000000e+00> : vector<128x128xf32>
    %56 = tpu.matmul %53, %55, %cst_32 {dimension_numbers = #tpu.dot_dimension_numbers<[1], [0], [0], [1], [0, 0, 1, 1], [], []>} : vector<128x128xbf16>, vector<128x128xbf16>, vector<128x128xf32> -> vector<128x128xf32>
    %57 = arith.addf %51, %56 : vector<128x128xf32>
    %58 = vector.extract_strided_slice %50 {offsets = [0, 1, 0], sizes = [8, 16, 128], strides = [1, 1, 1]} : vector<10x18x128xbf16> to vector<8x16x128xbf16>
    %59 = vector.shape_cast %58 : vector<8x16x128xbf16> to vector<128x128xbf16>
    %c1 = arith.constant 1 : index
    %c0_33 = arith.constant 0 : index
    %c0_34 = arith.constant 0 : index
    %60 = vector.load %arg7[%c1, %c0_33, %c0_34] : memref<9x128x128xbf16, #tpu.memory_space<vmem>>, vector<1x128x128xbf16>
    %61 = vector.shape_cast %60 : vector<1x128x128xbf16> to vector<128x128xbf16>
    %cst_35 = arith.constant dense<0.000000e+00> : vector<128x128xf32>
    %62 = tpu.matmul %59, %61, %cst_35 {dimension_numbers = #tpu.dot_dimension_numbers<[1], [0], [0], [1], [0, 0, 1, 1], [], []>} : vector<128x128xbf16>, vector<128x128xbf16>, vector<128x128xf32> -> vector<128x128xf32>
    %63 = arith.addf %57, %62 : vector<128x128xf32>
    %64 = vector.extract_strided_slice %50 {offsets = [0, 2, 0], sizes = [8, 16, 128], strides = [1, 1, 1]} : vector<10x18x128xbf16> to vector<8x16x128xbf16>
    %65 = vector.shape_cast %64 : vector<8x16x128xbf16> to vector<128x128xbf16>
    %c2 = arith.constant 2 : index
    %c0_36 = arith.constant 0 : index
    %c0_37 = arith.constant 0 : index
    %66 = vector.load %arg7[%c2, %c0_36, %c0_37] : memref<9x128x128xbf16, #tpu.memory_space<vmem>>, vector<1x128x128xbf16>
    %67 = vector.shape_cast %66 : vector<1x128x128xbf16> to vector<128x128xbf16>
    %cst_38 = arith.constant dense<0.000000e+00> : vector<128x128xf32>
    %68 = tpu.matmul %65, %67, %cst_38 {dimension_numbers = #tpu.dot_dimension_numbers<[1], [0], [0], [1], [0, 0, 1, 1], [], []>} : vector<128x128xbf16>, vector<128x128xbf16>, vector<128x128xf32> -> vector<128x128xf32>
    %69 = arith.addf %63, %68 : vector<128x128xf32>
    %70 = vector.extract_strided_slice %50 {offsets = [1, 0, 0], sizes = [8, 16, 128], strides = [1, 1, 1]} : vector<10x18x128xbf16> to vector<8x16x128xbf16>
    %71 = vector.shape_cast %70 : vector<8x16x128xbf16> to vector<128x128xbf16>
    %c3 = arith.constant 3 : index
    %c0_39 = arith.constant 0 : index
    %c0_40 = arith.constant 0 : index
    %72 = vector.load %arg7[%c3, %c0_39, %c0_40] : memref<9x128x128xbf16, #tpu.memory_space<vmem>>, vector<1x128x128xbf16>
    %73 = vector.shape_cast %72 : vector<1x128x128xbf16> to vector<128x128xbf16>
    %cst_41 = arith.constant dense<0.000000e+00> : vector<128x128xf32>
    %74 = tpu.matmul %71, %73, %cst_41 {dimension_numbers = #tpu.dot_dimension_numbers<[1], [0], [0], [1], [0, 0, 1, 1], [], []>} : vector<128x128xbf16>, vector<128x128xbf16>, vector<128x128xf32> -> vector<128x128xf32>
    %75 = arith.addf %69, %74 : vector<128x128xf32>
    %76 = vector.extract_strided_slice %50 {offsets = [1, 1, 0], sizes = [8, 16, 128], strides = [1, 1, 1]} : vector<10x18x128xbf16> to vector<8x16x128xbf16>
    %77 = vector.shape_cast %76 : vector<8x16x128xbf16> to vector<128x128xbf16>
    %c4 = arith.constant 4 : index
    %c0_42 = arith.constant 0 : index
    %c0_43 = arith.constant 0 : index
    %78 = vector.load %arg7[%c4, %c0_42, %c0_43] : memref<9x128x128xbf16, #tpu.memory_space<vmem>>, vector<1x128x128xbf16>
    %79 = vector.shape_cast %78 : vector<1x128x128xbf16> to vector<128x128xbf16>
    %cst_44 = arith.constant dense<0.000000e+00> : vector<128x128xf32>
    %80 = tpu.matmul %77, %79, %cst_44 {dimension_numbers = #tpu.dot_dimension_numbers<[1], [0], [0], [1], [0, 0, 1, 1], [], []>} : vector<128x128xbf16>, vector<128x128xbf16>, vector<128x128xf32> -> vector<128x128xf32>
    %81 = arith.addf %75, %80 : vector<128x128xf32>
    %82 = vector.extract_strided_slice %50 {offsets = [1, 2, 0], sizes = [8, 16, 128], strides = [1, 1, 1]} : vector<10x18x128xbf16> to vector<8x16x128xbf16>
    %83 = vector.shape_cast %82 : vector<8x16x128xbf16> to vector<128x128xbf16>
    %c5 = arith.constant 5 : index
    %c0_45 = arith.constant 0 : index
    %c0_46 = arith.constant 0 : index
    %84 = vector.load %arg7[%c5, %c0_45, %c0_46] : memref<9x128x128xbf16, #tpu.memory_space<vmem>>, vector<1x128x128xbf16>
    %85 = vector.shape_cast %84 : vector<1x128x128xbf16> to vector<128x128xbf16>
    %cst_47 = arith.constant dense<0.000000e+00> : vector<128x128xf32>
    %86 = tpu.matmul %83, %85, %cst_47 {dimension_numbers = #tpu.dot_dimension_numbers<[1], [0], [0], [1], [0, 0, 1, 1], [], []>} : vector<128x128xbf16>, vector<128x128xbf16>, vector<128x128xf32> -> vector<128x128xf32>
    %87 = arith.addf %81, %86 : vector<128x128xf32>
    %88 = vector.extract_strided_slice %50 {offsets = [2, 0, 0], sizes = [8, 16, 128], strides = [1, 1, 1]} : vector<10x18x128xbf16> to vector<8x16x128xbf16>
    %89 = vector.shape_cast %88 : vector<8x16x128xbf16> to vector<128x128xbf16>
    %c6 = arith.constant 6 : index
    %c0_48 = arith.constant 0 : index
    %c0_49 = arith.constant 0 : index
    %90 = vector.load %arg7[%c6, %c0_48, %c0_49] : memref<9x128x128xbf16, #tpu.memory_space<vmem>>, vector<1x128x128xbf16>
    %91 = vector.shape_cast %90 : vector<1x128x128xbf16> to vector<128x128xbf16>
    %cst_50 = arith.constant dense<0.000000e+00> : vector<128x128xf32>
    %92 = tpu.matmul %89, %91, %cst_50 {dimension_numbers = #tpu.dot_dimension_numbers<[1], [0], [0], [1], [0, 0, 1, 1], [], []>} : vector<128x128xbf16>, vector<128x128xbf16>, vector<128x128xf32> -> vector<128x128xf32>
    %93 = arith.addf %87, %92 : vector<128x128xf32>
    %94 = vector.extract_strided_slice %50 {offsets = [2, 1, 0], sizes = [8, 16, 128], strides = [1, 1, 1]} : vector<10x18x128xbf16> to vector<8x16x128xbf16>
    %95 = vector.shape_cast %94 : vector<8x16x128xbf16> to vector<128x128xbf16>
    %c7 = arith.constant 7 : index
    %c0_51 = arith.constant 0 : index
    %c0_52 = arith.constant 0 : index
    %96 = vector.load %arg7[%c7, %c0_51, %c0_52] : memref<9x128x128xbf16, #tpu.memory_space<vmem>>, vector<1x128x128xbf16>
    %97 = vector.shape_cast %96 : vector<1x128x128xbf16> to vector<128x128xbf16>
    %cst_53 = arith.constant dense<0.000000e+00> : vector<128x128xf32>
    %98 = tpu.matmul %95, %97, %cst_53 {dimension_numbers = #tpu.dot_dimension_numbers<[1], [0], [0], [1], [0, 0, 1, 1], [], []>} : vector<128x128xbf16>, vector<128x128xbf16>, vector<128x128xf32> -> vector<128x128xf32>
    %99 = arith.addf %93, %98 : vector<128x128xf32>
    %100 = vector.extract_strided_slice %50 {offsets = [2, 2, 0], sizes = [8, 16, 128], strides = [1, 1, 1]} : vector<10x18x128xbf16> to vector<8x16x128xbf16>
    %101 = vector.shape_cast %100 : vector<8x16x128xbf16> to vector<128x128xbf16>
    %c8 = arith.constant 8 : index
    %c0_54 = arith.constant 0 : index
    %c0_55 = arith.constant 0 : index
    %102 = vector.load %arg7[%c8, %c0_54, %c0_55] : memref<9x128x128xbf16, #tpu.memory_space<vmem>>, vector<1x128x128xbf16>
    %103 = vector.shape_cast %102 : vector<1x128x128xbf16> to vector<128x128xbf16>
    %cst_56 = arith.constant dense<0.000000e+00> : vector<128x128xf32>
    %104 = tpu.matmul %101, %103, %cst_56 {dimension_numbers = #tpu.dot_dimension_numbers<[1], [0], [0], [1], [0, 0, 1, 1], [], []>} : vector<128x128xbf16>, vector<128x128xbf16>, vector<128x128xf32> -> vector<128x128xf32>
    %105 = arith.addf %99, %104 : vector<128x128xf32>
    %106 = vector.shape_cast %105 : vector<128x128xf32> to vector<1x8x16x128xf32>
    %107 = arith.truncf %106 : vector<1x8x16x128xf32> to vector<1x8x16x128xbf16>
    %c0_57 = arith.constant 0 : index
    %c0_58 = arith.constant 0 : index
    %c0_59 = arith.constant 0 : index
    %c0_60 = arith.constant 0 : index
    %108 = vector.load %arg8[%c0_57, %c0_58, %c0_59, %c0_60] : memref<1x8x16x128xbf16, #tpu.memory_space<vmem>>, vector<1x8x16x128xbf16>
    tpu.vector_store %arg8[%c0_57, %c0_58, %c0_59, %c0_60], %107 {strides = array<i32>} : memref<1x8x16x128xbf16, #tpu.memory_space<vmem>>, vector<1x8x16x128xbf16>,
    %cst_61 = arith.constant dense<0.000000e+00> : vector<128xf32>
    %109 = vector.multi_reduction <add>, %105, %cst_61 [0] : vector<128x128xf32> to vector<128xf32>
    %110 = vector.shape_cast %109 : vector<128xf32> to vector<1x128xf32>
    %111 = vector.shape_cast %110 : vector<1x128xf32> to vector<1x1x128xf32>
    %c0_62 = arith.constant 0 : index
    %c0_63 = arith.constant 0 : index
    %c0_64 = arith.constant 0 : index
    %112 = vector.load %arg9[%c0_62, %c0_63, %c0_64] : memref<1x1x128xf32, #tpu.memory_space<vmem>>, vector<1x1x128xf32>
    tpu.vector_store %arg9[%c0_62, %c0_63, %c0_64], %111 {strides = array<i32>} : memref<1x1x128xf32, #tpu.memory_space<vmem>>, vector<1x1x128xf32>,
    %113 = arith.mulf %105, %105 : vector<128x128xf32>
    %cst_65 = arith.constant dense<0.000000e+00> : vector<128xf32>
    %114 = vector.multi_reduction <add>, %113, %cst_65 [0] : vector<128x128xf32> to vector<128xf32>
    %115 = vector.shape_cast %114 : vector<128xf32> to vector<1x128xf32>
    %116 = vector.shape_cast %115 : vector<1x128xf32> to vector<1x1x128xf32>
    %c0_66 = arith.constant 0 : index
    %c0_67 = arith.constant 0 : index
    %c0_68 = arith.constant 0 : index
    %117 = vector.load %arg10[%c0_66, %c0_67, %c0_68] : memref<1x1x128xf32, #tpu.memory_space<vmem>>, vector<1x1x128xf32>
    tpu.vector_store %arg10[%c0_66, %c0_67, %c0_68], %116 {strides = array<i32>} : memref<1x1x128xf32, #tpu.memory_space<vmem>>, vector<1x1x128xf32>,
    return
  }
  func.func @transform_0(%arg0: i32, %arg1: i32) -> (i32, i32, i32, i32) {
    %c8_i32 = arith.constant 8 : i32
    %0 = arith.muli %arg1, %c8_i32 : i32
    %c1_i32 = arith.constant 1 : i32
    %1 = arith.subi %0, %c1_i32 : i32
    %c0_i32 = arith.constant 0 : i32
    %2 = arith.maxsi %1, %c0_i32 : i32
    %c0_i32_0 = arith.constant 0 : i32
    %c0_i32_1 = arith.constant 0 : i32
    %c0_i32_2 = arith.constant 0 : i32
    return %arg0, %2, %c0_i32_0, %c0_i32_1 : i32, i32, i32, i32
  }
  func.func @transform_1(%arg0: i32, %arg1: i32) -> (i32, i32, i32, i32) {
    %c0_i32 = arith.constant 0 : i32
    %c0_i32_0 = arith.constant 0 : i32
    %c0_i32_1 = arith.constant 0 : i32
    return %arg0, %arg1, %c0_i32, %c0_i32_0 : i32, i32, i32, i32
  }
  func.func @transform_2(%arg0: i32, %arg1: i32) -> (i32, i32, i32, i32) {
    %c8_i32 = arith.constant 8 : i32
    %0 = arith.muli %arg1, %c8_i32 : i32
    %c8_i32_0 = arith.constant 8 : i32
    %1 = arith.addi %0, %c8_i32_0 : i32
    %c15_i32 = arith.constant 15 : i32
    %2 = arith.minsi %1, %c15_i32 : i32
    %c0_i32 = arith.constant 0 : i32
    %c0_i32_1 = arith.constant 0 : i32
    %c0_i32_2 = arith.constant 0 : i32
    return %arg0, %2, %c0_i32, %c0_i32_1 : i32, i32, i32, i32
  }
  func.func @transform_3(%arg0: i32, %arg1: i32) -> (i32, i32) {
    %c0_i32 = arith.constant 0 : i32
    %c0_i32_0 = arith.constant 0 : i32
    %c0_i32_1 = arith.constant 0 : i32
    return %c0_i32, %c0_i32_0 : i32, i32
  }
  func.func @transform_4(%arg0: i32, %arg1: i32) -> (i32, i32) {
    %c0_i32 = arith.constant 0 : i32
    %c0_i32_0 = arith.constant 0 : i32
    %c0_i32_1 = arith.constant 0 : i32
    return %c0_i32, %c0_i32_0 : i32, i32
  }
  func.func @transform_5(%arg0: i32, %arg1: i32) -> (i32, i32, i32) {
    %c0_i32 = arith.constant 0 : i32
    %c0_i32_0 = arith.constant 0 : i32
    %c0_i32_1 = arith.constant 0 : i32
    %c0_i32_2 = arith.constant 0 : i32
    return %c0_i32, %c0_i32_0, %c0_i32_1 : i32, i32, i32
  }
  func.func @transform_6(%arg0: i32, %arg1: i32) -> (i32, i32, i32, i32) {
    %c0_i32 = arith.constant 0 : i32
    %c0_i32_0 = arith.constant 0 : i32
    %c0_i32_1 = arith.constant 0 : i32
    return %arg0, %arg1, %c0_i32, %c0_i32_0 : i32, i32, i32, i32
  }
  func.func @transform_7(%arg0: i32, %arg1: i32) -> (i32, i32, i32) {
    %c2_i32 = arith.constant 2 : i32
    %0 = arith.muli %arg0, %c2_i32 : i32
    %1 = arith.addi %0, %arg1 : i32
    %c0_i32 = arith.constant 0 : i32
    %c0_i32_0 = arith.constant 0 : i32
    %c0_i32_1 = arith.constant 0 : i32
    return %1, %c0_i32, %c0_i32_0 : i32, i32, i32
  }
  func.func @transform_8(%arg0: i32, %arg1: i32) -> (i32, i32, i32) {
    %c2_i32 = arith.constant 2 : i32
    %0 = arith.muli %arg0, %c2_i32 : i32
    %1 = arith.addi %0, %arg1 : i32
    %c0_i32 = arith.constant 0 : i32
    %c0_i32_0 = arith.constant 0 : i32
    %c0_i32_1 = arith.constant 0 : i32
    return %1, %c0_i32, %c0_i32_0 : i32, i32, i32
  }
}

module attributes {stable_mosaic.version = 11 : i64} {
  func.func @_bn_relu_kernel(%arg0: i32, %arg1: i32, %arg2: memref<1x8x16x128xbf16, #tpu.memory_space<vmem>>, %arg3: memref<1x128xf32, #tpu.memory_space<vmem>>, %arg4: memref<1x128xf32, #tpu.memory_space<vmem>>, %arg5: memref<1x8x16x128xbf16, #tpu.memory_space<vmem>>) attributes {dimension_semantics = [#tpu.dimension_semantics<parallel>, #tpu.dimension_semantics<parallel>], iteration_bounds = array<i64: 2, 2>, scalar_prefetch = 0 : i64, scratch_operands = 0 : i64, tpu.core_type = #tpu.core_type<tc>, window_params = [{transform_indices = @transform_0, window_bounds = array<i64: 1, 8, 16, 128>}, {pipeline_mode = #tpu.pipeline_mode<synchronous>, transform_indices = @transform_1, window_bounds = array<i64: 1, 128>}, {pipeline_mode = #tpu.pipeline_mode<synchronous>, transform_indices = @transform_2, window_bounds = array<i64: 1, 128>}, {transform_indices = @transform_3, window_bounds = array<i64: 1, 8, 16, 128>}]} {
    %c0 = arith.constant 0 : index
    %c0_0 = arith.constant 0 : index
    %c0_1 = arith.constant 0 : index
    %c0_2 = arith.constant 0 : index
    %0 = vector.load %arg2[%c0, %c0_0, %c0_1, %c0_2] : memref<1x8x16x128xbf16, #tpu.memory_space<vmem>>, vector<1x8x16x128xbf16>
    %1 = arith.extf %0 : vector<1x8x16x128xbf16> to vector<1x8x16x128xf32>
    %c0_3 = arith.constant 0 : index
    %c0_4 = arith.constant 0 : index
    %2 = vector.load %arg3[%c0_3, %c0_4] : memref<1x128xf32, #tpu.memory_space<vmem>>, vector<1x128xf32>
    %3 = vector.shape_cast %2 : vector<1x128xf32> to vector<1x1x1x128xf32>
    %c0_5 = arith.constant 0 : index
    %c0_6 = arith.constant 0 : index
    %4 = vector.load %arg4[%c0_5, %c0_6] : memref<1x128xf32, #tpu.memory_space<vmem>>, vector<1x128xf32>
    %5 = vector.shape_cast %4 : vector<1x128xf32> to vector<1x1x1x128xf32>
    %6 = vector.broadcast %3 : vector<1x1x1x128xf32> to vector<1x8x16x128xf32>
    %7 = arith.mulf %1, %6 : vector<1x8x16x128xf32>
    %8 = vector.broadcast %5 : vector<1x1x1x128xf32> to vector<1x8x16x128xf32>
    %9 = arith.addf %7, %8 : vector<1x8x16x128xf32>
    %cst = arith.constant 0.000000e+00 : f32
    %10 = vector.broadcast %cst : f32 to vector<1x8x16x128xf32>
    %11 = arith.maximumf %9, %10 : vector<1x8x16x128xf32>
    %12 = arith.truncf %11 : vector<1x8x16x128xf32> to vector<1x8x16x128xbf16>
    %c0_7 = arith.constant 0 : index
    %c0_8 = arith.constant 0 : index
    %c0_9 = arith.constant 0 : index
    %c0_10 = arith.constant 0 : index
    %13 = vector.load %arg5[%c0_7, %c0_8, %c0_9, %c0_10] : memref<1x8x16x128xbf16, #tpu.memory_space<vmem>>, vector<1x8x16x128xbf16>
    tpu.vector_store %arg5[%c0_7, %c0_8, %c0_9, %c0_10], %12 {strides = array<i32>} : memref<1x8x16x128xbf16, #tpu.memory_space<vmem>>, vector<1x8x16x128xbf16>,
    return
  }
  func.func @transform_0(%arg0: i32, %arg1: i32) -> (i32, i32, i32, i32) {
    %c0_i32 = arith.constant 0 : i32
    %c0_i32_0 = arith.constant 0 : i32
    %c0_i32_1 = arith.constant 0 : i32
    return %arg0, %arg1, %c0_i32, %c0_i32_0 : i32, i32, i32, i32
  }
  func.func @transform_1(%arg0: i32, %arg1: i32) -> (i32, i32) {
    %c0_i32 = arith.constant 0 : i32
    %c0_i32_0 = arith.constant 0 : i32
    %c0_i32_1 = arith.constant 0 : i32
    return %c0_i32, %c0_i32_0 : i32, i32
  }
  func.func @transform_2(%arg0: i32, %arg1: i32) -> (i32, i32) {
    %c0_i32 = arith.constant 0 : i32
    %c0_i32_0 = arith.constant 0 : i32
    %c0_i32_1 = arith.constant 0 : i32
    return %c0_i32, %c0_i32_0 : i32, i32
  }
  func.func @transform_3(%arg0: i32, %arg1: i32) -> (i32, i32, i32, i32) {
    %c0_i32 = arith.constant 0 : i32
    %c0_i32_0 = arith.constant 0 : i32
    %c0_i32_1 = arith.constant 0 : i32
    return %arg0, %arg1, %c0_i32, %c0_i32_0 : i32, i32, i32, i32
  }
}

</mosaic_0001>

<llo_original>
// kernel: forward.5
$region0: #{forward.5}
  #allocation0 [shape = 'u32[]', space=smem, size = 0x4, offset = 0x4, fixed_abs, tag = 'smem constant byte address 0x4 - core index']
  #allocation1 [shape = 'u32[144,128]{1,0:T(1,128)}', space=vmem, size = 0x12000, scoped, tag = 'internal scratch']
  %s0 = inlined_call_operand.vmem [shape: bf16[2,16,16,128], index: 0, kind: input, shape index: {}]
  %s1 = inlined_call_operand.vmem [shape: f32[1,128], index: 1, kind: input, shape index: {}]
  %s2 = inlined_call_operand.vmem [shape: f32[1,128], index: 2, kind: input, shape index: {}]
  %s3 = inlined_call_operand.vmem [shape: bf16[2,16,16,128], index: 3, kind: output, shape index: {}]
  %s4 = sld [smem:[#allocation0]]
  $region45: #{forward.5} parent=0
    _
  %s6 = ssub.s32 1, %s4
  %s7 = scalar_select 0, %s6, %s4
  loop: start=0, step=1, limit=6
  $region2: #{forward.5} parent=0 // loop_pre_header
    _
  $region3: #{forward.5} parent=0 // loop_header
    %s9 = sphi 0, %s13
    %p10 = scmp.ge.s32.totalorder %s9, 6
    %s16 = sphi 0, %s28
    %s17 = sphi 0, %s24
    %s18 = sphi 0, %s16
    %s19 = sphi 0, %s17
    %s20 = sphi 0, %s18
    %s21 = sphi 0, %s19
    %s33 = sphi 0, %s35
    %s36 = sphi 0, %s33
    %s37 = sphi 0, %s36
    %s53 = sphi 0, %s37
    %s57 = sphi 0, %s57
    %s59 = sphi 0, %s57
    %s60 = sphi 0, %s59
    %s74 = sphi 0, %s60
    %s78 = sphi 0, %s78
    %s80 = sphi 0, %s78
    %s81 = sphi 0, %s80
    %s95 = sphi 0, %s81
    %s103 = sphi 0, %s105
    %s106 = sphi 0, %s103
    %s107 = sphi 0, %s106
    %s123 = sphi 0, %s107
  $region4: #{forward.5} parent=0 // loop_header_branch
    %12 = sbr.rel (%p10) target = $region8
  $region5: #{forward.5} parent=0 // loop_body
    %s14 = ssub.s32 %s9, 1
    %s15 = ssub.s32 %s9, 2
    %s22 = sadd.s32 1, %s17
    %p23 = scmp.ge.s32.totalorder %s22, 2
    %s24 = scalar_select %p23, 0, %s22
    %s25 = sadd.s32 1, %s16
    %s26 = scalar_select %p23, %s25, %s16
    %p27 = scmp.ge.s32.totalorder %s26, 2
    %s28 = scalar_select %p27, 0, %s26
    %s29 = ssub.s32 %s16, %s28
    %s30 = ssub.s32 %s17, %s24
    %s31 = sor.u32 %s29, %s30
    %p32 = scmp.eq.s32.totalorder %s31, 0
    %s34 = sadd.s32 %s33, 1
    %s35 = scalar_select %p32, %s33, %s34
    %p38 = pneg %p32
    %p39 = scmp.eq.s32.totalorder %s9, 3
    %p40 = por %p38, %p39
    %p41 = scmp.ne.s32.totalorder %s33, %s36
    %p42 = scmp.eq.s32.totalorder %s9, 0
    %p43 = por %p41, %p42
    %p44 = scmp.ne.s32.totalorder %s33, %s36
    %p45 = scmp.eq.s32.totalorder %s14, 3
    %p46 = por %p44, %p45
    %p47 = scmp.ne.s32.totalorder %s36, %s37
    %p48 = scmp.eq.s32.totalorder %s14, 0
    %p49 = por %p47, %p48
    %p50 = scmp.ne.s32.totalorder %s36, %s37
    %p51 = scmp.eq.s32.totalorder %s15, 3
    %p52 = por %p50, %p51
    %p54 = scmp.ne.s32.totalorder %s37, %s53
    %p55 = scmp.eq.s32.totalorder %s15, 0
    %p56 = por %p54, %p55
    %s58 = sadd.s32 %s57, 1
    %p61 = scmp.eq.s32.totalorder %s9, 3
    %p62 = scmp.ne.s32.totalorder %s57, %s59
    %p63 = scmp.eq.s32.totalorder %s9, 0
    %p64 = por %p62, %p63
    %p65 = scmp.ne.s32.totalorder %s57, %s59
    %p66 = scmp.eq.s32.totalorder %s14, 3
    %p67 = por %p65, %p66
    %p68 = scmp.ne.s32.totalorder %s59, %s60
    %p69 = scmp.eq.s32.totalorder %s14, 0
    %p70 = por %p68, %p69
    %p71 = scmp.ne.s32.totalorder %s59, %s60
    %p72 = scmp.eq.s32.totalorder %s15, 3
    %p73 = por %p71, %p72
    %p75 = scmp.ne.s32.totalorder %s60, %s74
    %p76 = scmp.eq.s32.totalorder %s15, 0
    %p77 = por %p75, %p76
    %s79 = sadd.s32 %s78, 1
    %p82 = scmp.eq.s32.totalorder %s9, 3
    %p83 = scmp.ne.s32.totalorder %s78, %s80
    %p84 = scmp.eq.s32.totalorder %s9, 0
    %p85 = por %p83, %p84
    %p86 = scmp.ne.s32.totalorder %s78, %s80
    %p87 = scmp.eq.s32.totalorder %s14, 3
    %p88 = por %p86, %p87
    %p89 = scmp.ne.s32.totalorder %s80, %s81
    %p90 = scmp.eq.s32.totalorder %s14, 0
    %p91 = por %p89, %p90
    %p92 = scmp.ne.s32.totalorder %s80, %s81
    %p93 = scmp.eq.s32.totalorder %s15, 3
    %p94 = por %p92, %p93
    %p96 = scmp.ne.s32.totalorder %s81, %s95
    %p97 = scmp.eq.s32.totalorder %s15, 0
    %p98 = por %p96, %p97
    %s99 = ssub.s32 %s16, %s28
    %s100 = ssub.s32 %s17, %s24
    %s101 = sor.u32 %s99, %s100
    %p102 = scmp.eq.s32.totalorder %s101, 0
    %s104 = sadd.s32 %s103, 1
    %s105 = scalar_select %p102, %s103, %s104
    %p108 = pneg %p102
    %p109 = scmp.eq.s32.totalorder %s9, 3
    %p110 = por %p108, %p109
    %p111 = scmp.ne.s32.totalorder %s103, %s106
    %p112 = scmp.eq.s32.totalorder %s9, 0
    %p113 = por %p111, %p112
    %p114 = scmp.ne.s32.totalorder %s103, %s106
    %p115 = scmp.eq.s32.totalorder %s14, 3
    %p116 = por %p114, %p115
    %p117 = scmp.ne.s32.totalorder %s106, %s107
    %p118 = scmp.eq.s32.totalorder %s14, 0
    %p119 = por %p117, %p118
    %p120 = scmp.ne.s32.totalorder %s106, %s107
    %p121 = scmp.eq.s32.totalorder %s15, 3
    %p122 = por %p120, %p121
    %p124 = scmp.ne.s32.totalorder %s107, %s123
    %p125 = scmp.eq.s32.totalorder %s15, 0
    %p126 = por %p124, %p125
    %p127 = scmp.le.s32.totalorder 1, %s9
    %p128 = scmp.lt.s32.totalorder %s9, 5
    %p129 = pnand %p127, %p128
    %p130 = pneg %p129
    // Predicated region
    $region9: #{forward.5} parent=5 // pred_check
      _
    $region10: #{forward.5} parent=5 // pred_check_branch
      %132 = sbr.rel (%p129) target = $region12
    $region11: #{forward.5} parent=5 // pred_region
      %s133 = ssub.s32 %s9, 1
      // Predicated region
      $region13: #{forward.5} parent=11 // pred_check
        %p134 = pneg %p70
      $region14: #{forward.5} parent=11 // pred_check_branch
        %136 = sbr.rel (%p134) target = $region16
      $region15: #{forward.5} parent=11 // pred_region
        _
      $region16: #{forward.5} parent=11 // pred_fallthru
        _
      // Predicated region
      $region17: #{forward.5} parent=11 // pred_check
        %p137 = pneg %p91
      $region18: #{forward.5} parent=11 // pred_check_branch
        %139 = sbr.rel (%p137) target = $region20
      $region19: #{forward.5} parent=11 // pred_region
        _
      $region20: #{forward.5} parent=11 // pred_fallthru
        _
    $region12: #{forward.5} parent=5 // pred_fallthru
      _
    %p140 = scmp.lt.s32.totalorder %s9, 4
    // Predicated region
    $region21: #{forward.5} parent=5 // pred_check
      %p141 = pneg %p140
    $region22: #{forward.5} parent=5 // pred_check_branch
      %143 = sbr.rel (%p141) target = $region24
    $region23: #{forward.5} parent=5 // pred_region
      // Predicated region
      $region25: #{forward.5} parent=23 // pred_check
        %p144 = pneg %p43
      $region26: #{forward.5} parent=23 // pred_check_branch
        %146 = sbr.rel (%p144) target = $region28
      $region27: #{forward.5} parent=23 // pred_region
        %s147 = smul.u32 8, %s17
        %p148 = scmp.lt.s32.totalorder %s16, 1
        %s149 = scalar_select %p148, %s16, 1
        %p150 = scmp.lt.s32.totalorder %s147, 15
        %s151 = scalar_select %p150, %s147, 15
        %s152 = smul.addr %s151, 2
        %s153 = smul.addr %s149, 32
        %s154 = sadd.s32 %s152, %s153
        %s155 = smul.addr %s154, 4
        %s156 = scalar_lea.vmem %s0, %s155
        %s157 = smul.u32 8, %s17
      $region28: #{forward.5} parent=23 // pred_fallthru
        _
    $region24: #{forward.5} parent=5 // pred_fallthru
      _
    %p158 = scmp.le.s32.totalorder 1, %s9
    %p159 = scmp.lt.s32.totalorder %s9, 5
    %p160 = pnand %p158, %p159
    %p161 = pneg %p160
    // Predicated region
    $region29: #{forward.5} parent=5 // pred_check
      _
    $region30: #{forward.5} parent=5 // pred_check_branch
      %163 = sbr.rel (%p160) target = $region32
    $region31: #{forward.5} parent=5 // pred_region
      %s164 = ssub.s32 %s9, 1
      %s165 = smul.u32 8, %s19
      %p166 = scmp.lt.s32.totalorder %s18, 1
      %s167 = scalar_select %p166, %s18, 1
      %p168 = scmp.lt.s32.totalorder %s165, 15
      %s169 = scalar_select %p168, %s165, 15
      %s170 = smul.addr %s169, 2
      %s171 = smul.addr %s167, 32
      %s172 = sadd.s32 %s170, %s171
      %s173 = smul.addr %s172, 4
      %s174 = scalar_lea.vmem %s0, %s173
      %p175 = pneg %p49
      %p176 = pneg %p46
      %p177 = pneg %p70
      %p178 = pneg %p67
      %p179 = pneg %p91
      %p180 = pneg %p88
      %p181 = pneg %p119
      %p182 = pneg %p116
      %s183 = smul.u32 8, %s19
      %p184 = scmp.lt.s32.totalorder %s18, 1
      %s185 = scalar_select %p184, %s18, 1
      %p186 = scmp.lt.s32.totalorder %s183, 15
      %s187 = scalar_select %p186, %s183, 15
      %s188 = smul.addr %s187, 2
      %s189 = smul.addr %s185, 32
      %s190 = sadd.s32 %s188, %s189
      %s191 = smul.addr %s190, 4
      %s192 = scalar_lea.vmem %s3, %s191
      %s193 = smul.u32 8, %s19
      %p194 = scmp.lt.s32.totalorder %s18, 1
      %s195 = scalar_select %p194, %s18, 1
      %p196 = scmp.lt.s32.totalorder %s193, 15
      %s197 = scalar_select %p196, %s193, 15
      %s198 = smul.addr %s197, 2
      %s199 = smul.addr %s195, 32
      %s200 = sadd.s32 %s198, %s199
      %s201 = smul.addr %s200, 4
      %s202 = scalar_lea.vmem %s0, %s201
      %s203 = smul.u32 8, %s19
      %s204 = smul.u32 8, %s19
      %p205 = scmp.lt.s32.totalorder %s18, 1
      %s206 = scalar_select %p205, %s18, 1
      %p207 = scmp.lt.s32.totalorder %s204, 15
      %s208 = scalar_select %p207, %s204, 15
      %s209 = smul.addr %s208, 2
      %s210 = smul.addr %s206, 32
      %s211 = sadd.s32 %s209, %s210
      %s212 = smul.addr %s211, 4
      %s213 = scalar_lea.vmem %s3, %s212
      %s214 = smul.u32 8, %s19
      %v215 = vld [vmem:[%s202] sm:$0xf]
      %v216 = vld [vmem:[%s202 + $0x4] sm:$0xf]
      %v217 = vld [vmem:[%s202 + $0x8] sm:$0xf]
      %v218 = vld [vmem:[%s202 + $0xc] sm:$0xf]
      %v219 = vld [vmem:[%s202 + $0x10] sm:$0xf]
      %v220 = vld [vmem:[%s202 + $0x14] sm:$0xf]
      %v221 = vld [vmem:[%s202 + $0x18] sm:$0xf]
      %v222 = vld [vmem:[%s202 + $0x1c] sm:$0xf]
      %v223 = vld [vmem:[%s202 + $0x20] sm:$0xf]
      %v224 = vld [vmem:[%s202 + $0x24] sm:$0xf]
      %v225 = vld [vmem:[%s202 + $0x28] sm:$0xf]
      %v226 = vld [vmem:[%s202 + $0x2c] sm:$0xf]
      %v227 = vld [vmem:[%s202 + $0x30] sm:$0xf]
      %v228 = vld [vmem:[%s202 + $0x34] sm:$0xf]
      %v229 = vld [vmem:[%s202 + $0x38] sm:$0xf]
      %v230 = vld [vmem:[%s202 + $0x3c] sm:$0xf]
      %v231 = vunpack.c.l.bf16 %v215
      %v232 = vunpack.c.l.bf16 %v216
      %v233 = vunpack.c.l.bf16 %v217
      %v234 = vunpack.c.l.bf16 %v218
      %v235 = vunpack.c.l.bf16 %v219
      %v236 = vunpack.c.l.bf16 %v220
      %v237 = vunpack.c.l.bf16 %v221
      %v238 = vunpack.c.l.bf16 %v222
      %v239 = vunpack.c.l.bf16 %v223
      %v240 = vunpack.c.l.bf16 %v224
      %v241 = vunpack.c.l.bf16 %v225
      %v242 = vunpack.c.l.bf16 %v226
      %v243 = vunpack.c.l.bf16 %v227
      %v244 = vunpack.c.l.bf16 %v228
      %v245 = vunpack.c.l.bf16 %v229
      %v246 = vunpack.c.l.bf16 %v230
      %v247 = vld [vmem:[%s1] sm:$0x1]
      %v248 = vld [vmem:[%s2] sm:$0x1]
      %v250 = vlaneseq
      %v251 = vshrl.u32 %v250, 7
      %v252 = vsub.s32 0, %v251
      %v253 = vrot.slane %v247, %v252
      %v255 = vmul.f32 %v231, %v253
      %v256 = vmul.f32 %v232, %v253
      %v257 = vmul.f32 %v233, %v253
      %v258 = vmul.f32 %v234, %v253
      %v259 = vmul.f32 %v235, %v253
      %v260 = vmul.f32 %v236, %v253
      %v261 = vmul.f32 %v237, %v253
      %v262 = vmul.f32 %v238, %v253
      %v263 = vmul.f32 %v239, %v253
      %v264 = vmul.f32 %v240, %v253
      %v265 = vmul.f32 %v241, %v253
      %v266 = vmul.f32 %v242, %v253
      %v267 = vmul.f32 %v243, %v253
      %v268 = vmul.f32 %v244, %v253
      %v269 = vmul.f32 %v245, %v253
      %v270 = vmul.f32 %v246, %v253
      %v272 = vlaneseq
      %v273 = vshrl.u32 %v272, 7
      %v274 = vsub.s32 0, %v273
      %v275 = vrot.slane %v248, %v274
      %v277 = vadd.f32 %v255, %v275
      %v278 = vadd.f32 %v256, %v275
      %v279 = vadd.f32 %v257, %v275
      %v280 = vadd.f32 %v258, %v275
      %v281 = vadd.f32 %v259, %v275
      %v282 = vadd.f32 %v260, %v275
      %v283 = vadd.f32 %v261, %v275
      %v284 = vadd.f32 %v262, %v275
      %v285 = vadd.f32 %v263, %v275
      %v286 = vadd.f32 %v264, %v275
      %v287 = vadd.f32 %v265, %v275
      %v288 = vadd.f32 %v266, %v275
      %v289 = vadd.f32 %v267, %v275
      %v290 = vadd.f32 %v268, %v275
      %v291 = vadd.f32 %v269, %v275
      %v292 = vadd.f32 %v270, %v275
      %v293 = vmax.f32 %v277, 0.0
      %v294 = vmax.f32 %v278, 0.0
      %v295 = vmax.f32 %v279, 0.0
      %v296 = vmax.f32 %v280, 0.0
      %v297 = vmax.f32 %v281, 0.0
      %v298 = vmax.f32 %v282, 0.0
      %v299 = vmax.f32 %v283, 0.0
      %v300 = vmax.f32 %v284, 0.0
      %v301 = vmax.f32 %v285, 0.0
      %v302 = vmax.f32 %v286, 0.0
      %v303 = vmax.f32 %v287, 0.0
      %v304 = vmax.f32 %v288, 0.0
      %v305 = vmax.f32 %v289, 0.0
      %v306 = vmax.f32 %v290, 0.0
      %v307 = vmax.f32 %v291, 0.0
      %v308 = vmax.f32 %v292, 0.0
      %v309 = vpack.c.bf16 %v294, %v293
      %v310 = vpack.c.bf16 %v296, %v295
      %v311 = vpack.c.bf16 %v298, %v297
      %v312 = vpack.c.bf16 %v300, %v299
      %v313 = vpack.c.bf16 %v302, %v301
      %v314 = vpack.c.bf16 %v304, %v303
      %v315 = vpack.c.bf16 %v306, %v305
      %v316 = vpack.c.bf16 %v308, %v307
      %v325 = vunpack.c.l.b16 %v309
      %v326 = vunpack.c.h.b16 %v309
      %v327 = vunpack.c.l.b16 %v310
      %v328 = vunpack.c.h.b16 %v310
      %v329 = vunpack.c.l.b16 %v311
      %v330 = vunpack.c.h.b16 %v311
      %v331 = vunpack.c.l.b16 %v312
      %v332 = vunpack.c.h.b16 %v312
      %v333 = vunpack.c.l.b16 %v313
      %v334 = vunpack.c.h.b16 %v313
      %v335 = vunpack.c.l.b16 %v314
      %v336 = vunpack.c.h.b16 %v314
      %v337 = vunpack.c.l.b16 %v315
      %v338 = vunpack.c.h.b16 %v315
      %v339 = vunpack.c.l.b16 %v316
      %v340 = vunpack.c.h.b16 %v316
      %v341 = vpack.c.b16 %v325, %v325
      %v342 = vpack.c.b16 %v326, %v326
      %v343 = vpack.c.b16 %v327, %v327
      %v344 = vpack.c.b16 %v328, %v328
      %v345 = vpack.c.b16 %v329, %v329
      %v346 = vpack.c.b16 %v330, %v330
      %v347 = vpack.c.b16 %v331, %v331
      %v348 = vpack.c.b16 %v332, %v332
      %v349 = vpack.c.b16 %v333, %v333
      %v350 = vpack.c.b16 %v334, %v334
      %v351 = vpack.c.b16 %v335, %v335
      %v352 = vpack.c.b16 %v336, %v336
      %v353 = vpack.c.b16 %v337, %v337
      %v354 = vpack.c.b16 %v338, %v338
      %v355 = vpack.c.b16 %v339, %v339
      %v356 = vpack.c.b16 %v340, %v340
      %373 = vst [vmem:[%s213] sm:$0xf] %v341
      %374 = vst [vmem:[%s213 + $0x4] sm:$0xf] %v342
      %375 = vst [vmem:[%s213 + $0x8] sm:$0xf] %v343
      %376 = vst [vmem:[%s213 + $0xc] sm:$0xf] %v344
      %377 = vst [vmem:[%s213 + $0x10] sm:$0xf] %v345
      %378 = vst [vmem:[%s213 + $0x14] sm:$0xf] %v346
      %379 = vst [vmem:[%s213 + $0x18] sm:$0xf] %v347
      %380 = vst [vmem:[%s213 + $0x1c] sm:$0xf] %v348
      %381 = vst [vmem:[%s213 + $0x20] sm:$0xf] %v349
      %382 = vst [vmem:[%s213 + $0x24] sm:$0xf] %v350
      %383 = vst [vmem:[%s213 + $0x28] sm:$0xf] %v351
      %384 = vst [vmem:[%s213 + $0x2c] sm:$0xf] %v352
      %385 = vst [vmem:[%s213 + $0x30] sm:$0xf] %v353
      %386 = vst [vmem:[%s213 + $0x34] sm:$0xf] %v354
      %387 = vst [vmem:[%s213 + $0x38] sm:$0xf] %v355
      %388 = vst [vmem:[%s213 + $0x3c] sm:$0xf] %v356
      %s389 = smul.u32 8, %s19
      %p390 = scmp.lt.s32.totalorder %s18, 1
      %s391 = scalar_select %p390, %s18, 1
      %p392 = scmp.lt.s32.totalorder %s389, 15
      %s393 = scalar_select %p392, %s389, 15
      %s394 = smul.addr %s393, 2
      %s395 = smul.addr %s391, 32
      %s396 = sadd.s32 %s394, %s395
      %s397 = smul.addr %s396, 4
      %s398 = scalar_lea.vmem %s3, %s397
      // Predicated region
      $region33: #{forward.5} parent=31 // pred_check
        %p399 = pneg %p116
      $region34: #{forward.5} parent=31 // pred_check_branch
        %401 = sbr.rel (%p399) target = $region36
      $region35: #{forward.5} parent=31 // pred_region
        %s402 = smul.u32 8, %s19
      $region36: #{forward.5} parent=31 // pred_fallthru
        _
    $region32: #{forward.5} parent=5 // pred_fallthru
      _
    %p403 = scmp.le.s32.totalorder 2, %s9
    // Predicated region
    $region37: #{forward.5} parent=5 // pred_check
      %p404 = pneg %p403
    $region38: #{forward.5} parent=5 // pred_check_branch
      %406 = sbr.rel (%p404) target = $region40
    $region39: #{forward.5} parent=5 // pred_region
      %s407 = ssub.s32 %s9, 2
      // Predicated region
      $region41: #{forward.5} parent=39 // pred_check
        %p408 = pneg %p122
      $region42: #{forward.5} parent=39 // pred_check_branch
        %410 = sbr.rel (%p408) target = $region44
      $region43: #{forward.5} parent=39 // pred_region
        %s411 = smul.u32 8, %s21
        %p412 = scmp.lt.s32.totalorder %s20, 1
        %s413 = scalar_select %p412, %s20, 1
        %p414 = scmp.lt.s32.totalorder %s411, 15
        %s415 = scalar_select %p414, %s411, 15
        %s416 = smul.addr %s415, 2
        %s417 = smul.addr %s413, 32
        %s418 = sadd.s32 %s416, %s417
        %s419 = smul.addr %s418, 4
        %s420 = scalar_lea.vmem %s3, %s419
      $region44: #{forward.5} parent=39 // pred_fallthru
        _
    $region40: #{forward.5} parent=5 // pred_fallthru
      _
  $region6: #{forward.5} parent=0 // loop_footer
    %s13 = sadd.s32 1, %s9
  $region7: #{forward.5} parent=0 // loop_footer_branch
    %8 = sbr.rel target = $region3
  $region8: #{forward.5} parent=0 // loop_exit
    _

// kernel: forward.3
$region0: #{forward.3}
  #allocation0 [shape = 'u32[]', space=smem, size = 0x4, offset = 0x4, fixed_abs, tag = 'smem constant byte address 0x4 - core index']
  #allocation1 [shape = 'u32[144,128]{1,0:T(1,128)}', space=vmem, size = 0x12000, scoped, tag = 'internal scratch']
  %s0 = inlined_call_operand.vmem [shape: bf16[2,16,16,4], index: 0, kind: input, shape index: {}, may-alias: {0,1,2}]
  %s1 = inlined_call_operand.vmem [shape: bf16[2,16,16,4], index: 1, kind: input, shape index: {}, may-alias: {0,1,2}]
  %s2 = inlined_call_operand.vmem [shape: bf16[2,16,16,4], index: 2, kind: input, shape index: {}, may-alias: {0,1,2}]
  %s3 = inlined_call_operand.vmem [shape: f32[1,4], index: 3, kind: input, shape index: {}]
  %s4 = inlined_call_operand.vmem [shape: f32[1,4], index: 4, kind: input, shape index: {}]
  %s5 = inlined_call_operand.vmem [shape: bf16[9,4,128], index: 5, kind: input, shape index: {}]
  %s6 = inlined_call_operand.vmem [shape: bf16[2,16,16,128], index: 6, kind: output, shape index: {0}]
  %s7 = inlined_call_operand.vmem [shape: f32[4,1,128], index: 7, kind: output, shape index: {1}]
  %s8 = inlined_call_operand.vmem [shape: f32[4,1,128], index: 8, kind: output, shape index: {2}]
  %9 = xla_tuple %s6, %s7, %s8
  %s10 = sld [smem:[#allocation0]]
  $region73: #{forward.3} parent=0
    _
  %s12 = ssub.s32 1, %s10
  %s13 = scalar_select 0, %s12, %s10
  loop: start=0, step=1, limit=6
  $region2: #{forward.3} parent=0 // loop_pre_header
    _
  $region3: #{forward.3} parent=0 // loop_header
    %s15 = sphi 0, %s19
    %p16 = scmp.ge.s32.totalorder %s15, 6
    %s22 = sphi 0, %s34
    %s23 = sphi 0, %s30
    %s24 = sphi 0, %s22
    %s25 = sphi 0, %s23
    %s26 = sphi 0, %s24
    %s27 = sphi 0, %s25
    %s47 = sphi 0, %s49
    %s50 = sphi 0, %s47
    %s51 = sphi 0, %s50
    %s67 = sphi 0, %s51
    %s75 = sphi 0, %s77
    %s78 = sphi 0, %s75
    %s79 = sphi 0, %s78
    %s95 = sphi 0, %s79
    %s111 = sphi 0, %s113
    %s114 = sphi 0, %s111
    %s115 = sphi 0, %s114
    %s131 = sphi 0, %s115
    %s135 = sphi 0, %s135
    %s137 = sphi 0, %s135
    %s138 = sphi 0, %s137
    %s152 = sphi 0, %s138
    %s156 = sphi 0, %s156
    %s158 = sphi 0, %s156
    %s159 = sphi 0, %s158
    %s173 = sphi 0, %s159
    %s177 = sphi 0, %s177
    %s179 = sphi 0, %s177
    %s180 = sphi 0, %s179
    %s194 = sphi 0, %s180
    %s202 = sphi 0, %s204
    %s205 = sphi 0, %s202
    %s206 = sphi 0, %s205
    %s222 = sphi 0, %s206
    %s232 = sphi 0, %s234
    %s235 = sphi 0, %s232
    %s236 = sphi 0, %s235
    %s252 = sphi 0, %s236
    %s262 = sphi 0, %s264
    %s265 = sphi 0, %s262
    %s266 = sphi 0, %s265
    %s282 = sphi 0, %s266
  $region4: #{forward.3} parent=0 // loop_header_branch
    %18 = sbr.rel (%p16) target = $region8
  $region5: #{forward.3} parent=0 // loop_body
    %s20 = ssub.s32 %s15, 1
    %s21 = ssub.s32 %s15, 2
    %s28 = sadd.s32 1, %s23
    %p29 = scmp.ge.s32.totalorder %s28, 2
    %s30 = scalar_select %p29, 0, %s28
    %s31 = sadd.s32 1, %s22
    %s32 = scalar_select %p29, %s31, %s22
    %p33 = scmp.ge.s32.totalorder %s32, 2
    %s34 = scalar_select %p33, 0, %s32
    %s35 = smul.u32 %s23, 8
    %s36 = ssub.s32 %s35, 1
    %p37 = scmp.gt.s32.totalorder %s36, 0
    %s38 = scalar_select %p37, %s36, 0
    %s39 = smul.u32 %s30, 8
    %s40 = ssub.s32 %s39, 1
    %p41 = scmp.gt.s32.totalorder %s40, 0
    %s42 = scalar_select %p41, %s40, 0
    %s43 = ssub.s32 %s22, %s34
    %s44 = ssub.s32 %s38, %s42
    %s45 = sor.u32 %s43, %s44
    %p46 = scmp.eq.s32.totalorder %s45, 0
    %s48 = sadd.s32 %s47, 1
    %s49 = scalar_select %p46, %s47, %s48
    %p52 = pneg %p46
    %p53 = scmp.eq.s32.totalorder %s15, 3
    %p54 = por %p52, %p53
    %p55 = scmp.ne.s32.totalorder %s47, %s50
    %p56 = scmp.eq.s32.totalorder %s15, 0
    %p57 = por %p55, %p56
    %p58 = scmp.ne.s32.totalorder %s47, %s50
    %p59 = scmp.eq.s32.totalorder %s20, 3
    %p60 = por %p58, %p59
    %p61 = scmp.ne.s32.totalorder %s50, %s51
    %p62 = scmp.eq.s32.totalorder %s20, 0
    %p63 = por %p61, %p62
    %p64 = scmp.ne.s32.totalorder %s50, %s51
    %p65 = scmp.eq.s32.totalorder %s21, 3
    %p66 = por %p64, %p65
    %p68 = scmp.ne.s32.totalorder %s51, %s67
    %p69 = scmp.eq.s32.totalorder %s21, 0
    %p70 = por %p68, %p69
    %s71 = ssub.s32 %s22, %s34
    %s72 = ssub.s32 %s23, %s30
    %s73 = sor.u32 %s71, %s72
    %p74 = scmp.eq.s32.totalorder %s73, 0
    %s76 = sadd.s32 %s75, 1
    %s77 = scalar_select %p74, %s75, %s76
    %p80 = pneg %p74
    %p81 = scmp.eq.s32.totalorder %s15, 3
    %p82 = por %p80, %p81
    %p83 = scmp.ne.s32.totalorder %s75, %s78
    %p84 = scmp.eq.s32.totalorder %s15, 0
    %p85 = por %p83, %p84
    %p86 = scmp.ne.s32.totalorder %s75, %s78
    %p87 = scmp.eq.s32.totalorder %s20, 3
    %p88 = por %p86, %p87
    %p89 = scmp.ne.s32.totalorder %s78, %s79
    %p90 = scmp.eq.s32.totalorder %s20, 0
    %p91 = por %p89, %p90
    %p92 = scmp.ne.s32.totalorder %s78, %s79
    %p93 = scmp.eq.s32.totalorder %s21, 3
    %p94 = por %p92, %p93
    %p96 = scmp.ne.s32.totalorder %s79, %s95
    %p97 = scmp.eq.s32.totalorder %s21, 0
    %p98 = por %p96, %p97
    %s99 = smul.u32 %s23, 8
    %s100 = sadd.s32 %s99, 8
    %p101 = scmp.lt.s32.totalorder %s100, 15
    %s102 = scalar_select %p101, %s100, 15
    %s103 = smul.u32 %s30, 8
    %s104 = sadd.s32 %s103, 8
    %p105 = scmp.lt.s32.totalorder %s104, 15
    %s106 = scalar_select %p105, %s104, 15
    %s107 = ssub.s32 %s22, %s34
    %s108 = ssub.s32 %s102, %s106
    %s109 = sor.u32 %s107, %s108
    %p110 = scmp.eq.s32.totalorder %s109, 0
    %s112 = sadd.s32 %s111, 1
    %s113 = scalar_select %p110, %s111, %s112
    %p116 = pneg %p110
    %p117 = scmp.eq.s32.totalorder %s15, 3
    %p118 = por %p116, %p117
    %p119 = scmp.ne.s32.totalorder %s111, %s114
    %p120 = scmp.eq.s32.totalorder %s15, 0
    %p121 = por %p119, %p120
    %p122 = scmp.ne.s32.totalorder %s111, %s114
    %p123 = scmp.eq.s32.totalorder %s20, 3
    %p124 = por %p122, %p123
    %p125 = scmp.ne.s32.totalorder %s114, %s115
    %p126 = scmp.eq.s32.totalorder %s20, 0
    %p127 = por %p125, %p126
    %p128 = scmp.ne.s32.totalorder %s114, %s115
    %p129 = scmp.eq.s32.totalorder %s21, 3
    %p130 = por %p128, %p129
    %p132 = scmp.ne.s32.totalorder %s115, %s131
    %p133 = scmp.eq.s32.totalorder %s21, 0
    %p134 = por %p132, %p133
    %s136 = sadd.s32 %s135, 1
    %p139 = scmp.eq.s32.totalorder %s15, 3
    %p140 = scmp.ne.s32.totalorder %s135, %s137
    %p141 = scmp.eq.s32.totalorder %s15, 0
    %p142 = por %p140, %p141
    %p143 = scmp.ne.s32.totalorder %s135, %s137
    %p144 = scmp.eq.s32.totalorder %s20, 3
    %p145 = por %p143, %p144
    %p146 = scmp.ne.s32.totalorder %s137, %s138
    %p147 = scmp.eq.s32.totalorder %s20, 0
    %p148 = por %p146, %p147
    %p149 = scmp.ne.s32.totalorder %s137, %s138
    %p150 = scmp.eq.s32.totalorder %s21, 3
    %p151 = por %p149, %p150
    %p153 = scmp.ne.s32.totalorder %s138, %s152
    %p154 = scmp.eq.s32.totalorder %s21, 0
    %p155 = por %p153, %p154
    %s157 = sadd.s32 %s156, 1
    %p160 = scmp.eq.s32.totalorder %s15, 3
    %p161 = scmp.ne.s32.totalorder %s156, %s158
    %p162 = scmp.eq.s32.totalorder %s15, 0
    %p163 = por %p161, %p162
    %p164 = scmp.ne.s32.totalorder %s156, %s158
    %p165 = scmp.eq.s32.totalorder %s20, 3
    %p166 = por %p164, %p165
    %p167 = scmp.ne.s32.totalorder %s158, %s159
    %p168 = scmp.eq.s32.totalorder %s20, 0
    %p169 = por %p167, %p168
    %p170 = scmp.ne.s32.totalorder %s158, %s159
    %p171 = scmp.eq.s32.totalorder %s21, 3
    %p172 = por %p170, %p171
    %p174 = scmp.ne.s32.totalorder %s159, %s173
    %p175 = scmp.eq.s32.totalorder %s21, 0
    %p176 = por %p174, %p175
    %s178 = sadd.s32 %s177, 1
    %p181 = scmp.eq.s32.totalorder %s15, 3
    %p182 = scmp.ne.s32.totalorder %s177, %s179
    %p183 = scmp.eq.s32.totalorder %s15, 0
    %p184 = por %p182, %p183
    %p185 = scmp.ne.s32.totalorder %s177, %s179
    %p186 = scmp.eq.s32.totalorder %s20, 3
    %p187 = por %p185, %p186
    %p188 = scmp.ne.s32.totalorder %s179, %s180
    %p189 = scmp.eq.s32.totalorder %s20, 0
    %p190 = por %p188, %p189
    %p191 = scmp.ne.s32.totalorder %s179, %s180
    %p192 = scmp.eq.s32.totalorder %s21, 3
    %p193 = por %p191, %p192
    %p195 = scmp.ne.s32.totalorder %s180, %s194
    %p196 = scmp.eq.s32.totalorder %s21, 0
    %p197 = por %p195, %p196
    %s198 = ssub.s32 %s22, %s34
    %s199 = ssub.s32 %s23, %s30
    %s200 = sor.u32 %s198, %s199
    %p201 = scmp.eq.s32.totalorder %s200, 0
    %s203 = sadd.s32 %s202, 1
    %s204 = scalar_select %p201, %s202, %s203
    %p207 = pneg %p201
    %p208 = scmp.eq.s32.totalorder %s15, 3
    %p209 = por %p207, %p208
    %p210 = scmp.ne.s32.totalorder %s202, %s205
    %p211 = scmp.eq.s32.totalorder %s15, 0
    %p212 = por %p210, %p211
    %p213 = scmp.ne.s32.totalorder %s202, %s205
    %p214 = scmp.eq.s32.totalorder %s20, 3
    %p215 = por %p213, %p214
    %p216 = scmp.ne.s32.totalorder %s205, %s206
    %p217 = scmp.eq.s32.totalorder %s20, 0
    %p218 = por %p216, %p217
    %p219 = scmp.ne.s32.totalorder %s205, %s206
    %p220 = scmp.eq.s32.totalorder %s21, 3
    %p221 = por %p219, %p220
    %p223 = scmp.ne.s32.totalorder %s206, %s222
    %p224 = scmp.eq.s32.totalorder %s21, 0
    %p225 = por %p223, %p224
    %s226 = smul.u32 %s22, 2
    %s227 = sadd.s32 %s226, %s23
    %s228 = smul.u32 %s34, 2
    %s229 = sadd.s32 %s228, %s30
    %s230 = ssub.s32 %s227, %s229
    %p231 = scmp.eq.s32.totalorder %s230, 0
    %s233 = sadd.s32 %s232, 1
    %s234 = scalar_select %p231, %s232, %s233
    %p237 = pneg %p231
    %p238 = scmp.eq.s32.totalorder %s15, 3
    %p239 = por %p237, %p238
    %p240 = scmp.ne.s32.totalorder %s232, %s235
    %p241 = scmp.eq.s32.totalorder %s15, 0
    %p242 = por %p240, %p241
    %p243 = scmp.ne.s32.totalorder %s232, %s235
    %p244 = scmp.eq.s32.totalorder %s20, 3
    %p245 = por %p243, %p244
    %p246 = scmp.ne.s32.totalorder %s235, %s236
    %p247 = scmp.eq.s32.totalorder %s20, 0
    %p248 = por %p246, %p247
    %p249 = scmp.ne.s32.totalorder %s235, %s236
    %p250 = scmp.eq.s32.totalorder %s21, 3
    %p251 = por %p249, %p250
    %p253 = scmp.ne.s32.totalorder %s236, %s252
    %p254 = scmp.eq.s32.totalorder %s21, 0
    %p255 = por %p253, %p254
    %s256 = smul.u32 %s22, 2
    %s257 = sadd.s32 %s256, %s23
    %s258 = smul.u32 %s34, 2
    %s259 = sadd.s32 %s258, %s30
    %s260 = ssub.s32 %s257, %s259
    %p261 = scmp.eq.s32.totalorder %s260, 0
    %s263 = sadd.s32 %s262, 1
    %s264 = scalar_select %p261, %s262, %s263
    %p267 = pneg %p261
    %p268 = scmp.eq.s32.totalorder %s15, 3
    %p269 = por %p267, %p268
    %p270 = scmp.ne.s32.totalorder %s262, %s265
    %p271 = scmp.eq.s32.totalorder %s15, 0
    %p272 = por %p270, %p271
    %p273 = scmp.ne.s32.totalorder %s262, %s265
    %p274 = scmp.eq.s32.totalorder %s20, 3
    %p275 = por %p273, %p274
    %p276 = scmp.ne.s32.totalorder %s265, %s266
    %p277 = scmp.eq.s32.totalorder %s20, 0
    %p278 = por %p276, %p277
    %p279 = scmp.ne.s32.totalorder %s265, %s266
    %p280 = scmp.eq.s32.totalorder %s21, 3
    %p281 = por %p279, %p280
    %p283 = scmp.ne.s32.totalorder %s266, %s282
    %p284 = scmp.eq.s32.totalorder %s21, 0
    %p285 = por %p283, %p284
    %p286 = scmp.le.s32.totalorder 1, %s15
    %p287 = scmp.lt.s32.totalorder %s15, 5
    %p288 = pnand %p286, %p287
    %p289 = pneg %p288
    // Predicated region
    $region9: #{forward.3} parent=5 // pred_check
      _
    $region10: #{forward.3} parent=5 // pred_check_branch
      %291 = sbr.rel (%p288) target = $region12
    $region11: #{forward.3} parent=5 // pred_region
      %s292 = ssub.s32 %s15, 1
      // Predicated region
      $region13: #{forward.3} parent=11 // pred_check
        %p293 = pneg %p148
      $region14: #{forward.3} parent=11 // pred_check_branch
        %295 = sbr.rel (%p293) target = $region16
      $region15: #{forward.3} parent=11 // pred_region
        _
      $region16: #{forward.3} parent=11 // pred_fallthru
        _
      // Predicated region
      $region17: #{forward.3} parent=11 // pred_check
        %p296 = pneg %p169
      $region18: #{forward.3} parent=11 // pred_check_branch
        %298 = sbr.rel (%p296) target = $region20
      $region19: #{forward.3} parent=11 // pred_region
        _
      $region20: #{forward.3} parent=11 // pred_fallthru
        _
      // Predicated region
      $region21: #{forward.3} parent=11 // pred_check
        %p299 = pneg %p190
      $region22: #{forward.3} parent=11 // pred_check_branch
        %301 = sbr.rel (%p299) target = $region24
      $region23: #{forward.3} parent=11 // pred_region
        _
      $region24: #{forward.3} parent=11 // pred_fallthru
        _
    $region12: #{forward.3} parent=5 // pred_fallthru
      _
    %p302 = scmp.lt.s32.totalorder %s15, 4
    // Predicated region
    $region25: #{forward.3} parent=5 // pred_check
      %p303 = pneg %p302
    $region26: #{forward.3} parent=5 // pred_check_branch
      %305 = sbr.rel (%p303) target = $region28
    $region27: #{forward.3} parent=5 // pred_region
      // Predicated region
      $region29: #{forward.3} parent=27 // pred_check
        %p306 = pneg %p57
      $region30: #{forward.3} parent=27 // pred_check_branch
        %308 = sbr.rel (%p306) target = $region32
      $region31: #{forward.3} parent=27 // pred_region
        %s309 = smul.u32 %s23, 8
        %s310 = ssub.s32 %s309, 1
        %p311 = scmp.gt.s32.totalorder %s310, 0
        %s312 = scalar_select %p311, %s310, 0
        %p313 = scmp.lt.s32.totalorder %s22, 1
        %s314 = scalar_select %p313, %s22, 1
        %p315 = scmp.lt.s32.totalorder %s312, 15
        %s316 = scalar_select %p315, %s312, 15
        %s317 = smul.addr %s316, 2
        %s318 = smul.addr %s314, 32
        %s319 = sadd.s32 %s317, %s318
        %s320 = smul.addr %s319, 4
        %s321 = scalar_lea.vmem %s0, %s320
        %s322 = smul.u32 %s23, 8
        %s323 = ssub.s32 %s322, 1
        %p324 = scmp.gt.s32.totalorder %s323, 0
        %s325 = scalar_select %p324, %s323, 0
      $region32: #{forward.3} parent=27 // pred_fallthru
        _
      // Predicated region
      $region33: #{forward.3} parent=27 // pred_check
        %p326 = pneg %p85
      $region34: #{forward.3} parent=27 // pred_check_branch
        %328 = sbr.rel (%p326) target = $region36
      $region35: #{forward.3} parent=27 // pred_region
        %s329 = smul.u32 8, %s23
        %p330 = scmp.lt.s32.totalorder %s22, 1
        %s331 = scalar_select %p330, %s22, 1
        %p332 = scmp.lt.s32.totalorder %s329, 15
        %s333 = scalar_select %p332, %s329, 15
        %s334 = smul.addr %s333, 2
        %s335 = smul.addr %s331, 32
        %s336 = sadd.s32 %s334, %s335
        %s337 = smul.addr %s336, 4
        %s338 = scalar_lea.vmem %s1, %s337
        %s339 = smul.u32 8, %s23
      $region36: #{forward.3} parent=27 // pred_fallthru
        _
      // Predicated region
      $region37: #{forward.3} parent=27 // pred_check
        %p340 = pneg %p121
      $region38: #{forward.3} parent=27 // pred_check_branch
        %342 = sbr.rel (%p340) target = $region40
      $region39: #{forward.3} parent=27 // pred_region
        %s343 = smul.u32 %s23, 8
        %s344 = sadd.s32 %s343, 8
        %p345 = scmp.lt.s32.totalorder %s344, 15
        %s346 = scalar_select %p345, %s344, 15
        %p347 = scmp.lt.s32.totalorder %s22, 1
        %s348 = scalar_select %p347, %s22, 1
        %p349 = scmp.lt.s32.totalorder %s346, 15
        %s350 = scalar_select %p349, %s346, 15
        %s351 = smul.addr %s350, 2
        %s352 = smul.addr %s348, 32
        %s353 = sadd.s32 %s351, %s352
        %s354 = smul.addr %s353, 4
        %s355 = scalar_lea.vmem %s2, %s354
        %s356 = smul.u32 %s23, 8
        %s357 = sadd.s32 %s356, 8
        %p358 = scmp.lt.s32.totalorder %s357, 15
        %s359 = scalar_select %p358, %s357, 15
      $region40: #{forward.3} parent=27 // pred_fallthru
        _
    $region28: #{forward.3} parent=5 // pred_fallthru
      _
    %p360 = scmp.le.s32.totalorder 1, %s15
    %p361 = scmp.lt.s32.totalorder %s15, 5
    %p362 = pnand %p360, %p361
    %p363 = pneg %p362
    // Predicated region
    $region41: #{forward.3} parent=5 // pred_check
      _
    $region42: #{forward.3} parent=5 // pred_check_branch
      %365 = sbr.rel (%p362) target = $region44
    $region43: #{forward.3} parent=5 // pred_region
      %s366 = ssub.s32 %s15, 1
      %s367 = smul.u32 %s25, 8
      %s368 = ssub.s32 %s367, 1
      %p369 = scmp.gt.s32.totalorder %s368, 0
      %s370 = scalar_select %p369, %s368, 0
      %p371 = scmp.lt.s32.totalorder %s24, 1
      %s372 = scalar_select %p371, %s24, 1
      %p373 = scmp.lt.s32.totalorder %s370, 15
      %s374 = scalar_select %p373, %s370, 15
      %s375 = smul.addr %s374, 2
      %s376 = smul.addr %s372, 32
      %s377 = sadd.s32 %s375, %s376
      %s378 = smul.addr %s377, 4
      %s379 = scalar_lea.vmem %s0, %s378
      %p380 = pneg %p63
      %p381 = pneg %p60
      %s382 = smul.u32 8, %s25
      %p383 = scmp.lt.s32.totalorder %s24, 1
      %s384 = scalar_select %p383, %s24, 1
      %p385 = scmp.lt.s32.totalorder %s382, 15
      %s386 = scalar_select %p385, %s382, 15
      %s387 = smul.addr %s386, 2
      %s388 = smul.addr %s384, 32
      %s389 = sadd.s32 %s387, %s388
      %s390 = smul.addr %s389, 4
      %s391 = scalar_lea.vmem %s1, %s390
      %p392 = pneg %p91
      %p393 = pneg %p88
      %s394 = smul.u32 %s25, 8
      %s395 = sadd.s32 %s394, 8
      %p396 = scmp.lt.s32.totalorder %s395, 15
      %s397 = scalar_select %p396, %s395, 15
      %p398 = scmp.lt.s32.totalorder %s24, 1
      %s399 = scalar_select %p398, %s24, 1
      %p400 = scmp.lt.s32.totalorder %s397, 15
      %s401 = scalar_select %p400, %s397, 15
      %s402 = smul.addr %s401, 2
      %s403 = smul.addr %s399, 32
      %s404 = sadd.s32 %s402, %s403
      %s405 = smul.addr %s404, 4
      %s406 = scalar_lea.vmem %s2, %s405
      %p407 = pneg %p127
      %p408 = pneg %p124
      %p409 = pneg %p148
      %p410 = pneg %p145
      %p411 = pneg %p169
      %p412 = pneg %p166
      %p413 = pneg %p190
      %p414 = pneg %p187
      %p415 = pneg %p218
      %p416 = pneg %p215
      %s417 = smul.u32 8, %s25
      %p418 = scmp.lt.s32.totalorder %s24, 1
      %s419 = scalar_select %p418, %s24, 1
      %p420 = scmp.lt.s32.totalorder %s417, 15
      %s421 = scalar_select %p420, %s417, 15
      %s422 = smul.addr %s421, 2
      %s423 = smul.addr %s419, 32
      %s424 = sadd.s32 %s422, %s423
      %s425 = smul.addr %s424, 4
      %s426 = scalar_lea.vmem %s6, %s425
      %p427 = pneg %p248
      %p428 = pneg %p245
      %s429 = smul.u32 %s24, 2
      %s430 = sadd.s32 %s429, %s25
      %p431 = scmp.lt.s32.totalorder %s430, 3
      %s432 = scalar_select %p431, %s430, 3
      %s433 = scalar_lea.vmem %s7, %s432
      %p434 = pneg %p278
      %p435 = pneg %p275
      %s436 = smul.u32 %s24, 2
      %s437 = sadd.s32 %s436, %s25
      %p438 = scmp.lt.s32.totalorder %s437, 3
      %s439 = scalar_select %p438, %s437, 3
      %s440 = scalar_lea.vmem %s8, %s439
      %s441 = smul.u32 %s25, 8
      %s442 = ssub.s32 %s441, 1
      %p443 = scmp.gt.s32.totalorder %s442, 0
      %s444 = scalar_select %p443, %s442, 0
      %p445 = scmp.lt.s32.totalorder %s24, 1
      %s446 = scalar_select %p445, %s24, 1
      %p447 = scmp.lt.s32.totalorder %s444, 15
      %s448 = scalar_select %p447, %s444, 15
      %s449 = smul.addr %s448, 2
      %s450 = smul.addr %s446, 32
      %s451 = sadd.s32 %s449, %s450
      %s452 = smul.addr %s451, 4
      %s453 = scalar_lea.vmem %s0, %s452
      %s454 = smul.u32 %s25, 8
      %s455 = ssub.s32 %s454, 1
      %p456 = scmp.gt.s32.totalorder %s455, 0
      %s457 = scalar_select %p456, %s455, 0
      %s458 = smul.u32 8, %s25
      %p459 = scmp.lt.s32.totalorder %s24, 1
      %s460 = scalar_select %p459, %s24, 1
      %p461 = scmp.lt.s32.totalorder %s458, 15
      %s462 = scalar_select %p461, %s458, 15
      %s463 = smul.addr %s462, 2
      %s464 = smul.addr %s460, 32
      %s465 = sadd.s32 %s463, %s464
      %s466 = smul.addr %s465, 4
      %s467 = scalar_lea.vmem %s1, %s466
      %s468 = smul.u32 8, %s25
      %s469 = smul.u32 %s25, 8
      %s470 = sadd.s32 %s469, 8
      %p471 = scmp.lt.s32.totalorder %s470, 15
      %s472 = scalar_select %p471, %s470, 15
      %p473 = scmp.lt.s32.totalorder %s24, 1
      %s474 = scalar_select %p473, %s24, 1
      %p475 = scmp.lt.s32.totalorder %s472, 15
      %s476 = scalar_select %p475, %s472, 15
      %s477 = smul.addr %s476, 2
      %s478 = smul.addr %s474, 32
      %s479 = sadd.s32 %s477, %s478
      %s480 = smul.addr %s479, 4
      %s481 = scalar_lea.vmem %s2, %s480
      %s482 = smul.u32 %s25, 8
      %s483 = sadd.s32 %s482, 8
      %p484 = scmp.lt.s32.totalorder %s483, 15
      %s485 = scalar_select %p484, %s483, 15
      %s486 = smul.u32 8, %s25
      %p487 = scmp.lt.s32.totalorder %s24, 1
      %s488 = scalar_select %p487, %s24, 1
      %p489 = scmp.lt.s32.totalorder %s486, 15
      %s490 = scalar_select %p489, %s486, 15
      %s491 = smul.addr %s490, 2
      %s492 = smul.addr %s488, 32
      %s493 = sadd.s32 %s491, %s492
      %s494 = smul.addr %s493, 4
      %s495 = scalar_lea.vmem %s6, %s494
      %s496 = smul.u32 8, %s25
      %s497 = smul.u32 %s24, 2
      %s498 = sadd.s32 %s497, %s25
      %p499 = scmp.lt.s32.totalorder %s498, 3
      %s500 = scalar_select %p499, %s498, 3
      %s501 = scalar_lea.vmem %s7, %s500
      %s502 = smul.u32 %s24, 2
      %s503 = sadd.s32 %s502, %s25
      %s504 = smul.u32 %s24, 2
      %s505 = sadd.s32 %s504, %s25
      %p506 = scmp.lt.s32.totalorder %s505, 3
      %s507 = scalar_select %p506, %s505, 3
      %s508 = scalar_lea.vmem %s8, %s507
      %s509 = smul.u32 %s24, 2
      %s510 = sadd.s32 %s509, %s25
      %v512 = vld [vmem:[%s453] sm:$0xf]
      %v513 = vld [vmem:[%s453 + $0x4] sm:$0xf]
      %v514 = vld [vmem:[%s467] sm:$0xf]
      %v515 = vld [vmem:[%s467 + $0x4] sm:$0xf]
      %v516 = vld [vmem:[%s467 + $0x8] sm:$0xf]
      %v517 = vld [vmem:[%s467 + $0xc] sm:$0xf]
      %v518 = vld [vmem:[%s467 + $0x10] sm:$0xf]
      %v519 = vld [vmem:[%s467 + $0x14] sm:$0xf]
      %v520 = vld [vmem:[%s467 + $0x18] sm:$0xf]
      %v521 = vld [vmem:[%s467 + $0x1c] sm:$0xf]
      %v522 = vld [vmem:[%s467 + $0x20] sm:$0xf]
      %v523 = vld [vmem:[%s467 + $0x24] sm:$0xf]
      %v524 = vld [vmem:[%s467 + $0x28] sm:$0xf]
      %v525 = vld [vmem:[%s467 + $0x2c] sm:$0xf]
      %v526 = vld [vmem:[%s467 + $0x30] sm:$0xf]
      %v527 = vld [vmem:[%s467 + $0x34] sm:$0xf]
      %v528 = vld [vmem:[%s467 + $0x38] sm:$0xf]
      %v529 = vld [vmem:[%s467 + $0x3c] sm:$0xf]
      %v530 = vld [vmem:[%s481] sm:$0xf]
      %v531 = vld [vmem:[%s481 + $0x4] sm:$0xf]
      %p532 = scmp.eq.s32.totalorder %s25, 0
      %s533 = scalar_select %p532, 1, 0
      %v534 = vstv %s533
      %vm535 = vcmp.eq.s32.totalorder %v534, 1
      %v536 = vsel %vm535, 0, %v512
      %v537 = vsel %vm535, 0, %v513
      %p538 = scmp.eq.s32.totalorder %s25, 1
      %s539 = scalar_select %p538, 1, 0
      %v540 = vstv %s539
      %vm541 = vcmp.eq.s32.totalorder %v540, 1
      %v542 = vsel %vm541, 0, %v530
      %v543 = vsel %vm541, 0, %v531
      %v564 = vunpack.c.l.b16 %v536
      %v565 = vunpack.c.l.b16 %v537
      %v566 = vunpack.c.l.b16 %v514
      %v567 = vunpack.c.l.b16 %v515
      %v568 = vunpack.c.l.b16 %v516
      %v569 = vunpack.c.l.b16 %v517
      %v570 = vunpack.c.l.b16 %v518
      %v571 = vunpack.c.l.b16 %v519
      %v572 = vunpack.c.l.b16 %v520
      %v573 = vunpack.c.l.b16 %v521
      %v574 = vunpack.c.l.b16 %v522
      %v575 = vunpack.c.l.b16 %v523
      %v576 = vunpack.c.l.b16 %v524
      %v577 = vunpack.c.l.b16 %v525
      %v578 = vunpack.c.l.b16 %v526
      %v579 = vunpack.c.l.b16 %v527
      %v580 = vunpack.c.l.b16 %v528
      %v581 = vunpack.c.l.b16 %v529
      %v582 = vunpack.c.l.b16 %v542
      %v583 = vunpack.c.l.b16 %v543
      %v584 = vpack.c.b16 %v565, %v564
      %v585 = vpack.c.b16 %v567, %v566
      %v586 = vpack.c.b16 %v569, %v568
      %v587 = vpack.c.b16 %v571, %v570
      %v588 = vpack.c.b16 %v573, %v572
      %v589 = vpack.c.b16 %v575, %v574
      %v590 = vpack.c.b16 %v577, %v576
      %v591 = vpack.c.b16 %v579, %v578
      %v592 = vpack.c.b16 %v581, %v580
      %v593 = vpack.c.b16 %v583, %v582
      %v595 = vshrl.u32 %v584, 16
      %v597 = vrot.slane %v595, 7
      %v598 = vshll.u32 %v584, 16
      %v600 = vor.u32 %v597, %v598
      %v602 = vshrl.u32 %v585, 16
      %v604 = vrot.slane %v602, 7
      %v605 = vshll.u32 %v585, 16
      %v607 = vor.u32 %v604, %v605
      %v609 = vshrl.u32 %v586, 16
      %v611 = vrot.slane %v609, 7
      %v612 = vshll.u32 %v586, 16
      %v614 = vor.u32 %v611, %v612
      %v616 = vshrl.u32 %v587, 16
      %v618 = vrot.slane %v616, 7
      %v619 = vshll.u32 %v587, 16
      %v621 = vor.u32 %v618, %v619
      %v623 = vshrl.u32 %v588, 16
      %v625 = vrot.slane %v623, 7
      %v626 = vshll.u32 %v588, 16
      %v628 = vor.u32 %v625, %v626
      %v630 = vshrl.u32 %v589, 16
      %v632 = vrot.slane %v630, 7
      %v633 = vshll.u32 %v589, 16
      %v635 = vor.u32 %v632, %v633
      %v637 = vshrl.u32 %v590, 16
      %v639 = vrot.slane %v637, 7
      %v640 = vshll.u32 %v590, 16
      %v642 = vor.u32 %v639, %v640
      %v644 = vshrl.u32 %v591, 16
      %v646 = vrot.slane %v644, 7
      %v647 = vshll.u32 %v591, 16
      %v649 = vor.u32 %v646, %v647
      %v651 = vshrl.u32 %v592, 16
      %v653 = vrot.slane %v651, 7
      %v654 = vshll.u32 %v592, 16
      %v656 = vor.u32 %v653, %v654
      %v658 = vshrl.u32 %v593, 16
      %v660 = vrot.slane %v658, 7
      %v661 = vshll.u32 %v593, 16
      %v663 = vor.u32 %v660, %v661
      %vm684 = vcmask 1040384
      %vm685 = vsmask.f32 256
      %vm686 = vmand %vm684, %vm685
      %v687 = vsel %vm686, 0, %v600
      %v688 = vsel %vm686, 0, %v607
      %v689 = vsel %vm686, 0, %v614
      %v690 = vsel %vm686, 0, %v621
      %v691 = vsel %vm686, 0, %v628
      %v692 = vsel %vm686, 0, %v635
      %v693 = vsel %vm686, 0, %v642
      %v694 = vsel %vm686, 0, %v649
      %v695 = vsel %vm686, 0, %v656
      %v696 = vsel %vm686, 0, %v663
      %v697 = vsel %vm686, %v597, 0
      %v698 = vsel %vm686, %v604, 0
      %v699 = vsel %vm686, %v611, 0
      %v700 = vsel %vm686, %v618, 0
      %v701 = vsel %vm686, %v625, 0
      %v702 = vsel %vm686, %v632, 0
      %v703 = vsel %vm686, %v639, 0
      %v704 = vsel %vm686, %v646, 0
      %v705 = vsel %vm686, %v653, 0
      %v706 = vsel %vm686, %v660, 0
      %v707 = vld [vmem:[%s5] sm:$0x3]
      %vm708 = vsmask.f32 7424
      %v710 = vshrl.u32 %v687, 16
      %v712 = vshll.u32 %v687, 16
      %v714 = vrot.slane %v712, 1
      %v715 = vor.u32 %v710, %v714
      %v717 = vshll.u32 %v697, 16
      %v719 = vrot.slane %v717, 1
      %v720 = vsel %vm708, %v715, %v719
      %v722 = vshrl.u32 %v688, 16
      %v724 = vshll.u32 %v688, 16
      %v726 = vrot.slane %v724, 1
      %v727 = vor.u32 %v722, %v726
      %v729 = vshll.u32 %v698, 16
      %v731 = vrot.slane %v729, 1
      %v732 = vsel %vm708, %v727, %v731
      %v734 = vshrl.u32 %v689, 16
      %v736 = vshll.u32 %v689, 16
      %v738 = vrot.slane %v736, 1
      %v739 = vor.u32 %v734, %v738
      %v741 = vshll.u32 %v699, 16
      %v743 = vrot.slane %v741, 1
      %v744 = vsel %vm708, %v739, %v743
      %v746 = vshrl.u32 %v690, 16
      %v748 = vshll.u32 %v690, 16
      %v750 = vrot.slane %v748, 1
      %v751 = vor.u32 %v746, %v750
      %v753 = vshll.u32 %v700, 16
      %v755 = vrot.slane %v753, 1
      %v756 = vsel %vm708, %v751, %v755
      %v758 = vshrl.u32 %v691, 16
      %v760 = vshll.u32 %v691, 16
      %v762 = vrot.slane %v760, 1
      %v763 = vor.u32 %v758, %v762
      %v765 = vshll.u32 %v701, 16
      %v767 = vrot.slane %v765, 1
      %v768 = vsel %vm708, %v763, %v767
      %v770 = vshrl.u32 %v692, 16
      %v772 = vshll.u32 %v692, 16
      %v774 = vrot.slane %v772, 1
      %v775 = vor.u32 %v770, %v774
      %v777 = vshll.u32 %v702, 16
      %v779 = vrot.slane %v777, 1
      %v780 = vsel %vm708, %v775, %v779
      %v782 = vshrl.u32 %v693, 16
      %v784 = vshll.u32 %v693, 16
      %v786 = vrot.slane %v784, 1
      %v787 = vor.u32 %v782, %v786
      %v789 = vshll.u32 %v703, 16
      %v791 = vrot.slane %v789, 1
      %v792 = vsel %vm708, %v787, %v791
      %v794 = vshrl.u32 %v694, 16
      %v796 = vshll.u32 %v694, 16
      %v798 = vrot.slane %v796, 1
      %v799 = vor.u32 %v794, %v798
      %v801 = vshll.u32 %v704, 16
      %v803 = vrot.slane %v801, 1
      %v804 = vsel %vm708, %v799, %v803
      %s805 = scalar_lea.vmem %s5, 2
      %v806 = vld [vmem:[%s805] sm:$0x3]
      %vm807 = vcmask 31744
      %v809 = vsel %vm807, %v720, 0
      %v812 = vsel %vm807, %v732, 0
      %v815 = vsel %vm807, %v744, 0
      %v818 = vsel %vm807, %v756, 0
      %v821 = vsel %vm807, %v768, 0
      %v824 = vsel %vm807, %v780, 0
      %v827 = vsel %vm807, %v792, 0
      %v830 = vsel %vm807, %v804, 0
      %vm832 = vcmask 1041408
      %v834 = vsel %vm832, %v806, 0
      %836 = vmatprep.subr.bf16.mxu0 0
      %837 = vmatpush1.bf16.msra.mxu0 %v834
      %838 = vmatprep.subr.bf16.mxu0 0
      %839 = vmatpush1.bf16.msra.mxu0 0
      %840 = vmatprep.subr.bf16.mxu0 0
      %841 = vmatpush1.bf16.msra.mxu0 0
      %842 = vmatprep.subr.bf16.mxu0 0
      %843 = vmatpush1.bf16.msra.mxu0 0
      %844 = vmatprep.subr.bf16.mxu0 0
      %845 = vmatpush1.bf16.msra.mxu0 0
      %846 = vmatprep.subr.bf16.mxu0 0
      %847 = vmatpush1.bf16.msra.mxu0 0
      %848 = vmatprep.subr.bf16.mxu0 0
      %849 = vmatpush1.bf16.msra.mxu0 0
      %850 = vmatprep.subr.bf16.mxu0 0
      %851 = vmatpush1.bf16.msra.mxu0 0
      %852 = vmatprep.subr.bf16.mxu0 0
      %853 = vmatpush1.bf16.msra.mxu0 0
      %854 = vmatprep.subr.bf16.mxu0 0
      %855 = vmatpush1.bf16.msra.mxu0 0
      %856 = vmatprep.subr.bf16.mxu0 0
      %857 = vmatpush1.bf16.msra.mxu0 0
      %858 = vmatprep.subr.bf16.mxu0 0
      %859 = vmatpush1.bf16.msra.mxu0 0
      %860 = vmatprep.subr.bf16.mxu0 0
      %861 = vmatpush1.bf16.msra.mxu0 0
      %862 = vmatprep.subr.bf16.mxu0 0
      %863 = vmatpush1.bf16.msra.mxu0 0
      %864 = vmatprep.subr.bf16.mxu0 0
      %865 = vmatpush1.bf16.msra.mxu0 0
      %866 = vmatprep.subr.bf16.mxu0 0
      %867 = vmatpush1.bf16.msra.mxu0 0
      %868 = vmatprep.mubr.bf16.mxu0 0
      %869 = vmatmul.mubr.bf16.gmra.mrb[0].mxu0 %v809
      %v870 = vpop.f32.mrb[0].mxu0
      %v871 = vadd.f32 0.0, %v870
      %v872 = vpop.f32.mrb[0].mxu0
      %v873 = vpop.f32.mrb[0].mxu0
      %v874 = vadd.f32 0.0, %v873
      %v875 = vpop.f32.mrb[0].mxu0
      %876 = vmatprep.mubr.bf16.mxu0 0
      %877 = vmatmul.mubr.bf16.gmra.mrb[0].mxu0 %v812
      %v878 = vpop.f32.mrb[0].mxu0
      %v879 = vadd.f32 0.0, %v878
      %v880 = vpop.f32.mrb[0].mxu0
      %v881 = vpop.f32.mrb[0].mxu0
      %v882 = vadd.f32 0.0, %v881
      %v883 = vpop.f32.mrb[0].mxu0
      %884 = vmatprep.mubr.bf16.mxu0 0
      %885 = vmatmul.mubr.bf16.gmra.mrb[0].mxu0 %v815
      %v886 = vpop.f32.mrb[0].mxu0
      %v887 = vadd.f32 0.0, %v886
      %v888 = vpop.f32.mrb[0].mxu0
      %v889 = vpop.f32.mrb[0].mxu0
      %v890 = vadd.f32 0.0, %v889
      %v891 = vpop.f32.mrb[0].mxu0
      %892 = vmatprep.mubr.bf16.mxu0 0
      %893 = vmatmul.mubr.bf16.gmra.mrb[0].mxu0 %v818
      %v894 = vpop.f32.mrb[0].mxu0
      %v895 = vadd.f32 0.0, %v894
      %v896 = vpop.f32.mrb[0].mxu0
      %v897 = vpop.f32.mrb[0].mxu0
      %v898 = vadd.f32 0.0, %v897
      %v899 = vpop.f32.mrb[0].mxu0
      %900 = vmatprep.mubr.bf16.mxu0 0
      %901 = vmatmul.mubr.bf16.gmra.mrb[0].mxu0 %v821
      %v902 = vpop.f32.mrb[0].mxu0
      %v903 = vadd.f32 0.0, %v902
      %v904 = vpop.f32.mrb[0].mxu0
      %v905 = vpop.f32.mrb[0].mxu0
      %v906 = vadd.f32 0.0, %v905
      %v907 = vpop.f32.mrb[0].mxu0
      %908 = vmatprep.mubr.bf16.mxu0 0
      %909 = vmatmul.mubr.bf16.gmra.mrb[0].mxu0 %v824
      %v910 = vpop.f32.mrb[0].mxu0
      %v911 = vadd.f32 0.0, %v910
      %v912 = vpop.f32.mrb[0].mxu0
      %v913 = vpop.f32.mrb[0].mxu0
      %v914 = vadd.f32 0.0, %v913
      %v915 = vpop.f32.mrb[0].mxu0
      %916 = vmatprep.mubr.bf16.mxu0 0
      %917 = vmatmul.mubr.bf16.gmra.mrb[0].mxu0 %v827
      %v918 = vpop.f32.mrb[0].mxu0
      %v919 = vadd.f32 0.0, %v918
      %v920 = vpop.f32.mrb[0].mxu0
      %v921 = vpop.f32.mrb[0].mxu0
      %v922 = vadd.f32 0.0, %v921
      %v923 = vpop.f32.mrb[0].mxu0
      %924 = vmatprep.mubr.bf16.mxu0 0
      %925 = vmatmul.mubr.bf16.gmra.mrb[0].mxu0 %v830
      %v926 = vpop.f32.mrb[0].mxu0
      %v927 = vadd.f32 0.0, %v926
      %v928 = vpop.f32.mrb[0].mxu0
      %v929 = vpop.f32.mrb[0].mxu0
      %v930 = vadd.f32 0.0, %v929
      %v931 = vpop.f32.mrb[0].mxu0
      %932 = vdwg.mxu0
      %v933 = vsel %vm807, %v687, 0
      %v935 = vsel %vm807, %v688, 0
      %v937 = vsel %vm807, %v689, 0
      %v939 = vsel %vm807, %v690, 0
      %v941 = vsel %vm807, %v691, 0
      %v943 = vsel %vm807, %v692, 0
      %v945 = vsel %vm807, %v693, 0
      %v947 = vsel %vm807, %v694, 0
      %v950 = vsel %vm832, %v707, 0
      %952 = vmatprep.subr.bf16.mxu0 0
      %953 = vmatpush1.bf16.msra.mxu0 %v950
      %954 = vmatprep.subr.bf16.mxu0 0
      %955 = vmatpush1.bf16.msra.mxu0 0
      %956 = vmatprep.subr.bf16.mxu0 0
      %957 = vmatpush1.bf16.msra.mxu0 0
      %958 = vmatprep.subr.bf16.mxu0 0
      %959 = vmatpush1.bf16.msra.mxu0 0
      %960 = vmatprep.subr.bf16.mxu0 0
      %961 = vmatpush1.bf16.msra.mxu0 0
      %962 = vmatprep.subr.bf16.mxu0 0
      %963 = vmatpush1.bf16.msra.mxu0 0
      %964 = vmatprep.subr.bf16.mxu0 0
      %965 = vmatpush1.bf16.msra.mxu0 0
      %966 = vmatprep.subr.bf16.mxu0 0
      %967 = vmatpush1.bf16.msra.mxu0 0
      %968 = vmatprep.subr.bf16.mxu0 0
      %969 = vmatpush1.bf16.msra.mxu0 0
      %970 = vmatprep.subr.bf16.mxu0 0
      %971 = vmatpush1.bf16.msra.mxu0 0
      %972 = vmatprep.subr.bf16.mxu0 0
      %973 = vmatpush1.bf16.msra.mxu0 0
      %974 = vmatprep.subr.bf16.mxu0 0
      %975 = vmatpush1.bf16.msra.mxu0 0
      %976 = vmatprep.subr.bf16.mxu0 0
      %977 = vmatpush1.bf16.msra.mxu0 0
      %978 = vmatprep.subr.bf16.mxu0 0
      %979 = vmatpush1.bf16.msra.mxu0 0
      %980 = vmatprep.subr.bf16.mxu0 0
      %981 = vmatpush1.bf16.msra.mxu0 0
      %982 = vmatprep.subr.bf16.mxu0 0
      %983 = vmatpush1.bf16.msra.mxu0 0
      %984 = vmatprep.mubr.bf16.mxu0 0
      %985 = vmatmul.mubr.bf16.gmra.mrb[0].mxu0 %v933
      %v986 = vpop.f32.mrb[0].mxu0
      %v987 = vadd.f32 %v871, %v986
      %v988 = vpop.f32.mrb[0].mxu0
      %v989 = vpop.f32.mrb[0].mxu0
      %v990 = vadd.f32 %v874, %v989
      %v991 = vpop.f32.mrb[0].mxu0
      %992 = vmatprep.mubr.bf16.mxu0 0
      %993 = vmatmul.mubr.bf16.gmra.mrb[0].mxu0 %v935
      %v994 = vpop.f32.mrb[0].mxu0
      %v995 = vadd.f32 %v879, %v994
      %v996 = vpop.f32.mrb[0].mxu0
      %v997 = vpop.f32.mrb[0].mxu0
      %v998 = vadd.f32 %v882, %v997
      %v999 = vpop.f32.mrb[0].mxu0
      %1000 = vmatprep.mubr.bf16.mxu0 0
      %1001 = vmatmul.mubr.bf16.gmra.mrb[0].mxu0 %v937
      %v1002 = vpop.f32.mrb[0].mxu0
      %v1003 = vadd.f32 %v887, %v1002
      %v1004 = vpop.f32.mrb[0].mxu0
      %v1005 = vpop.f32.mrb[0].mxu0
      %v1006 = vadd.f32 %v890, %v1005
      %v1007 = vpop.f32.mrb[0].mxu0
      %1008 = vmatprep.mubr.bf16.mxu0 0
      %1009 = vmatmul.mubr.bf16.gmra.mrb[0].mxu0 %v939
      %v1010 = vpop.f32.mrb[0].mxu0
      %v1011 = vadd.f32 %v895, %v1010
      %v1012 = vpop.f32.mrb[0].mxu0
      %v1013 = vpop.f32.mrb[0].mxu0
      %v1014 = vadd.f32 %v898, %v1013
      %v1015 = vpop.f32.mrb[0].mxu0
      %1016 = vmatprep.mubr.bf16.mxu0 0
      %1017 = vmatmul.mubr.bf16.gmra.mrb[0].mxu0 %v941
      %v1018 = vpop.f32.mrb[0].mxu0
      %v1019 = vadd.f32 %v903, %v1018
      %v1020 = vpop.f32.mrb[0].mxu0
      %v1021 = vpop.f32.mrb[0].mxu0
      %v1022 = vadd.f32 %v906, %v1021
      %v1023 = vpop.f32.mrb[0].mxu0
      %1024 = vmatprep.mubr.bf16.mxu0 0
      %1025 = vmatmul.mubr.bf16.gmra.mrb[0].mxu0 %v943
      %v1026 = vpop.f32.mrb[0].mxu0
      %v1027 = vadd.f32 %v911, %v1026
      %v1028 = vpop.f32.mrb[0].mxu0
      %v1029 = vpop.f32.mrb[0].mxu0
      %v1030 = vadd.f32 %v914, %v1029
      %v1031 = vpop.f32.mrb[0].mxu0
      %1032 = vmatprep.mubr.bf16.mxu0 0
      %1033 = vmatmul.mubr.bf16.gmra.mrb[0].mxu0 %v945
      %v1034 = vpop.f32.mrb[0].mxu0
      %v1035 = vadd.f32 %v919, %v1034
      %v1036 = vpop.f32.mrb[0].mxu0
      %v1037 = vpop.f32.mrb[0].mxu0
      %v1038 = vadd.f32 %v922, %v1037
      %v1039 = vpop.f32.mrb[0].mxu0
      %1040 = vmatprep.mubr.bf16.mxu0 0
      %1041 = vmatmul.mubr.bf16.gmra.mrb[0].mxu0 %v947
      %v1042 = vpop.f32.mrb[0].mxu0
      %v1043 = vadd.f32 %v927, %v1042
      %v1044 = vpop.f32.mrb[0].mxu0
      %v1045 = vpop.f32.mrb[0].mxu0
      %v1046 = vadd.f32 %v930, %v1045
      %v1047 = vpop.f32.mrb[0].mxu0
      %1048 = vdwg.mxu0
      %vm1065 = vcmask 1046528
      %v1066 = vrot.slane %v687, 1
      %v1067 = vrot.slane %v697, 1
      %v1068 = vsel %vm1065, %v1066, %v1067
      %v1069 = vrot.slane %v688, 1
      %v1070 = vrot.slane %v698, 1
      %v1071 = vsel %vm1065, %v1069, %v1070
      %v1072 = vrot.slane %v689, 1
      %v1073 = vrot.slane %v699, 1
      %v1074 = vsel %vm1065, %v1072, %v1073
      %v1075 = vrot.slane %v690, 1
      %v1076 = vrot.slane %v700, 1
      %v1077 = vsel %vm1065, %v1075, %v1076
      %v1078 = vrot.slane %v691, 1
      %v1079 = vrot.slane %v701, 1
      %v1080 = vsel %vm1065, %v1078, %v1079
      %v1081 = vrot.slane %v692, 1
      %v1082 = vrot.slane %v702, 1
      %v1083 = vsel %vm1065, %v1081, %v1082
      %v1084 = vrot.slane %v693, 1
      %v1085 = vrot.slane %v703, 1
      %v1086 = vsel %vm1065, %v1084, %v1085
      %v1087 = vrot.slane %v694, 1
      %v1088 = vrot.slane %v704, 1
      %v1089 = vsel %vm1065, %v1087, %v1088
      %s1090 = scalar_lea.vmem %s5, 4
      %v1091 = vld [vmem:[%s1090] sm:$0x3]
      %v1093 = vsel %vm807, %v1068, 0
      %v1096 = vsel %vm807, %v1071, 0
      %v1099 = vsel %vm807, %v1074, 0
      %v1102 = vsel %vm807, %v1077, 0
      %v1105 = vsel %vm807, %v1080, 0
      %v1108 = vsel %vm807, %v1083, 0
      %v1111 = vsel %vm807, %v1086, 0
      %v1114 = vsel %vm807, %v1089, 0
      %v1117 = vsel %vm832, %v1091, 0
      %1119 = vmatprep.subr.bf16.mxu0 0
      %1120 = vmatpush1.bf16.msra.mxu0 %v1117
      %1121 = vmatprep.subr.bf16.mxu0 0
      %1122 = vmatpush1.bf16.msra.mxu0 0
      %1123 = vmatprep.subr.bf16.mxu0 0
      %1124 = vmatpush1.bf16.msra.mxu0 0
      %1125 = vmatprep.subr.bf16.mxu0 0
      %1126 = vmatpush1.bf16.msra.mxu0 0
      %1127 = vmatprep.subr.bf16.mxu0 0
      %1128 = vmatpush1.bf16.msra.mxu0 0
      %1129 = vmatprep.subr.bf16.mxu0 0
      %1130 = vmatpush1.bf16.msra.mxu0 0
      %1131 = vmatprep.subr.bf16.mxu0 0
      %1132 = vmatpush1.bf16.msra.mxu0 0
      %1133 = vmatprep.subr.bf16.mxu0 0
      %1134 = vmatpush1.bf16.msra.mxu0 0
      %1135 = vmatprep.subr.bf16.mxu0 0
      %1136 = vmatpush1.bf16.msra.mxu0 0
      %1137 = vmatprep.subr.bf16.mxu0 0
      %1138 = vmatpush1.bf16.msra.mxu0 0
      %1139 = vmatprep.subr.bf16.mxu0 0
      %1140 = vmatpush1.bf16.msra.mxu0 0
      %1141 = vmatprep.subr.bf16.mxu0 0
      %1142 = vmatpush1.bf16.msra.mxu0 0
      %1143 = vmatprep.subr.bf16.mxu0 0
      %1144 = vmatpush1.bf16.msra.mxu0 0
      %1145 = vmatprep.subr.bf16.mxu0 0
      %1146 = vmatpush1.bf16.msra.mxu0 0
      %1147 = vmatprep.subr.bf16.mxu0 0
      %1148 = vmatpush1.bf16.msra.mxu0 0
      %1149 = vmatprep.subr.bf16.mxu0 0
      %1150 = vmatpush1.bf16.msra.mxu0 0
      %1151 = vmatprep.mubr.bf16.mxu0 0
      %1152 = vmatmul.mubr.bf16.gmra.mrb[0].mxu0 %v1093
      %v1153 = vpop.f32.mrb[0].mxu0
      %v1154 = vadd.f32 0.0, %v1153
      %v1155 = vpop.f32.mrb[0].mxu0
      %v1156 = vpop.f32.mrb[0].mxu0
      %v1157 = vadd.f32 0.0, %v1156
      %v1158 = vpop.f32.mrb[0].mxu0
      %1159 = vmatprep.mubr.bf16.mxu0 0
      %1160 = vmatmul.mubr.bf16.gmra.mrb[0].mxu0 %v1096
      %v1161 = vpop.f32.mrb[0].mxu0
      %v1162 = vadd.f32 0.0, %v1161
      %v1163 = vpop.f32.mrb[0].mxu0
      %v1164 = vpop.f32.mrb[0].mxu0
      %v1165 = vadd.f32 0.0, %v1164
      %v1166 = vpop.f32.mrb[0].mxu0
      %1167 = vmatprep.mubr.bf16.mxu0 0
      %1168 = vmatmul.mubr.bf16.gmra.mrb[0].mxu0 %v1099
      %v1169 = vpop.f32.mrb[0].mxu0
      %v1170 = vadd.f32 0.0, %v1169
      %v1171 = vpop.f32.mrb[0].mxu0
      %v1172 = vpop.f32.mrb[0].mxu0
      %v1173 = vadd.f32 0.0, %v1172
      %v1174 = vpop.f32.mrb[0].mxu0
      %1175 = vmatprep.mubr.bf16.mxu0 0
      %1176 = vmatmul.mubr.bf16.gmra.mrb[0].mxu0 %v1102
      %v1177 = vpop.f32.mrb[0].mxu0
      %v1178 = vadd.f32 0.0, %v1177
      %v1179 = vpop.f32.mrb[0].mxu0
      %v1180 = vpop.f32.mrb[0].mxu0
      %v1181 = vadd.f32 0.0, %v1180
      %v1182 = vpop.f32.mrb[0].mxu0
      %1183 = vmatprep.mubr.bf16.mxu0 0
      %1184 = vmatmul.mubr.bf16.gmra.mrb[0].mxu0 %v1105
      %v1185 = vpop.f32.mrb[0].mxu0
      %v1186 = vadd.f32 0.0, %v1185
      %v1187 = vpop.f32.mrb[0].mxu0
      %v1188 = vpop.f32.mrb[0].mxu0
      %v1189 = vadd.f32 0.0, %v1188
      %v1190 = vpop.f32.mrb[0].mxu0
      %1191 = vmatprep.mubr.bf16.mxu0 0
      %1192 = vmatmul.mubr.bf16.gmra.mrb[0].mxu0 %v1108
      %v1193 = vpop.f32.mrb[0].mxu0
      %v1194 = vadd.f32 0.0, %v1193
      %v1195 = vpop.f32.mrb[0].mxu0
      %v1196 = vpop.f32.mrb[0].mxu0
      %v1197 = vadd.f32 0.0, %v1196
      %v1198 = vpop.f32.mrb[0].mxu0
      %1199 = vmatprep.mubr.bf16.mxu0 0
      %1200 = vmatmul.mubr.bf16.gmra.mrb[0].mxu0 %v1111
      %v1201 = vpop.f32.mrb[0].mxu0
      %v1202 = vadd.f32 0.0, %v1201
      %v1203 = vpop.f32.mrb[0].mxu0
      %v1204 = vpop.f32.mrb[0].mxu0
      %v1205 = vadd.f32 0.0, %v1204
      %v1206 = vpop.f32.mrb[0].mxu0
      %1207 = vmatprep.mubr.bf16.mxu0 0
      %1208 = vmatmul.mubr.bf16.gmra.mrb[0].mxu0 %v1114
      %v1209 = vpop.f32.mrb[0].mxu0
      %v1210 = vadd.f32 0.0, %v1209
      %v1211 = vpop.f32.mrb[0].mxu0
      %v1212 = vpop.f32.mrb[0].mxu0
      %v1213 = vadd.f32 0.0, %v1212
      %v1214 = vpop.f32.mrb[0].mxu0
      %1215 = vdwg.mxu0
      %v1216 = vadd.f32 %v987, %v1154
      %v1217 = vadd.f32 %v990, %v1157
      %v1218 = vadd.f32 %v995, %v1162
      %v1219 = vadd.f32 %v998, %v1165
      %v1220 = vadd.f32 %v1003, %v1170
      %v1221 = vadd.f32 %v1006, %v1173
      %v1222 = vadd.f32 %v1011, %v1178
      %v1223 = vadd.f32 %v1014, %v1181
      %v1224 = vadd.f32 %v1019, %v1186
      %v1225 = vadd.f32 %v1022, %v1189
      %v1226 = vadd.f32 %v1027, %v1194
      %v1227 = vadd.f32 %v1030, %v1197
      %v1228 = vadd.f32 %v1035, %v1202
      %v1229 = vadd.f32 %v1038, %v1205
      %v1230 = vadd.f32 %v1043, %v1210
      %v1231 = vadd.f32 %v1046, %v1213
      %s1232 = scalar_lea.vmem %s5, 6
      %v1233 = vld [vmem:[%s1232] sm:$0x3]
      %v1235 = vsel %vm807, %v695, 0
      %v1238 = vsel %vm832, %v1233, 0
      %1240 = vmatprep.subr.bf16.mxu0 0
      %1241 = vmatpush1.bf16.msra.mxu0 %v1238
      %1242 = vmatprep.subr.bf16.mxu0 0
      %1243 = vmatpush1.bf16.msra.mxu0 0
      %1244 = vmatprep.subr.bf16.mxu0 0
      %1245 = vmatpush1.bf16.msra.mxu0 0
      %1246 = vmatprep.subr.bf16.mxu0 0
      %1247 = vmatpush1.bf16.msra.mxu0 0
      %1248 = vmatprep.subr.bf16.mxu0 0
      %1249 = vmatpush1.bf16.msra.mxu0 0
      %1250 = vmatprep.subr.bf16.mxu0 0
      %1251 = vmatpush1.bf16.msra.mxu0 0
      %1252 = vmatprep.subr.bf16.mxu0 0
      %1253 = vmatpush1.bf16.msra.mxu0 0
      %1254 = vmatprep.subr.bf16.mxu0 0
      %1255 = vmatpush1.bf16.msra.mxu0 0
      %1256 = vmatprep.subr.bf16.mxu0 0
      %1257 = vmatpush1.bf16.msra.mxu0 0
      %1258 = vmatprep.subr.bf16.mxu0 0
      %1259 = vmatpush1.bf16.msra.mxu0 0
      %1260 = vmatprep.subr.bf16.mxu0 0
      %1261 = vmatpush1.bf16.msra.mxu0 0
      %1262 = vmatprep.subr.bf16.mxu0 0
      %1263 = vmatpush1.bf16.msra.mxu0 0
      %1264 = vmatprep.subr.bf16.mxu0 0
      %1265 = vmatpush1.bf16.msra.mxu0 0
      %1266 = vmatprep.subr.bf16.mxu0 0
      %1267 = vmatpush1.bf16.msra.mxu0 0
      %1268 = vmatprep.subr.bf16.mxu0 0
      %1269 = vmatpush1.bf16.msra.mxu0 0
      %1270 = vmatprep.subr.bf16.mxu0 0
      %1271 = vmatpush1.bf16.msra.mxu0 0
      %1272 = vmatprep.mubr.bf16.mxu0 0
      %1273 = vmatmul.mubr.bf16.gmra.mrb[0].mxu0 %v935
      %v1274 = vpop.f32.mrb[0].mxu0
      %v1275 = vadd.f32 0.0, %v1274
      %v1276 = vpop.f32.mrb[0].mxu0
      %v1277 = vpop.f32.mrb[0].mxu0
      %v1278 = vadd.f32 0.0, %v1277
      %v1279 = vpop.f32.mrb[0].mxu0
      %1280 = vmatprep.mubr.bf16.mxu0 0
      %1281 = vmatmul.mubr.bf16.gmra.mrb[0].mxu0 %v937
      %v1282 = vpop.f32.mrb[0].mxu0
      %v1283 = vadd.f32 0.0, %v1282
      %v1284 = vpop.f32.mrb[0].mxu0
      %v1285 = vpop.f32.mrb[0].mxu0
      %v1286 = vadd.f32 0.0, %v1285
      %v1287 = vpop.f32.mrb[0].mxu0
      %1288 = vmatprep.mubr.bf16.mxu0 0
      %1289 = vmatmul.mubr.bf16.gmra.mrb[0].mxu0 %v939
      %v1290 = vpop.f32.mrb[0].mxu0
      %v1291 = vadd.f32 0.0, %v1290
      %v1292 = vpop.f32.mrb[0].mxu0
      %v1293 = vpop.f32.mrb[0].mxu0
      %v1294 = vadd.f32 0.0, %v1293
      %v1295 = vpop.f32.mrb[0].mxu0
      %1296 = vmatprep.mubr.bf16.mxu0 0
      %1297 = vmatmul.mubr.bf16.gmra.mrb[0].mxu0 %v941
      %v1298 = vpop.f32.mrb[0].mxu0
      %v1299 = vadd.f32 0.0, %v1298
      %v1300 = vpop.f32.mrb[0].mxu0
      %v1301 = vpop.f32.mrb[0].mxu0
      %v1302 = vadd.f32 0.0, %v1301
      %v1303 = vpop.f32.mrb[0].mxu0
      %1304 = vmatprep.mubr.bf16.mxu0 0
      %1305 = vmatmul.mubr.bf16.gmra.mrb[0].mxu0 %v943
      %v1306 = vpop.f32.mrb[0].mxu0
      %v1307 = vadd.f32 0.0, %v1306
      %v1308 = vpop.f32.mrb[0].mxu0
      %v1309 = vpop.f32.mrb[0].mxu0
      %v1310 = vadd.f32 0.0, %v1309
      %v1311 = vpop.f32.mrb[0].mxu0
      %1312 = vmatprep.mubr.bf16.mxu0 0
      %1313 = vmatmul.mubr.bf16.gmra.mrb[0].mxu0 %v945
      %v1314 = vpop.f32.mrb[0].mxu0
      %v1315 = vadd.f32 0.0, %v1314
      %v1316 = vpop.f32.mrb[0].mxu0
      %v1317 = vpop.f32.mrb[0].mxu0
      %v1318 = vadd.f32 0.0, %v1317
      %v1319 = vpop.f32.mrb[0].mxu0
      %1320 = vmatprep.mubr.bf16.mxu0 0
      %1321 = vmatmul.mubr.bf16.gmra.mrb[0].mxu0 %v947
      %v1322 = vpop.f32.mrb[0].mxu0
      %v1323 = vadd.f32 0.0, %v1322
      %v1324 = vpop.f32.mrb[0].mxu0
      %v1325 = vpop.f32.mrb[0].mxu0
      %v1326 = vadd.f32 0.0, %v1325
      %v1327 = vpop.f32.mrb[0].mxu0
      %1328 = vmatprep.mubr.bf16.mxu0 0
      %1329 = vmatmul.mubr.bf16.gmra.mrb[0].mxu0 %v1235
      %v1330 = vpop.f32.mrb[0].mxu0
      %v1331 = vadd.f32 0.0, %v1330
      %v1332 = vpop.f32.mrb[0].mxu0
      %v1333 = vpop.f32.mrb[0].mxu0
      %v1334 = vadd.f32 0.0, %v1333
      %v1335 = vpop.f32.mrb[0].mxu0
      %1336 = vdwg.mxu0
      %v1337 = vadd.f32 %v1216, %v1275
      %v1338 = vadd.f32 %v1217, %v1278
      %v1339 = vadd.f32 %v1218, %v1283
      %v1340 = vadd.f32 %v1219, %v1286
      %v1341 = vadd.f32 %v1220, %v1291
      %v1342 = vadd.f32 %v1221, %v1294
      %v1343 = vadd.f32 %v1222, %v1299
      %v1344 = vadd.f32 %v1223, %v1302
      %v1345 = vadd.f32 %v1224, %v1307
      %v1346 = vadd.f32 %v1225, %v1310
      %v1347 = vadd.f32 %v1226, %v1315
      %v1348 = vadd.f32 %v1227, %v1318
      %v1349 = vadd.f32 %v1228, %v1323
      %v1350 = vadd.f32 %v1229, %v1326
      %v1351 = vadd.f32 %v1230, %v1331
      %v1352 = vadd.f32 %v1231, %v1334
      %v1353 = vshrl.u32 %v695, 16
      %v1355 = vshll.u32 %v695, 16
      %v1357 = vrot.slane %v1355, 1
      %v1358 = vor.u32 %v1353, %v1357
      %v1360 = vshll.u32 %v705, 16
      %v1362 = vrot.slane %v1360, 1
      %v1363 = vsel %vm708, %v1358, %v1362
      %s1364 = scalar_lea.vmem %s5, 8
      %v1365 = vld [vmem:[%s1364] sm:$0x3]
      %v1367 = vsel %vm807, %v1363, 0
      %v1370 = vsel %vm832, %v1365, 0
      %1372 = vmatprep.subr.bf16.mxu0 0
      %1373 = vmatpush1.bf16.msra.mxu0 %v1370
      %1374 = vmatprep.subr.bf16.mxu0 0
      %1375 = vmatpush1.bf16.msra.mxu0 0
      %1376 = vmatprep.subr.bf16.mxu0 0
      %1377 = vmatpush1.bf16.msra.mxu0 0
      %1378 = vmatprep.subr.bf16.mxu0 0
      %1379 = vmatpush1.bf16.msra.mxu0 0
      %1380 = vmatprep.subr.bf16.mxu0 0
      %1381 = vmatpush1.bf16.msra.mxu0 0
      %1382 = vmatprep.subr.bf16.mxu0 0
      %1383 = vmatpush1.bf16.msra.mxu0 0
      %1384 = vmatprep.subr.bf16.mxu0 0
      %1385 = vmatpush1.bf16.msra.mxu0 0
      %1386 = vmatprep.subr.bf16.mxu0 0
      %1387 = vmatpush1.bf16.msra.mxu0 0
      %1388 = vmatprep.subr.bf16.mxu0 0
      %1389 = vmatpush1.bf16.msra.mxu0 0
      %1390 = vmatprep.subr.bf16.mxu0 0
      %1391 = vmatpush1.bf16.msra.mxu0 0
      %1392 = vmatprep.subr.bf16.mxu0 0
      %1393 = vmatpush1.bf16.msra.mxu0 0
      %1394 = vmatprep.subr.bf16.mxu0 0
      %1395 = vmatpush1.bf16.msra.mxu0 0
      %1396 = vmatprep.subr.bf16.mxu0 0
      %1397 = vmatpush1.bf16.msra.mxu0 0
      %1398 = vmatprep.subr.bf16.mxu0 0
      %1399 = vmatpush1.bf16.msra.mxu0 0
      %1400 = vmatprep.subr.bf16.mxu0 0
      %1401 = vmatpush1.bf16.msra.mxu0 0
      %1402 = vmatprep.subr.bf16.mxu0 0
      %1403 = vmatpush1.bf16.msra.mxu0 0
      %1404 = vmatprep.mubr.bf16.mxu0 0
      %1405 = vmatmul.mubr.bf16.gmra.mrb[0].mxu0 %v812
      %v1406 = vpop.f32.mrb[0].mxu0
      %v1407 = vadd.f32 0.0, %v1406
      %v1408 = vpop.f32.mrb[0].mxu0
      %v1409 = vpop.f32.mrb[0].mxu0
      %v1410 = vadd.f32 0.0, %v1409
      %v1411 = vpop.f32.mrb[0].mxu0
      %1412 = vmatprep.mubr.bf16.mxu0 0
      %1413 = vmatmul.mubr.bf16.gmra.mrb[0].mxu0 %v815
      %v1414 = vpop.f32.mrb[0].mxu0
      %v1415 = vadd.f32 0.0, %v1414
      %v1416 = vpop.f32.mrb[0].mxu0
      %v1417 = vpop.f32.mrb[0].mxu0
      %v1418 = vadd.f32 0.0, %v1417
      %v1419 = vpop.f32.mrb[0].mxu0
      %1420 = vmatprep.mubr.bf16.mxu0 0
      %1421 = vmatmul.mubr.bf16.gmra.mrb[0].mxu0 %v818
      %v1422 = vpop.f32.mrb[0].mxu0
      %v1423 = vadd.f32 0.0, %v1422
      %v1424 = vpop.f32.mrb[0].mxu0
      %v1425 = vpop.f32.mrb[0].mxu0
      %v1426 = vadd.f32 0.0, %v1425
      %v1427 = vpop.f32.mrb[0].mxu0
      %1428 = vmatprep.mubr.bf16.mxu0 0
      %1429 = vmatmul.mubr.bf16.gmra.mrb[0].mxu0 %v821
      %v1430 = vpop.f32.mrb[0].mxu0
      %v1431 = vadd.f32 0.0, %v1430
      %v1432 = vpop.f32.mrb[0].mxu0
      %v1433 = vpop.f32.mrb[0].mxu0
      %v1434 = vadd.f32 0.0, %v1433
      %v1435 = vpop.f32.mrb[0].mxu0
      %1436 = vmatprep.mubr.bf16.mxu0 0
      %1437 = vmatmul.mubr.bf16.gmra.mrb[0].mxu0 %v824
      %v1438 = vpop.f32.mrb[0].mxu0
      %v1439 = vadd.f32 0.0, %v1438
      %v1440 = vpop.f32.mrb[0].mxu0
      %v1441 = vpop.f32.mrb[0].mxu0
      %v1442 = vadd.f32 0.0, %v1441
      %v1443 = vpop.f32.mrb[0].mxu0
      %1444 = vmatprep.mubr.bf16.mxu0 0
      %1445 = vmatmul.mubr.bf16.gmra.mrb[0].mxu0 %v827
      %v1446 = vpop.f32.mrb[0].mxu0
      %v1447 = vadd.f32 0.0, %v1446
      %v1448 = vpop.f32.mrb[0].mxu0
      %v1449 = vpop.f32.mrb[0].mxu0
      %v1450 = vadd.f32 0.0, %v1449
      %v1451 = vpop.f32.mrb[0].mxu0
      %1452 = vmatprep.mubr.bf16.mxu0 0
      %1453 = vmatmul.mubr.bf16.gmra.mrb[0].mxu0 %v830
      %v1454 = vpop.f32.mrb[0].mxu0
      %v1455 = vadd.f32 0.0, %v1454
      %v1456 = vpop.f32.mrb[0].mxu0
      %v1457 = vpop.f32.mrb[0].mxu0
      %v1458 = vadd.f32 0.0, %v1457
      %v1459 = vpop.f32.mrb[0].mxu0
      %1460 = vmatprep.mubr.bf16.mxu0 0
      %1461 = vmatmul.mubr.bf16.gmra.mrb[0].mxu0 %v1367
      %v1462 = vpop.f32.mrb[0].mxu0
      %v1463 = vadd.f32 0.0, %v1462
      %v1464 = vpop.f32.mrb[0].mxu0
      %v1465 = vpop.f32.mrb[0].mxu0
      %v1466 = vadd.f32 0.0, %v1465
      %v1467 = vpop.f32.mrb[0].mxu0
      %1468 = vdwg.mxu0
      %v1469 = vadd.f32 %v1337, %v1407
      %v1470 = vadd.f32 %v1338, %v1410
      %v1471 = vadd.f32 %v1339, %v1415
      %v1472 = vadd.f32 %v1340, %v1418
      %v1473 = vadd.f32 %v1341, %v1423
      %v1474 = vadd.f32 %v1342, %v1426
      %v1475 = vadd.f32 %v1343, %v1431
      %v1476 = vadd.f32 %v1344, %v1434
      %v1477 = vadd.f32 %v1345, %v1439
      %v1478 = vadd.f32 %v1346, %v1442
      %v1479 = vadd.f32 %v1347, %v1447
      %v1480 = vadd.f32 %v1348, %v1450
      %v1481 = vadd.f32 %v1349, %v1455
      %v1482 = vadd.f32 %v1350, %v1458
      %v1483 = vadd.f32 %v1351, %v1463
      %v1484 = vadd.f32 %v1352, %v1466
      %v1487 = vrot.slane %v695, 1
      %v1488 = vrot.slane %v705, 1
      %v1489 = vsel %vm1065, %v1487, %v1488
      %s1490 = scalar_lea.vmem %s5, 10
      %v1491 = vld [vmem:[%s1490] sm:$0x3]
      %v1493 = vsel %vm807, %v1489, 0
      %v1496 = vsel %vm832, %v1491, 0
      %1498 = vmatprep.subr.bf16.mxu0 0
      %1499 = vmatpush1.bf16.msra.mxu0 %v1496
      %1500 = vmatprep.subr.bf16.mxu0 0
      %1501 = vmatpush1.bf16.msra.mxu0 0
      %1502 = vmatprep.subr.bf16.mxu0 0
      %1503 = vmatpush1.bf16.msra.mxu0 0
      %1504 = vmatprep.subr.bf16.mxu0 0
      %1505 = vmatpush1.bf16.msra.mxu0 0
      %1506 = vmatprep.subr.bf16.mxu0 0
      %1507 = vmatpush1.bf16.msra.mxu0 0
      %1508 = vmatprep.subr.bf16.mxu0 0
      %1509 = vmatpush1.bf16.msra.mxu0 0
      %1510 = vmatprep.subr.bf16.mxu0 0
      %1511 = vmatpush1.bf16.msra.mxu0 0
      %1512 = vmatprep.subr.bf16.mxu0 0
      %1513 = vmatpush1.bf16.msra.mxu0 0
      %1514 = vmatprep.subr.bf16.mxu0 0
      %1515 = vmatpush1.bf16.msra.mxu0 0
      %1516 = vmatprep.subr.bf16.mxu0 0
      %1517 = vmatpush1.bf16.msra.mxu0 0
      %1518 = vmatprep.subr.bf16.mxu0 0
      %1519 = vmatpush1.bf16.msra.mxu0 0
      %1520 = vmatprep.subr.bf16.mxu0 0
      %1521 = vmatpush1.bf16.msra.mxu0 0
      %1522 = vmatprep.subr.bf16.mxu0 0
      %1523 = vmatpush1.bf16.msra.mxu0 0
      %1524 = vmatprep.subr.bf16.mxu0 0
      %1525 = vmatpush1.bf16.msra.mxu0 0
      %1526 = vmatprep.subr.bf16.mxu0 0
      %1527 = vmatpush1.bf16.msra.mxu0 0
      %1528 = vmatprep.subr.bf16.mxu0 0
      %1529 = vmatpush1.bf16.msra.mxu0 0
      %1530 = vmatprep.mubr.bf16.mxu0 0
      %1531 = vmatmul.mubr.bf16.gmra.mrb[0].mxu0 %v1096
      %v1532 = vpop.f32.mrb[0].mxu0
      %v1533 = vadd.f32 0.0, %v1532
      %v1534 = vpop.f32.mrb[0].mxu0
      %v1535 = vpop.f32.mrb[0].mxu0
      %v1536 = vadd.f32 0.0, %v1535
      %v1537 = vpop.f32.mrb[0].mxu0
      %1538 = vmatprep.mubr.bf16.mxu0 0
      %1539 = vmatmul.mubr.bf16.gmra.mrb[0].mxu0 %v1099
      %v1540 = vpop.f32.mrb[0].mxu0
      %v1541 = vadd.f32 0.0, %v1540
      %v1542 = vpop.f32.mrb[0].mxu0
      %v1543 = vpop.f32.mrb[0].mxu0
      %v1544 = vadd.f32 0.0, %v1543
      %v1545 = vpop.f32.mrb[0].mxu0
      %1546 = vmatprep.mubr.bf16.mxu0 0
      %1547 = vmatmul.mubr.bf16.gmra.mrb[0].mxu0 %v1102
      %v1548 = vpop.f32.mrb[0].mxu0
      %v1549 = vadd.f32 0.0, %v1548
      %v1550 = vpop.f32.mrb[0].mxu0
      %v1551 = vpop.f32.mrb[0].mxu0
      %v1552 = vadd.f32 0.0, %v1551
      %v1553 = vpop.f32.mrb[0].mxu0
      %1554 = vmatprep.mubr.bf16.mxu0 0
      %1555 = vmatmul.mubr.bf16.gmra.mrb[0].mxu0 %v1105
      %v1556 = vpop.f32.mrb[0].mxu0
      %v1557 = vadd.f32 0.0, %v1556
      %v1558 = vpop.f32.mrb[0].mxu0
      %v1559 = vpop.f32.mrb[0].mxu0
      %v1560 = vadd.f32 0.0, %v1559
      %v1561 = vpop.f32.mrb[0].mxu0
      %1562 = vmatprep.mubr.bf16.mxu0 0
      %1563 = vmatmul.mubr.bf16.gmra.mrb[0].mxu0 %v1108
      %v1564 = vpop.f32.mrb[0].mxu0
      %v1565 = vadd.f32 0.0, %v1564
      %v1566 = vpop.f32.mrb[0].mxu0
      %v1567 = vpop.f32.mrb[0].mxu0
      %v1568 = vadd.f32 0.0, %v1567
      %v1569 = vpop.f32.mrb[0].mxu0
      %1570 = vmatprep.mubr.bf16.mxu0 0
      %1571 = vmatmul.mubr.bf16.gmra.mrb[0].mxu0 %v1111
      %v1572 = vpop.f32.mrb[0].mxu0
      %v1573 = vadd.f32 0.0, %v1572
      %v1574 = vpop.f32.mrb[0].mxu0
      %v1575 = vpop.f32.mrb[0].mxu0
      %v1576 = vadd.f32 0.0, %v1575
      %v1577 = vpop.f32.mrb[0].mxu0
      %1578 = vmatprep.mubr.bf16.mxu0 0
      %1579 = vmatmul.mubr.bf16.gmra.mrb[0].mxu0 %v1114
      %v1580 = vpop.f32.mrb[0].mxu0
      %v1581 = vadd.f32 0.0, %v1580
      %v1582 = vpop.f32.mrb[0].mxu0
      %v1583 = vpop.f32.mrb[0].mxu0
      %v1584 = vadd.f32 0.0, %v1583
      %v1585 = vpop.f32.mrb[0].mxu0
      %1586 = vmatprep.mubr.bf16.mxu0 0
      %1587 = vmatmul.mubr.bf16.gmra.mrb[0].mxu0 %v1493
      %v1588 = vpop.f32.mrb[0].mxu0
      %v1589 = vadd.f32 0.0, %v1588
      %v1590 = vpop.f32.mrb[0].mxu0
      %v1591 = vpop.f32.mrb[0].mxu0
      %v1592 = vadd.f32 0.0, %v1591
      %v1593 = vpop.f32.mrb[0].mxu0
      %1594 = vdwg.mxu0
      %v1595 = vadd.f32 %v1469, %v1533
      %v1596 = vadd.f32 %v1470, %v1536
      %v1597 = vadd.f32 %v1471, %v1541
      %v1598 = vadd.f32 %v1472, %v1544
      %v1599 = vadd.f32 %v1473, %v1549
      %v1600 = vadd.f32 %v1474, %v1552
      %v1601 = vadd.f32 %v1475, %v1557
      %v1602 = vadd.f32 %v1476, %v1560
      %v1603 = vadd.f32 %v1477, %v1565
      %v1604 = vadd.f32 %v1478, %v1568
      %v1605 = vadd.f32 %v1479, %v1573
      %v1606 = vadd.f32 %v1480, %v1576
      %v1607 = vadd.f32 %v1481, %v1581
      %v1608 = vadd.f32 %v1482, %v1584
      %v1609 = vadd.f32 %v1483, %v1589
      %v1610 = vadd.f32 %v1484, %v1592
      %s1611 = scalar_lea.vmem %s5, 12
      %v1612 = vld [vmem:[%s1611] sm:$0x3]
      %v1614 = vsel %vm807, %v696, 0
      %v1617 = vsel %vm832, %v1612, 0
      %1619 = vmatprep.subr.bf16.mxu0 0
      %1620 = vmatpush1.bf16.msra.mxu0 %v1617
      %1621 = vmatprep.subr.bf16.mxu0 0
      %1622 = vmatpush1.bf16.msra.mxu0 0
      %1623 = vmatprep.subr.bf16.mxu0 0
      %1624 = vmatpush1.bf16.msra.mxu0 0
      %1625 = vmatprep.subr.bf16.mxu0 0
      %1626 = vmatpush1.bf16.msra.mxu0 0
      %1627 = vmatprep.subr.bf16.mxu0 0
      %1628 = vmatpush1.bf16.msra.mxu0 0
      %1629 = vmatprep.subr.bf16.mxu0 0
      %1630 = vmatpush1.bf16.msra.mxu0 0
      %1631 = vmatprep.subr.bf16.mxu0 0
      %1632 = vmatpush1.bf16.msra.mxu0 0
      %1633 = vmatprep.subr.bf16.mxu0 0
      %1634 = vmatpush1.bf16.msra.mxu0 0
      %1635 = vmatprep.subr.bf16.mxu0 0
      %1636 = vmatpush1.bf16.msra.mxu0 0
      %1637 = vmatprep.subr.bf16.mxu0 0
      %1638 = vmatpush1.bf16.msra.mxu0 0
      %1639 = vmatprep.subr.bf16.mxu0 0
      %1640 = vmatpush1.bf16.msra.mxu0 0
      %1641 = vmatprep.subr.bf16.mxu0 0
      %1642 = vmatpush1.bf16.msra.mxu0 0
      %1643 = vmatprep.subr.bf16.mxu0 0
      %1644 = vmatpush1.bf16.msra.mxu0 0
      %1645 = vmatprep.subr.bf16.mxu0 0
      %1646 = vmatpush1.bf16.msra.mxu0 0
      %1647 = vmatprep.subr.bf16.mxu0 0
      %1648 = vmatpush1.bf16.msra.mxu0 0
      %1649 = vmatprep.subr.bf16.mxu0 0
      %1650 = vmatpush1.bf16.msra.mxu0 0
      %1651 = vmatprep.mubr.bf16.mxu0 0
      %1652 = vmatmul.mubr.bf16.gmra.mrb[0].mxu0 %v937
      %v1653 = vpop.f32.mrb[0].mxu0
      %v1654 = vadd.f32 0.0, %v1653
      %v1655 = vpop.f32.mrb[0].mxu0
      %v1656 = vpop.f32.mrb[0].mxu0
      %v1657 = vadd.f32 0.0, %v1656
      %v1658 = vpop.f32.mrb[0].mxu0
      %1659 = vmatprep.mubr.bf16.mxu0 0
      %1660 = vmatmul.mubr.bf16.gmra.mrb[0].mxu0 %v939
      %v1661 = vpop.f32.mrb[0].mxu0
      %v1662 = vadd.f32 0.0, %v1661
      %v1663 = vpop.f32.mrb[0].mxu0
      %v1664 = vpop.f32.mrb[0].mxu0
      %v1665 = vadd.f32 0.0, %v1664
      %v1666 = vpop.f32.mrb[0].mxu0
      %1667 = vmatprep.mubr.bf16.mxu0 0
      %1668 = vmatmul.mubr.bf16.gmra.mrb[0].mxu0 %v941
      %v1669 = vpop.f32.mrb[0].mxu0
      %v1670 = vadd.f32 0.0, %v1669
      %v1671 = vpop.f32.mrb[0].mxu0
      %v1672 = vpop.f32.mrb[0].mxu0
      %v1673 = vadd.f32 0.0, %v1672
      %v1674 = vpop.f32.mrb[0].mxu0
      %1675 = vmatprep.mubr.bf16.mxu0 0
      %1676 = vmatmul.mubr.bf16.gmra.mrb[0].mxu0 %v943
      %v1677 = vpop.f32.mrb[0].mxu0
      %v1678 = vadd.f32 0.0, %v1677
      %v1679 = vpop.f32.mrb[0].mxu0
      %v1680 = vpop.f32.mrb[0].mxu0
      %v1681 = vadd.f32 0.0, %v1680
      %v1682 = vpop.f32.mrb[0].mxu0
      %1683 = vmatprep.mubr.bf16.mxu0 0
      %1684 = vmatmul.mubr.bf16.gmra.mrb[0].mxu0 %v945
      %v1685 = vpop.f32.mrb[0].mxu0
      %v1686 = vadd.f32 0.0, %v1685
      %v1687 = vpop.f32.mrb[0].mxu0
      %v1688 = vpop.f32.mrb[0].mxu0
      %v1689 = vadd.f32 0.0, %v1688
      %v1690 = vpop.f32.mrb[0].mxu0
      %1691 = vmatprep.mubr.bf16.mxu0 0
      %1692 = vmatmul.mubr.bf16.gmra.mrb[0].mxu0 %v947
      %v1693 = vpop.f32.mrb[0].mxu0
      %v1694 = vadd.f32 0.0, %v1693
      %v1695 = vpop.f32.mrb[0].mxu0
      %v1696 = vpop.f32.mrb[0].mxu0
      %v1697 = vadd.f32 0.0, %v1696
      %v1698 = vpop.f32.mrb[0].mxu0
      %1699 = vmatprep.mubr.bf16.mxu0 0
      %1700 = vmatmul.mubr.bf16.gmra.mrb[0].mxu0 %v1235
      %v1701 = vpop.f32.mrb[0].mxu0
      %v1702 = vadd.f32 0.0, %v1701
      %v1703 = vpop.f32.mrb[0].mxu0
      %v1704 = vpop.f32.mrb[0].mxu0
      %v1705 = vadd.f32 0.0, %v1704
      %v1706 = vpop.f32.mrb[0].mxu0
      %1707 = vmatprep.mubr.bf16.mxu0 0
      %1708 = vmatmul.mubr.bf16.gmra.mrb[0].mxu0 %v1614
      %v1709 = vpop.f32.mrb[0].mxu0
      %v1710 = vadd.f32 0.0, %v1709
      %v1711 = vpop.f32.mrb[0].mxu0
      %v1712 = vpop.f32.mrb[0].mxu0
      %v1713 = vadd.f32 0.0, %v1712
      %v1714 = vpop.f32.mrb[0].mxu0
      %1715 = vdwg.mxu0
      %v1716 = vadd.f32 %v1595, %v1654
      %v1717 = vadd.f32 %v1596, %v1657
      %v1718 = vadd.f32 %v1597, %v1662
      %v1719 = vadd.f32 %v1598, %v1665
      %v1720 = vadd.f32 %v1599, %v1670
      %v1721 = vadd.f32 %v1600, %v1673
      %v1722 = vadd.f32 %v1601, %v1678
      %v1723 = vadd.f32 %v1602, %v1681
      %v1724 = vadd.f32 %v1603, %v1686
      %v1725 = vadd.f32 %v1604, %v1689
      %v1726 = vadd.f32 %v1605, %v1694
      %v1727 = vadd.f32 %v1606, %v1697
      %v1728 = vadd.f32 %v1607, %v1702
      %v1729 = vadd.f32 %v1608, %v1705
      %v1730 = vadd.f32 %v1609, %v1710
      %v1731 = vadd.f32 %v1610, %v1713
      %v1732 = vshrl.u32 %v696, 16
      %v1734 = vshll.u32 %v696, 16
      %v1736 = vrot.slane %v1734, 1
      %v1737 = vor.u32 %v1732, %v1736
      %v1739 = vshll.u32 %v706, 16
      %v1741 = vrot.slane %v1739, 1
      %v1742 = vsel %vm708, %v1737, %v1741
      %s1743 = scalar_lea.vmem %s5, 14
      %v1744 = vld [vmem:[%s1743] sm:$0x3]
      %v1746 = vsel %vm807, %v1742, 0
      %v1749 = vsel %vm832, %v1744, 0
      %1751 = vmatprep.subr.bf16.mxu0 0
      %1752 = vmatpush1.bf16.msra.mxu0 %v1749
      %1753 = vmatprep.subr.bf16.mxu0 0
      %1754 = vmatpush1.bf16.msra.mxu0 0
      %1755 = vmatprep.subr.bf16.mxu0 0
      %1756 = vmatpush1.bf16.msra.mxu0 0
      %1757 = vmatprep.subr.bf16.mxu0 0
      %1758 = vmatpush1.bf16.msra.mxu0 0
      %1759 = vmatprep.subr.bf16.mxu0 0
      %1760 = vmatpush1.bf16.msra.mxu0 0
      %1761 = vmatprep.subr.bf16.mxu0 0
      %1762 = vmatpush1.bf16.msra.mxu0 0
      %1763 = vmatprep.subr.bf16.mxu0 0
      %1764 = vmatpush1.bf16.msra.mxu0 0
      %1765 = vmatprep.subr.bf16.mxu0 0
      %1766 = vmatpush1.bf16.msra.mxu0 0
      %1767 = vmatprep.subr.bf16.mxu0 0
      %1768 = vmatpush1.bf16.msra.mxu0 0
      %1769 = vmatprep.subr.bf16.mxu0 0
      %1770 = vmatpush1.bf16.msra.mxu0 0
      %1771 = vmatprep.subr.bf16.mxu0 0
      %1772 = vmatpush1.bf16.msra.mxu0 0
      %1773 = vmatprep.subr.bf16.mxu0 0
      %1774 = vmatpush1.bf16.msra.mxu0 0
      %1775 = vmatprep.subr.bf16.mxu0 0
      %1776 = vmatpush1.bf16.msra.mxu0 0
      %1777 = vmatprep.subr.bf16.mxu0 0
      %1778 = vmatpush1.bf16.msra.mxu0 0
      %1779 = vmatprep.subr.bf16.mxu0 0
      %1780 = vmatpush1.bf16.msra.mxu0 0
      %1781 = vmatprep.subr.bf16.mxu0 0
      %1782 = vmatpush1.bf16.msra.mxu0 0
      %1783 = vmatprep.mubr.bf16.mxu0 0
      %1784 = vmatmul.mubr.bf16.gmra.mrb[0].mxu0 %v815
      %v1785 = vpop.f32.mrb[0].mxu0
      %v1786 = vadd.f32 0.0, %v1785
      %v1787 = vpop.f32.mrb[0].mxu0
      %v1788 = vpop.f32.mrb[0].mxu0
      %v1789 = vadd.f32 0.0, %v1788
      %v1790 = vpop.f32.mrb[0].mxu0
      %1791 = vmatprep.mubr.bf16.mxu0 0
      %1792 = vmatmul.mubr.bf16.gmra.mrb[0].mxu0 %v818
      %v1793 = vpop.f32.mrb[0].mxu0
      %v1794 = vadd.f32 0.0, %v1793
      %v1795 = vpop.f32.mrb[0].mxu0
      %v1796 = vpop.f32.mrb[0].mxu0
      %v1797 = vadd.f32 0.0, %v1796
      %v1798 = vpop.f32.mrb[0].mxu0
      %1799 = vmatprep.mubr.bf16.mxu0 0
      %1800 = vmatmul.mubr.bf16.gmra.mrb[0].mxu0 %v821
      %v1801 = vpop.f32.mrb[0].mxu0
      %v1802 = vadd.f32 0.0, %v1801
      %v1803 = vpop.f32.mrb[0].mxu0
      %v1804 = vpop.f32.mrb[0].mxu0
      %v1805 = vadd.f32 0.0, %v1804
      %v1806 = vpop.f32.mrb[0].mxu0
      %1807 = vmatprep.mubr.bf16.mxu0 0
      %1808 = vmatmul.mubr.bf16.gmra.mrb[0].mxu0 %v824
      %v1809 = vpop.f32.mrb[0].mxu0
      %v1810 = vadd.f32 0.0, %v1809
      %v1811 = vpop.f32.mrb[0].mxu0
      %v1812 = vpop.f32.mrb[0].mxu0
      %v1813 = vadd.f32 0.0, %v1812
      %v1814 = vpop.f32.mrb[0].mxu0
      %1815 = vmatprep.mubr.bf16.mxu0 0
      %1816 = vmatmul.mubr.bf16.gmra.mrb[0].mxu0 %v827
      %v1817 = vpop.f32.mrb[0].mxu0
      %v1818 = vadd.f32 0.0, %v1817
      %v1819 = vpop.f32.mrb[0].mxu0
      %v1820 = vpop.f32.mrb[0].mxu0
      %v1821 = vadd.f32 0.0, %v1820
      %v1822 = vpop.f32.mrb[0].mxu0
      %1823 = vmatprep.mubr.bf16.mxu0 0
      %1824 = vmatmul.mubr.bf16.gmra.mrb[0].mxu0 %v830
      %v1825 = vpop.f32.mrb[0].mxu0
      %v1826 = vadd.f32 0.0, %v1825
      %v1827 = vpop.f32.mrb[0].mxu0
      %v1828 = vpop.f32.mrb[0].mxu0
      %v1829 = vadd.f32 0.0, %v1828
      %v1830 = vpop.f32.mrb[0].mxu0
      %1831 = vmatprep.mubr.bf16.mxu0 0
      %1832 = vmatmul.mubr.bf16.gmra.mrb[0].mxu0 %v1367
      %v1833 = vpop.f32.mrb[0].mxu0
      %v1834 = vadd.f32 0.0, %v1833
      %v1835 = vpop.f32.mrb[0].mxu0
      %v1836 = vpop.f32.mrb[0].mxu0
      %v1837 = vadd.f32 0.0, %v1836
      %v1838 = vpop.f32.mrb[0].mxu0
      %1839 = vmatprep.mubr.bf16.mxu0 0
      %1840 = vmatmul.mubr.bf16.gmra.mrb[0].mxu0 %v1746
      %v1841 = vpop.f32.mrb[0].mxu0
      %v1842 = vadd.f32 0.0, %v1841
      %v1843 = vpop.f32.mrb[0].mxu0
      %v1844 = vpop.f32.mrb[0].mxu0
      %v1845 = vadd.f32 0.0, %v1844
      %v1846 = vpop.f32.mrb[0].mxu0
      %1847 = vdwg.mxu0
      %v1848 = vadd.f32 %v1716, %v1786
      %v1849 = vadd.f32 %v1717, %v1789
      %v1850 = vadd.f32 %v1718, %v1794
      %v1851 = vadd.f32 %v1719, %v1797
      %v1852 = vadd.f32 %v1720, %v1802
      %v1853 = vadd.f32 %v1721, %v1805
      %v1854 = vadd.f32 %v1722, %v1810
      %v1855 = vadd.f32 %v1723, %v1813
      %v1856 = vadd.f32 %v1724, %v1818
      %v1857 = vadd.f32 %v1725, %v1821
      %v1858 = vadd.f32 %v1726, %v1826
      %v1859 = vadd.f32 %v1727, %v1829
      %v1860 = vadd.f32 %v1728, %v1834
      %v1861 = vadd.f32 %v1729, %v1837
      %v1862 = vadd.f32 %v1730, %v1842
      %v1863 = vadd.f32 %v1731, %v1845
      %v1866 = vrot.slane %v696, 1
      %v1867 = vrot.slane %v706, 1
      %v1868 = vsel %vm1065, %v1866, %v1867
      %s1869 = scalar_lea.vmem %s5, 16
      %v1870 = vld [vmem:[%s1869] sm:$0x3]
      %v1872 = vsel %vm807, %v1868, 0
      %v1875 = vsel %vm832, %v1870, 0
      %1877 = vmatprep.subr.bf16.mxu0 0
      %1878 = vmatpush1.bf16.msra.mxu0 %v1875
      %1879 = vmatprep.subr.bf16.mxu0 0
      %1880 = vmatpush1.bf16.msra.mxu0 0
      %1881 = vmatprep.subr.bf16.mxu0 0
      %1882 = vmatpush1.bf16.msra.mxu0 0
      %1883 = vmatprep.subr.bf16.mxu0 0
      %1884 = vmatpush1.bf16.msra.mxu0 0
      %1885 = vmatprep.subr.bf16.mxu0 0
      %1886 = vmatpush1.bf16.msra.mxu0 0
      %1887 = vmatprep.subr.bf16.mxu0 0
      %1888 = vmatpush1.bf16.msra.mxu0 0
      %1889 = vmatprep.subr.bf16.mxu0 0
      %1890 = vmatpush1.bf16.msra.mxu0 0
      %1891 = vmatprep.subr.bf16.mxu0 0
      %1892 = vmatpush1.bf16.msra.mxu0 0
      %1893 = vmatprep.subr.bf16.mxu0 0
      %1894 = vmatpush1.bf16.msra.mxu0 0
      %1895 = vmatprep.subr.bf16.mxu0 0
      %1896 = vmatpush1.bf16.msra.mxu0 0
      %1897 = vmatprep.subr.bf16.mxu0 0
      %1898 = vmatpush1.bf16.msra.mxu0 0
      %1899 = vmatprep.subr.bf16.mxu0 0
      %1900 = vmatpush1.bf16.msra.mxu0 0
      %1901 = vmatprep.subr.bf16.mxu0 0
      %1902 = vmatpush1.bf16.msra.mxu0 0
      %1903 = vmatprep.subr.bf16.mxu0 0
      %1904 = vmatpush1.bf16.msra.mxu0 0
      %1905 = vmatprep.subr.bf16.mxu0 0
      %1906 = vmatpush1.bf16.msra.mxu0 0
      %1907 = vmatprep.subr.bf16.mxu0 0
      %1908 = vmatpush1.bf16.msra.mxu0 0
      %1909 = vmatprep.mubr.bf16.mxu0 0
      %1910 = vmatmul.mubr.bf16.gmra.mrb[0].mxu0 %v1099
      %v1911 = vpop.f32.mrb[0].mxu0
      %v1912 = vadd.f32 0.0, %v1911
      %v1913 = vpop.f32.mrb[0].mxu0
      %v1914 = vpop.f32.mrb[0].mxu0
      %v1915 = vadd.f32 0.0, %v1914
      %v1916 = vpop.f32.mrb[0].mxu0
      %1917 = vmatprep.mubr.bf16.mxu0 0
      %1918 = vmatmul.mubr.bf16.gmra.mrb[0].mxu0 %v1102
      %v1919 = vpop.f32.mrb[0].mxu0
      %v1920 = vadd.f32 0.0, %v1919
      %v1921 = vpop.f32.mrb[0].mxu0
      %v1922 = vpop.f32.mrb[0].mxu0
      %v1923 = vadd.f32 0.0, %v1922
      %v1924 = vpop.f32.mrb[0].mxu0
      %1925 = vmatprep.mubr.bf16.mxu0 0
      %1926 = vmatmul.mubr.bf16.gmra.mrb[0].mxu0 %v1105
      %v1927 = vpop.f32.mrb[0].mxu0
      %v1928 = vadd.f32 0.0, %v1927
      %v1929 = vpop.f32.mrb[0].mxu0
      %v1930 = vpop.f32.mrb[0].mxu0
      %v1931 = vadd.f32 0.0, %v1930
      %v1932 = vpop.f32.mrb[0].mxu0
      %1933 = vmatprep.mubr.bf16.mxu0 0
      %1934 = vmatmul.mubr.bf16.gmra.mrb[0].mxu0 %v1108
      %v1935 = vpop.f32.mrb[0].mxu0
      %v1936 = vadd.f32 0.0, %v1935
      %v1937 = vpop.f32.mrb[0].mxu0
      %v1938 = vpop.f32.mrb[0].mxu0
      %v1939 = vadd.f32 0.0, %v1938
      %v1940 = vpop.f32.mrb[0].mxu0
      %1941 = vmatprep.mubr.bf16.mxu0 0
      %1942 = vmatmul.mubr.bf16.gmra.mrb[0].mxu0 %v1111
      %v1943 = vpop.f32.mrb[0].mxu0
      %v1944 = vadd.f32 0.0, %v1943
      %v1945 = vpop.f32.mrb[0].mxu0
      %v1946 = vpop.f32.mrb[0].mxu0
      %v1947 = vadd.f32 0.0, %v1946
      %v1948 = vpop.f32.mrb[0].mxu0
      %1949 = vmatprep.mubr.bf16.mxu0 0
      %1950 = vmatmul.mubr.bf16.gmra.mrb[0].mxu0 %v1114
      %v1951 = vpop.f32.mrb[0].mxu0
      %v1952 = vadd.f32 0.0, %v1951
      %v1953 = vpop.f32.mrb[0].mxu0
      %v1954 = vpop.f32.mrb[0].mxu0
      %v1955 = vadd.f32 0.0, %v1954
      %v1956 = vpop.f32.mrb[0].mxu0
      %1957 = vmatprep.mubr.bf16.mxu0 0
      %1958 = vmatmul.mubr.bf16.gmra.mrb[0].mxu0 %v1493
      %v1959 = vpop.f32.mrb[0].mxu0
      %v1960 = vadd.f32 0.0, %v1959
      %v1961 = vpop.f32.mrb[0].mxu0
      %v1962 = vpop.f32.mrb[0].mxu0
      %v1963 = vadd.f32 0.0, %v1962
      %v1964 = vpop.f32.mrb[0].mxu0
      %1965 = vmatprep.mubr.bf16.mxu0 0
      %1966 = vmatmul.mubr.bf16.gmra.mrb[0].mxu0 %v1872
      %v1967 = vpop.f32.mrb[0].mxu0
      %v1968 = vadd.f32 0.0, %v1967
      %v1969 = vpop.f32.mrb[0].mxu0
      %v1970 = vpop.f32.mrb[0].mxu0
      %v1971 = vadd.f32 0.0, %v1970
      %v1972 = vpop.f32.mrb[0].mxu0
      %1973 = vdwg.mxu0
      %v1974 = vadd.f32 %v1848, %v1912
      %v1975 = vadd.f32 %v1849, %v1915
      %v1976 = vadd.f32 %v1850, %v1920
      %v1977 = vadd.f32 %v1851, %v1923
      %v1978 = vadd.f32 %v1852, %v1928
      %v1979 = vadd.f32 %v1853, %v1931
      %v1980 = vadd.f32 %v1854, %v1936
      %v1981 = vadd.f32 %v1855, %v1939
      %v1982 = vadd.f32 %v1856, %v1944
      %v1983 = vadd.f32 %v1857, %v1947
      %v1984 = vadd.f32 %v1858, %v1952
      %v1985 = vadd.f32 %v1859, %v1955
      %v1986 = vadd.f32 %v1860, %v1960
      %v1987 = vadd.f32 %v1861, %v1963
      %v1988 = vadd.f32 %v1862, %v1968
      %v1989 = vadd.f32 %v1863, %v1971
      %v1990 = vpack.c.bf16 %v1975, %v1974
      %v1991 = vpack.c.bf16 %v1977, %v1976
      %v1992 = vpack.c.bf16 %v1979, %v1978
      %v1993 = vpack.c.bf16 %v1981, %v1980
      %v1994 = vpack.c.bf16 %v1983, %v1982
      %v1995 = vpack.c.bf16 %v1985, %v1984
      %v1996 = vpack.c.bf16 %v1987, %v1986
      %v1997 = vpack.c.bf16 %v1989, %v1988
      %v2006 = vunpack.c.l.b16 %v1990
      %v2007 = vunpack.c.h.b16 %v1990
      %v2008 = vunpack.c.l.b16 %v1991
      %v2009 = vunpack.c.h.b16 %v1991
      %v2010 = vunpack.c.l.b16 %v1992
      %v2011 = vunpack.c.h.b16 %v1992
      %v2012 = vunpack.c.l.b16 %v1993
      %v2013 = vunpack.c.h.b16 %v1993
      %v2014 = vunpack.c.l.b16 %v1994
      %v2015 = vunpack.c.h.b16 %v1994
      %v2016 = vunpack.c.l.b16 %v1995
      %v2017 = vunpack.c.h.b16 %v1995
      %v2018 = vunpack.c.l.b16 %v1996
      %v2019 = vunpack.c.h.b16 %v1996
      %v2020 = vunpack.c.l.b16 %v1997
      %v2021 = vunpack.c.h.b16 %v1997
      %v2022 = vpack.c.b16 %v2006, %v2006
      %v2023 = vpack.c.b16 %v2007, %v2007
      %v2024 = vpack.c.b16 %v2008, %v2008
      %v2025 = vpack.c.b16 %v2009, %v2009
      %v2026 = vpack.c.b16 %v2010, %v2010
      %v2027 = vpack.c.b16 %v2011, %v2011
      %v2028 = vpack.c.b16 %v2012, %v2012
      %v2029 = vpack.c.b16 %v2013, %v2013
      %v2030 = vpack.c.b16 %v2014, %v2014
      %v2031 = vpack.c.b16 %v2015, %v2015
      %v2032 = vpack.c.b16 %v2016, %v2016
      %v2033 = vpack.c.b16 %v2017, %v2017
      %v2034 = vpack.c.b16 %v2018, %v2018
      %v2035 = vpack.c.b16 %v2019, %v2019
      %v2036 = vpack.c.b16 %v2020, %v2020
      %v2037 = vpack.c.b16 %v2021, %v2021
      %2054 = vst [vmem:[%s495] sm:$0xf] %v2022
      %2055 = vst [vmem:[%s495 + $0x4] sm:$0xf] %v2023
      %2056 = vst [vmem:[%s495 + $0x8] sm:$0xf] %v2024
      %2057 = vst [vmem:[%s495 + $0xc] sm:$0xf] %v2025
      %2058 = vst [vmem:[%s495 + $0x10] sm:$0xf] %v2026
      %2059 = vst [vmem:[%s495 + $0x14] sm:$0xf] %v2027
      %2060 = vst [vmem:[%s495 + $0x18] sm:$0xf] %v2028
      %2061 = vst [vmem:[%s495 + $0x1c] sm:$0xf] %v2029
      %2062 = vst [vmem:[%s495 + $0x20] sm:$0xf] %v2030
      %2063 = vst [vmem:[%s495 + $0x24] sm:$0xf] %v2031
      %2064 = vst [vmem:[%s495 + $0x28] sm:$0xf] %v2032
      %2065 = vst [vmem:[%s495 + $0x2c] sm:$0xf] %v2033
      %2066 = vst [vmem:[%s495 + $0x30] sm:$0xf] %v2034
      %2067 = vst [vmem:[%s495 + $0x34] sm:$0xf] %v2035
      %2068 = vst [vmem:[%s495 + $0x38] sm:$0xf] %v2036
      %2069 = vst [vmem:[%s495 + $0x3c] sm:$0xf] %v2037
      %v2070 = vadd.f32 %v1974, %v1975
      %v2071 = vadd.f32 %v2070, %v1976
      %v2072 = vadd.f32 %v2071, %v1977
      %v2073 = vadd.f32 %v2072, %v1978
      %v2074 = vadd.f32 %v2073, %v1979
      %v2075 = vadd.f32 %v2074, %v1980
      %v2076 = vadd.f32 %v2075, %v1981
      %v2077 = vadd.f32 %v2076, %v1982
      %v2078 = vadd.f32 %v2077, %v1983
      %v2079 = vadd.f32 %v2078, %v1984
      %v2080 = vadd.f32 %v2079, %v1985
      %v2081 = vadd.f32 %v2080, %v1986
      %v2082 = vadd.f32 %v2081, %v1987
      %v2083 = vadd.f32 %v2082, %v1988
      %v2084 = vadd.f32 %v2083, %v1989
      %v2085 = vrot.slane %v2084, 4
      %v2086 = vadd.f32 %v2084, %v2085
      %v2087 = vrot.slane %v2086, 2
      %v2088 = vadd.f32 %v2086, %v2087
      %v2089 = vrot.slane %v2088, 1
      %v2090 = vadd.f32 %v2088, %v2089
      %2091 = vst [vmem:[%s501] sm:$0x1] %v2090
      %v2092 = vmul.f32 %v1974, %v1974
      %v2093 = vmul.f32 %v1975, %v1975
      %v2094 = vmul.f32 %v1976, %v1976
      %v2095 = vmul.f32 %v1977, %v1977
      %v2096 = vmul.f32 %v1978, %v1978
      %v2097 = vmul.f32 %v1979, %v1979
      %v2098 = vmul.f32 %v1980, %v1980
      %v2099 = vmul.f32 %v1981, %v1981
      %v2100 = vmul.f32 %v1982, %v1982
      %v2101 = vmul.f32 %v1983, %v1983
      %v2102 = vmul.f32 %v1984, %v1984
      %v2103 = vmul.f32 %v1985, %v1985
      %v2104 = vmul.f32 %v1986, %v1986
      %v2105 = vmul.f32 %v1987, %v1987
      %v2106 = vmul.f32 %v1988, %v1988
      %v2107 = vmul.f32 %v1989, %v1989
      %v2108 = vadd.f32 %v2092, %v2093
      %v2109 = vadd.f32 %v2108, %v2094
      %v2110 = vadd.f32 %v2109, %v2095
      %v2111 = vadd.f32 %v2110, %v2096
      %v2112 = vadd.f32 %v2111, %v2097
      %v2113 = vadd.f32 %v2112, %v2098
      %v2114 = vadd.f32 %v2113, %v2099
      %v2115 = vadd.f32 %v2114, %v2100
      %v2116 = vadd.f32 %v2115, %v2101
      %v2117 = vadd.f32 %v2116, %v2102
      %v2118 = vadd.f32 %v2117, %v2103
      %v2119 = vadd.f32 %v2118, %v2104
      %v2120 = vadd.f32 %v2119, %v2105
      %v2121 = vadd.f32 %v2120, %v2106
      %v2122 = vadd.f32 %v2121, %v2107
      %v2123 = vrot.slane %v2122, 4
      %v2124 = vadd.f32 %v2122, %v2123
      %v2125 = vrot.slane %v2124, 2
      %v2126 = vadd.f32 %v2124, %v2125
      %v2127 = vrot.slane %v2126, 1
      %v2128 = vadd.f32 %v2126, %v2127
      %2129 = vst [vmem:[%s508] sm:$0x1] %v2128
      %s2130 = smul.u32 8, %s25
      %p2131 = scmp.lt.s32.totalorder %s24, 1
      %s2132 = scalar_select %p2131, %s24, 1
      %p2133 = scmp.lt.s32.totalorder %s2130, 15
      %s2134 = scalar_select %p2133, %s2130, 15
      %s2135 = smul.addr %s2134, 2
      %s2136 = smul.addr %s2132, 32
      %s2137 = sadd.s32 %s2135, %s2136
      %s2138 = smul.addr %s2137, 4
      %s2139 = scalar_lea.vmem %s6, %s2138
      %s2140 = smul.u32 %s24, 2
      %s2141 = sadd.s32 %s2140, %s25
      %p2142 = scmp.lt.s32.totalorder %s2141, 3
      %s2143 = scalar_select %p2142, %s2141, 3
      %s2144 = scalar_lea.vmem %s7, %s2143
      %s2145 = smul.u32 %s24, 2
      %s2146 = sadd.s32 %s2145, %s25
      %p2147 = scmp.lt.s32.totalorder %s2146, 3
      %s2148 = scalar_select %p2147, %s2146, 3
      %s2149 = scalar_lea.vmem %s8, %s2148
      // Predicated region
      $region45: #{forward.3} parent=43 // pred_check
        %p2150 = pneg %p215
      $region46: #{forward.3} parent=43 // pred_check_branch
        %2152 = sbr.rel (%p2150) target = $region48
      $region47: #{forward.3} parent=43 // pred_region
        %s2153 = smul.u32 8, %s25
      $region48: #{forward.3} parent=43 // pred_fallthru
        _
      // Predicated region
      $region49: #{forward.3} parent=43 // pred_check
        %p2154 = pneg %p245
      $region50: #{forward.3} parent=43 // pred_check_branch
        %2156 = sbr.rel (%p2154) target = $region52
      $region51: #{forward.3} parent=43 // pred_region
        %s2157 = smul.u32 %s24, 2
        %s2158 = sadd.s32 %s2157, %s25
      $region52: #{forward.3} parent=43 // pred_fallthru
        _
      // Predicated region
      $region53: #{forward.3} parent=43 // pred_check
        %p2159 = pneg %p275
      $region54: #{forward.3} parent=43 // pred_check_branch
        %2161 = sbr.rel (%p2159) target = $region56
      $region55: #{forward.3} parent=43 // pred_region
        %s2162 = smul.u32 %s24, 2
        %s2163 = sadd.s32 %s2162, %s25
      $region56: #{forward.3} parent=43 // pred_fallthru
        _
    $region44: #{forward.3} parent=5 // pred_fallthru
      _
    %p2164 = scmp.le.s32.totalorder 2, %s15
    // Predicated region
    $region57: #{forward.3} parent=5 // pred_check
      %p2165 = pneg %p2164
    $region58: #{forward.3} parent=5 // pred_check_branch
      %2167 = sbr.rel (%p2165) target = $region60
    $region59: #{forward.3} parent=5 // pred_region
      %s2168 = ssub.s32 %s15, 2
      // Predicated region
      $region61: #{forward.3} parent=59 // pred_check
        %p2169 = pneg %p221
      $region62: #{forward.3} parent=59 // pred_check_branch
        %2171 = sbr.rel (%p2169) target = $region64
      $region63: #{forward.3} parent=59 // pred_region
        %s2172 = smul.u32 8, %s27
        %p2173 = scmp.lt.s32.totalorder %s26, 1
        %s2174 = scalar_select %p2173, %s26, 1
        %p2175 = scmp.lt.s32.totalorder %s2172, 15
        %s2176 = scalar_select %p2175, %s2172, 15
        %s2177 = smul.addr %s2176, 2
        %s2178 = smul.addr %s2174, 32
        %s2179 = sadd.s32 %s2177, %s2178
        %s2180 = smul.addr %s2179, 4
        %s2181 = scalar_lea.vmem %s6, %s2180
      $region64: #{forward.3} parent=59 // pred_fallthru
        _
      // Predicated region
      $region65: #{forward.3} parent=59 // pred_check
        %p2182 = pneg %p251
      $region66: #{forward.3} parent=59 // pred_check_branch
        %2184 = sbr.rel (%p2182) target = $region68
      $region67: #{forward.3} parent=59 // pred_region
        %s2185 = smul.u32 %s26, 2
        %s2186 = sadd.s32 %s2185, %s27
        %p2187 = scmp.lt.s32.totalorder %s2186, 3
        %s2188 = scalar_select %p2187, %s2186, 3
        %s2189 = scalar_lea.vmem %s7, %s2188
      $region68: #{forward.3} parent=59 // pred_fallthru
        _
      // Predicated region
      $region69: #{forward.3} parent=59 // pred_check
        %p2190 = pneg %p281
      $region70: #{forward.3} parent=59 // pred_check_branch
        %2192 = sbr.rel (%p2190) target = $region72
      $region71: #{forward.3} parent=59 // pred_region
        %s2193 = smul.u32 %s26, 2
        %s2194 = sadd.s32 %s2193, %s27
        %p2195 = scmp.lt.s32.totalorder %s2194, 3
        %s2196 = scalar_select %p2195, %s2194, 3
        %s2197 = scalar_lea.vmem %s8, %s2196
      $region72: #{forward.3} parent=59 // pred_fallthru
        _
    $region60: #{forward.3} parent=5 // pred_fallthru
      _
  $region6: #{forward.3} parent=0 // loop_footer
    %s19 = sadd.s32 1, %s15
  $region7: #{forward.3} parent=0 // loop_footer_branch
    %14 = sbr.rel target = $region3
  $region8: #{forward.3} parent=0 // loop_exit
    _

// kernel: forward.4
$region0: #{forward.4}
  #allocation0 [shape = 'u32[]', space=smem, size = 0x4, offset = 0x4, fixed_abs, tag = 'smem constant byte address 0x4 - core index']
  #allocation1 [shape = 'u32[144,128]{1,0:T(1,128)}', space=vmem, size = 0x12000, scoped, tag = 'internal scratch']
  %s0 = inlined_call_operand.vmem [shape: bf16[2,16,16,128], index: 0, kind: input, shape index: {}, may-alias: {0,1,2}]
  %s1 = inlined_call_operand.vmem [shape: bf16[2,16,16,128], index: 1, kind: input, shape index: {}, may-alias: {0,1,2}]
  %s2 = inlined_call_operand.vmem [shape: bf16[2,16,16,128], index: 2, kind: input, shape index: {}, may-alias: {0,1,2}]
  %s3 = inlined_call_operand.vmem [shape: f32[1,128], index: 3, kind: input, shape index: {}]
  %s4 = inlined_call_operand.vmem [shape: f32[1,128], index: 4, kind: input, shape index: {}]
  %s5 = inlined_call_operand.vmem [shape: bf16[9,128,128], index: 5, kind: input, shape index: {}]
  %s6 = inlined_call_operand.vmem [shape: bf16[2,16,16,128], index: 6, kind: output, shape index: {0}]
  %s7 = inlined_call_operand.vmem [shape: f32[4,1,128], index: 7, kind: output, shape index: {1}]
  %s8 = inlined_call_operand.vmem [shape: f32[4,1,128], index: 8, kind: output, shape index: {2}]
  %9 = xla_tuple %s6, %s7, %s8
  %s10 = sld [smem:[#allocation0]]
  $region73: #{forward.4} parent=0
    _
  %s12 = ssub.s32 1, %s10
  %s13 = scalar_select 0, %s12, %s10
  loop: start=0, step=1, limit=6
  $region2: #{forward.4} parent=0 // loop_pre_header
    _
  $region3: #{forward.4} parent=0 // loop_header
    %s15 = sphi 0, %s19
    %p16 = scmp.ge.s32.totalorder %s15, 6
    %s22 = sphi 0, %s34
    %s23 = sphi 0, %s30
    %s24 = sphi 0, %s22
    %s25 = sphi 0, %s23
    %s26 = sphi 0, %s24
    %s27 = sphi 0, %s25
    %s47 = sphi 0, %s49
    %s50 = sphi 0, %s47
    %s51 = sphi 0, %s50
    %s67 = sphi 0, %s51
    %s75 = sphi 0, %s77
    %s78 = sphi 0, %s75
    %s79 = sphi 0, %s78
    %s95 = sphi 0, %s79
    %s111 = sphi 0, %s113
    %s114 = sphi 0, %s111
    %s115 = sphi 0, %s114
    %s131 = sphi 0, %s115
    %s135 = sphi 0, %s135
    %s137 = sphi 0, %s135
    %s138 = sphi 0, %s137
    %s152 = sphi 0, %s138
    %s156 = sphi 0, %s156
    %s158 = sphi 0, %s156
    %s159 = sphi 0, %s158
    %s173 = sphi 0, %s159
    %s177 = sphi 0, %s177
    %s179 = sphi 0, %s177
    %s180 = sphi 0, %s179
    %s194 = sphi 0, %s180
    %s202 = sphi 0, %s204
    %s205 = sphi 0, %s202
    %s206 = sphi 0, %s205
    %s222 = sphi 0, %s206
    %s232 = sphi 0, %s234
    %s235 = sphi 0, %s232
    %s236 = sphi 0, %s235
    %s252 = sphi 0, %s236
    %s262 = sphi 0, %s264
    %s265 = sphi 0, %s262
    %s266 = sphi 0, %s265
    %s282 = sphi 0, %s266
  $region4: #{forward.4} parent=0 // loop_header_branch
    %18 = sbr.rel (%p16) target = $region8
  $region5: #{forward.4} parent=0 // loop_body
    %s20 = ssub.s32 %s15, 1
    %s21 = ssub.s32 %s15, 2
    %s28 = sadd.s32 1, %s23
    %p29 = scmp.ge.s32.totalorder %s28, 2
    %s30 = scalar_select %p29, 0, %s28
    %s31 = sadd.s32 1, %s22
    %s32 = scalar_select %p29, %s31, %s22
    %p33 = scmp.ge.s32.totalorder %s32, 2
    %s34 = scalar_select %p33, 0, %s32
    %s35 = smul.u32 %s23, 8
    %s36 = ssub.s32 %s35, 1
    %p37 = scmp.gt.s32.totalorder %s36, 0
    %s38 = scalar_select %p37, %s36, 0
    %s39 = smul.u32 %s30, 8
    %s40 = ssub.s32 %s39, 1
    %p41 = scmp.gt.s32.totalorder %s40, 0
    %s42 = scalar_select %p41, %s40, 0
    %s43 = ssub.s32 %s22, %s34
    %s44 = ssub.s32 %s38, %s42
    %s45 = sor.u32 %s43, %s44
    %p46 = scmp.eq.s32.totalorder %s45, 0
    %s48 = sadd.s32 %s47, 1
    %s49 = scalar_select %p46, %s47, %s48
    %p52 = pneg %p46
    %p53 = scmp.eq.s32.totalorder %s15, 3
    %p54 = por %p52, %p53
    %p55 = scmp.ne.s32.totalorder %s47, %s50
    %p56 = scmp.eq.s32.totalorder %s15, 0
    %p57 = por %p55, %p56
    %p58 = scmp.ne.s32.totalorder %s47, %s50
    %p59 = scmp.eq.s32.totalorder %s20, 3
    %p60 = por %p58, %p59
    %p61 = scmp.ne.s32.totalorder %s50, %s51
    %p62 = scmp.eq.s32.totalorder %s20, 0
    %p63 = por %p61, %p62
    %p64 = scmp.ne.s32.totalorder %s50, %s51
    %p65 = scmp.eq.s32.totalorder %s21, 3
    %p66 = por %p64, %p65
    %p68 = scmp.ne.s32.totalorder %s51, %s67
    %p69 = scmp.eq.s32.totalorder %s21, 0
    %p70 = por %p68, %p69
    %s71 = ssub.s32 %s22, %s34
    %s72 = ssub.s32 %s23, %s30
    %s73 = sor.u32 %s71, %s72
    %p74 = scmp.eq.s32.totalorder %s73, 0
    %s76 = sadd.s32 %s75, 1
    %s77 = scalar_select %p74, %s75, %s76
    %p80 = pneg %p74
    %p81 = scmp.eq.s32.totalorder %s15, 3
    %p82 = por %p80, %p81
    %p83 = scmp.ne.s32.totalorder %s75, %s78
    %p84 = scmp.eq.s32.totalorder %s15, 0
    %p85 = por %p83, %p84
    %p86 = scmp.ne.s32.totalorder %s75, %s78
    %p87 = scmp.eq.s32.totalorder %s20, 3
    %p88 = por %p86, %p87
    %p89 = scmp.ne.s32.totalorder %s78, %s79
    %p90 = scmp.eq.s32.totalorder %s20, 0
    %p91 = por %p89, %p90
    %p92 = scmp.ne.s32.totalorder %s78, %s79
    %p93 = scmp.eq.s32.totalorder %s21, 3
    %p94 = por %p92, %p93
    %p96 = scmp.ne.s32.totalorder %s79, %s95
    %p97 = scmp.eq.s32.totalorder %s21, 0
    %p98 = por %p96, %p97
    %s99 = smul.u32 %s23, 8
    %s100 = sadd.s32 %s99, 8
    %p101 = scmp.lt.s32.totalorder %s100, 15
    %s102 = scalar_select %p101, %s100, 15
    %s103 = smul.u32 %s30, 8
    %s104 = sadd.s32 %s103, 8
    %p105 = scmp.lt.s32.totalorder %s104, 15
    %s106 = scalar_select %p105, %s104, 15
    %s107 = ssub.s32 %s22, %s34
    %s108 = ssub.s32 %s102, %s106
    %s109 = sor.u32 %s107, %s108
    %p110 = scmp.eq.s32.totalorder %s109, 0
    %s112 = sadd.s32 %s111, 1
    %s113 = scalar_select %p110, %s111, %s112
    %p116 = pneg %p110
    %p117 = scmp.eq.s32.totalorder %s15, 3
    %p118 = por %p116, %p117
    %p119 = scmp.ne.s32.totalorder %s111, %s114
    %p120 = scmp.eq.s32.totalorder %s15, 0
    %p121 = por %p119, %p120
    %p122 = scmp.ne.s32.totalorder %s111, %s114
    %p123 = scmp.eq.s32.totalorder %s20, 3
    %p124 = por %p122, %p123
    %p125 = scmp.ne.s32.totalorder %s114, %s115
    %p126 = scmp.eq.s32.totalorder %s20, 0
    %p127 = por %p125, %p126
    %p128 = scmp.ne.s32.totalorder %s114, %s115
    %p129 = scmp.eq.s32.totalorder %s21, 3
    %p130 = por %p128, %p129
    %p132 = scmp.ne.s32.totalorder %s115, %s131
    %p133 = scmp.eq.s32.totalorder %s21, 0
    %p134 = por %p132, %p133
    %s136 = sadd.s32 %s135, 1
    %p139 = scmp.eq.s32.totalorder %s15, 3
    %p140 = scmp.ne.s32.totalorder %s135, %s137
    %p141 = scmp.eq.s32.totalorder %s15, 0
    %p142 = por %p140, %p141
    %p143 = scmp.ne.s32.totalorder %s135, %s137
    %p144 = scmp.eq.s32.totalorder %s20, 3
    %p145 = por %p143, %p144
    %p146 = scmp.ne.s32.totalorder %s137, %s138
    %p147 = scmp.eq.s32.totalorder %s20, 0
    %p148 = por %p146, %p147
    %p149 = scmp.ne.s32.totalorder %s137, %s138
    %p150 = scmp.eq.s32.totalorder %s21, 3
    %p151 = por %p149, %p150
    %p153 = scmp.ne.s32.totalorder %s138, %s152
    %p154 = scmp.eq.s32.totalorder %s21, 0
    %p155 = por %p153, %p154
    %s157 = sadd.s32 %s156, 1
    %p160 = scmp.eq.s32.totalorder %s15, 3
    %p161 = scmp.ne.s32.totalorder %s156, %s158
    %p162 = scmp.eq.s32.totalorder %s15, 0
    %p163 = por %p161, %p162
    %p164 = scmp.ne.s32.totalorder %s156, %s158
    %p165 = scmp.eq.s32.totalorder %s20, 3
    %p166 = por %p164, %p165
    %p167 = scmp.ne.s32.totalorder %s158, %s159
    %p168 = scmp.eq.s32.totalorder %s20, 0
    %p169 = por %p167, %p168
    %p170 = scmp.ne.s32.totalorder %s158, %s159
    %p171 = scmp.eq.s32.totalorder %s21, 3
    %p172 = por %p170, %p171
    %p174 = scmp.ne.s32.totalorder %s159, %s173
    %p175 = scmp.eq.s32.totalorder %s21, 0
    %p176 = por %p174, %p175
    %s178 = sadd.s32 %s177, 1
    %p181 = scmp.eq.s32.totalorder %s15, 3
    %p182 = scmp.ne.s32.totalorder %s177, %s179
    %p183 = scmp.eq.s32.totalorder %s15, 0
    %p184 = por %p182, %p183
    %p185 = scmp.ne.s32.totalorder %s177, %s179
    %p186 = scmp.eq.s32.totalorder %s20, 3
    %p187 = por %p185, %p186
    %p188 = scmp.ne.s32.totalorder %s179, %s180
    %p189 = scmp.eq.s32.totalorder %s20, 0
    %p190 = por %p188, %p189
    %p191 = scmp.ne.s32.totalorder %s179, %s180
    %p192 = scmp.eq.s32.totalorder %s21, 3
    %p193 = por %p191, %p192
    %p195 = scmp.ne.s32.totalorder %s180, %s194
    %p196 = scmp.eq.s32.totalorder %s21, 0
    %p197 = por %p195, %p196
    %s198 = ssub.s32 %s22, %s34
    %s199 = ssub.s32 %s23, %s30
    %s200 = sor.u32 %s198, %s199
    %p201 = scmp.eq.s32.totalorder %s200, 0
    %s203 = sadd.s32 %s202, 1
    %s204 = scalar_select %p201, %s202, %s203
    %p207 = pneg %p201
    %p208 = scmp.eq.s32.totalorder %s15, 3
    %p209 = por %p207, %p208
    %p210 = scmp.ne.s32.totalorder %s202, %s205
    %p211 = scmp.eq.s32.totalorder %s15, 0
    %p212 = por %p210, %p211
    %p213 = scmp.ne.s32.totalorder %s202, %s205
    %p214 = scmp.eq.s32.totalorder %s20, 3
    %p215 = por %p213, %p214
    %p216 = scmp.ne.s32.totalorder %s205, %s206
    %p217 = scmp.eq.s32.totalorder %s20, 0
    %p218 = por %p216, %p217
    %p219 = scmp.ne.s32.totalorder %s205, %s206
    %p220 = scmp.eq.s32.totalorder %s21, 3
    %p221 = por %p219, %p220
    %p223 = scmp.ne.s32.totalorder %s206, %s222
    %p224 = scmp.eq.s32.totalorder %s21, 0
    %p225 = por %p223, %p224
    %s226 = smul.u32 %s22, 2
    %s227 = sadd.s32 %s226, %s23
    %s228 = smul.u32 %s34, 2
    %s229 = sadd.s32 %s228, %s30
    %s230 = ssub.s32 %s227, %s229
    %p231 = scmp.eq.s32.totalorder %s230, 0
    %s233 = sadd.s32 %s232, 1
    %s234 = scalar_select %p231, %s232, %s233
    %p237 = pneg %p231
    %p238 = scmp.eq.s32.totalorder %s15, 3
    %p239 = por %p237, %p238
    %p240 = scmp.ne.s32.totalorder %s232, %s235
    %p241 = scmp.eq.s32.totalorder %s15, 0
    %p242 = por %p240, %p241
    %p243 = scmp.ne.s32.totalorder %s232, %s235
    %p244 = scmp.eq.s32.totalorder %s20, 3
    %p245 = por %p243, %p244
    %p246 = scmp.ne.s32.totalorder %s235, %s236
    %p247 = scmp.eq.s32.totalorder %s20, 0
    %p248 = por %p246, %p247
    %p249 = scmp.ne.s32.totalorder %s235, %s236
    %p250 = scmp.eq.s32.totalorder %s21, 3
    %p251 = por %p249, %p250
    %p253 = scmp.ne.s32.totalorder %s236, %s252
    %p254 = scmp.eq.s32.totalorder %s21, 0
    %p255 = por %p253, %p254
    %s256 = smul.u32 %s22, 2
    %s257 = sadd.s32 %s256, %s23
    %s258 = smul.u32 %s34, 2
    %s259 = sadd.s32 %s258, %s30
    %s260 = ssub.s32 %s257, %s259
    %p261 = scmp.eq.s32.totalorder %s260, 0
    %s263 = sadd.s32 %s262, 1
    %s264 = scalar_select %p261, %s262, %s263
    %p267 = pneg %p261
    %p268 = scmp.eq.s32.totalorder %s15, 3
    %p269 = por %p267, %p268
    %p270 = scmp.ne.s32.totalorder %s262, %s265
    %p271 = scmp.eq.s32.totalorder %s15, 0
    %p272 = por %p270, %p271
    %p273 = scmp.ne.s32.totalorder %s262, %s265
    %p274 = scmp.eq.s32.totalorder %s20, 3
    %p275 = por %p273, %p274
    %p276 = scmp.ne.s32.totalorder %s265, %s266
    %p277 = scmp.eq.s32.totalorder %s20, 0
    %p278 = por %p276, %p277
    %p279 = scmp.ne.s32.totalorder %s265, %s266
    %p280 = scmp.eq.s32.totalorder %s21, 3
    %p281 = por %p279, %p280
    %p283 = scmp.ne.s32.totalorder %s266, %s282
    %p284 = scmp.eq.s32.totalorder %s21, 0
    %p285 = por %p283, %p284
    %p286 = scmp.le.s32.totalorder 1, %s15
    %p287 = scmp.lt.s32.totalorder %s15, 5
    %p288 = pnand %p286, %p287
    %p289 = pneg %p288
    // Predicated region
    $region9: #{forward.4} parent=5 // pred_check
      _
    $region10: #{forward.4} parent=5 // pred_check_branch
      %291 = sbr.rel (%p288) target = $region12
    $region11: #{forward.4} parent=5 // pred_region
      %s292 = ssub.s32 %s15, 1
      // Predicated region
      $region13: #{forward.4} parent=11 // pred_check
        %p293 = pneg %p148
      $region14: #{forward.4} parent=11 // pred_check_branch
        %295 = sbr.rel (%p293) target = $region16
      $region15: #{forward.4} parent=11 // pred_region
        _
      $region16: #{forward.4} parent=11 // pred_fallthru
        _
      // Predicated region
      $region17: #{forward.4} parent=11 // pred_check
        %p296 = pneg %p169
      $region18: #{forward.4} parent=11 // pred_check_branch
        %298 = sbr.rel (%p296) target = $region20
      $region19: #{forward.4} parent=11 // pred_region
        _
      $region20: #{forward.4} parent=11 // pred_fallthru
        _
      // Predicated region
      $region21: #{forward.4} parent=11 // pred_check
        %p299 = pneg %p190
      $region22: #{forward.4} parent=11 // pred_check_branch
        %301 = sbr.rel (%p299) target = $region24
      $region23: #{forward.4} parent=11 // pred_region
        _
      $region24: #{forward.4} parent=11 // pred_fallthru
        _
    $region12: #{forward.4} parent=5 // pred_fallthru
      _
    %p302 = scmp.lt.s32.totalorder %s15, 4
    // Predicated region
    $region25: #{forward.4} parent=5 // pred_check
      %p303 = pneg %p302
    $region26: #{forward.4} parent=5 // pred_check_branch
      %305 = sbr.rel (%p303) target = $region28
    $region27: #{forward.4} parent=5 // pred_region
      // Predicated region
      $region29: #{forward.4} parent=27 // pred_check
        %p306 = pneg %p57
      $region30: #{forward.4} parent=27 // pred_check_branch
        %308 = sbr.rel (%p306) target = $region32
      $region31: #{forward.4} parent=27 // pred_region
        %s309 = smul.u32 %s23, 8
        %s310 = ssub.s32 %s309, 1
        %p311 = scmp.gt.s32.totalorder %s310, 0
        %s312 = scalar_select %p311, %s310, 0
        %p313 = scmp.lt.s32.totalorder %s22, 1
        %s314 = scalar_select %p313, %s22, 1
        %p315 = scmp.lt.s32.totalorder %s312, 15
        %s316 = scalar_select %p315, %s312, 15
        %s317 = smul.addr %s316, 2
        %s318 = smul.addr %s314, 32
        %s319 = sadd.s32 %s317, %s318
        %s320 = smul.addr %s319, 4
        %s321 = scalar_lea.vmem %s0, %s320
        %s322 = smul.u32 %s23, 8
        %s323 = ssub.s32 %s322, 1
        %p324 = scmp.gt.s32.totalorder %s323, 0
        %s325 = scalar_select %p324, %s323, 0
      $region32: #{forward.4} parent=27 // pred_fallthru
        _
      // Predicated region
      $region33: #{forward.4} parent=27 // pred_check
        %p326 = pneg %p85
      $region34: #{forward.4} parent=27 // pred_check_branch
        %328 = sbr.rel (%p326) target = $region36
      $region35: #{forward.4} parent=27 // pred_region
        %s329 = smul.u32 8, %s23
        %p330 = scmp.lt.s32.totalorder %s22, 1
        %s331 = scalar_select %p330, %s22, 1
        %p332 = scmp.lt.s32.totalorder %s329, 15
        %s333 = scalar_select %p332, %s329, 15
        %s334 = smul.addr %s333, 2
        %s335 = smul.addr %s331, 32
        %s336 = sadd.s32 %s334, %s335
        %s337 = smul.addr %s336, 4
        %s338 = scalar_lea.vmem %s1, %s337
        %s339 = smul.u32 8, %s23
      $region36: #{forward.4} parent=27 // pred_fallthru
        _
      // Predicated region
      $region37: #{forward.4} parent=27 // pred_check
        %p340 = pneg %p121
      $region38: #{forward.4} parent=27 // pred_check_branch
        %342 = sbr.rel (%p340) target = $region40
      $region39: #{forward.4} parent=27 // pred_region
        %s343 = smul.u32 %s23, 8
        %s344 = sadd.s32 %s343, 8
        %p345 = scmp.lt.s32.totalorder %s344, 15
        %s346 = scalar_select %p345, %s344, 15
        %p347 = scmp.lt.s32.totalorder %s22, 1
        %s348 = scalar_select %p347, %s22, 1
        %p349 = scmp.lt.s32.totalorder %s346, 15
        %s350 = scalar_select %p349, %s346, 15
        %s351 = smul.addr %s350, 2
        %s352 = smul.addr %s348, 32
        %s353 = sadd.s32 %s351, %s352
        %s354 = smul.addr %s353, 4
        %s355 = scalar_lea.vmem %s2, %s354
        %s356 = smul.u32 %s23, 8
        %s357 = sadd.s32 %s356, 8
        %p358 = scmp.lt.s32.totalorder %s357, 15
        %s359 = scalar_select %p358, %s357, 15
      $region40: #{forward.4} parent=27 // pred_fallthru
        _
    $region28: #{forward.4} parent=5 // pred_fallthru
      _
    %p360 = scmp.le.s32.totalorder 1, %s15
    %p361 = scmp.lt.s32.totalorder %s15, 5
    %p362 = pnand %p360, %p361
    %p363 = pneg %p362
    // Predicated region
    $region41: #{forward.4} parent=5 // pred_check
      _
    $region42: #{forward.4} parent=5 // pred_check_branch
      %365 = sbr.rel (%p362) target = $region44
    $region43: #{forward.4} parent=5 // pred_region
      %s366 = ssub.s32 %s15, 1
      %s367 = smul.u32 %s25, 8
      %s368 = ssub.s32 %s367, 1
      %p369 = scmp.gt.s32.totalorder %s368, 0
      %s370 = scalar_select %p369, %s368, 0
      %p371 = scmp.lt.s32.totalorder %s24, 1
      %s372 = scalar_select %p371, %s24, 1
      %p373 = scmp.lt.s32.totalorder %s370, 15
      %s374 = scalar_select %p373, %s370, 15
      %s375 = smul.addr %s374, 2
      %s376 = smul.addr %s372, 32
      %s377 = sadd.s32 %s375, %s376
      %s378 = smul.addr %s377, 4
      %s379 = scalar_lea.vmem %s0, %s378
      %p380 = pneg %p63
      %p381 = pneg %p60
      %s382 = smul.u32 8, %s25
      %p383 = scmp.lt.s32.totalorder %s24, 1
      %s384 = scalar_select %p383, %s24, 1
      %p385 = scmp.lt.s32.totalorder %s382, 15
      %s386 = scalar_select %p385, %s382, 15
      %s387 = smul.addr %s386, 2
      %s388 = smul.addr %s384, 32
      %s389 = sadd.s32 %s387, %s388
      %s390 = smul.addr %s389, 4
      %s391 = scalar_lea.vmem %s1, %s390
      %p392 = pneg %p91
      %p393 = pneg %p88
      %s394 = smul.u32 %s25, 8
      %s395 = sadd.s32 %s394, 8
      %p396 = scmp.lt.s32.totalorder %s395, 15
      %s397 = scalar_select %p396, %s395, 15
      %p398 = scmp.lt.s32.totalorder %s24, 1
      %s399 = scalar_select %p398, %s24, 1
      %p400 = scmp.lt.s32.totalorder %s397, 15
      %s401 = scalar_select %p400, %s397, 15
      %s402 = smul.addr %s401, 2
      %s403 = smul.addr %s399, 32
      %s404 = sadd.s32 %s402, %s403
      %s405 = smul.addr %s404, 4
      %s406 = scalar_lea.vmem %s2, %s405
      %p407 = pneg %p127
      %p408 = pneg %p124
      %p409 = pneg %p148
      %p410 = pneg %p145
      %p411 = pneg %p169
      %p412 = pneg %p166
      %p413 = pneg %p190
      %p414 = pneg %p187
      %p415 = pneg %p218
      %p416 = pneg %p215
      %s417 = smul.u32 8, %s25
      %p418 = scmp.lt.s32.totalorder %s24, 1
      %s419 = scalar_select %p418, %s24, 1
      %p420 = scmp.lt.s32.totalorder %s417, 15
      %s421 = scalar_select %p420, %s417, 15
      %s422 = smul.addr %s421, 2
      %s423 = smul.addr %s419, 32
      %s424 = sadd.s32 %s422, %s423
      %s425 = smul.addr %s424, 4
      %s426 = scalar_lea.vmem %s6, %s425
      %p427 = pneg %p248
      %p428 = pneg %p245
      %s429 = smul.u32 %s24, 2
      %s430 = sadd.s32 %s429, %s25
      %p431 = scmp.lt.s32.totalorder %s430, 3
      %s432 = scalar_select %p431, %s430, 3
      %s433 = scalar_lea.vmem %s7, %s432
      %p434 = pneg %p278
      %p435 = pneg %p275
      %s436 = smul.u32 %s24, 2
      %s437 = sadd.s32 %s436, %s25
      %p438 = scmp.lt.s32.totalorder %s437, 3
      %s439 = scalar_select %p438, %s437, 3
      %s440 = scalar_lea.vmem %s8, %s439
      %s441 = smul.u32 %s25, 8
      %s442 = ssub.s32 %s441, 1
      %p443 = scmp.gt.s32.totalorder %s442, 0
      %s444 = scalar_select %p443, %s442, 0
      %p445 = scmp.lt.s32.totalorder %s24, 1
      %s446 = scalar_select %p445, %s24, 1
      %p447 = scmp.lt.s32.totalorder %s444, 15
      %s448 = scalar_select %p447, %s444, 15
      %s449 = smul.addr %s448, 2
      %s450 = smul.addr %s446, 32
      %s451 = sadd.s32 %s449, %s450
      %s452 = smul.addr %s451, 4
      %s453 = scalar_lea.vmem %s0, %s452
      %s454 = smul.u32 %s25, 8
      %s455 = ssub.s32 %s454, 1
      %p456 = scmp.gt.s32.totalorder %s455, 0
      %s457 = scalar_select %p456, %s455, 0
      %s458 = smul.u32 8, %s25
      %p459 = scmp.lt.s32.totalorder %s24, 1
      %s460 = scalar_select %p459, %s24, 1
      %p461 = scmp.lt.s32.totalorder %s458, 15
      %s462 = scalar_select %p461, %s458, 15
      %s463 = smul.addr %s462, 2
      %s464 = smul.addr %s460, 32
      %s465 = sadd.s32 %s463, %s464
      %s466 = smul.addr %s465, 4
      %s467 = scalar_lea.vmem %s1, %s466
      %s468 = smul.u32 8, %s25
      %s469 = smul.u32 %s25, 8
      %s470 = sadd.s32 %s469, 8
      %p471 = scmp.lt.s32.totalorder %s470, 15
      %s472 = scalar_select %p471, %s470, 15
      %p473 = scmp.lt.s32.totalorder %s24, 1
      %s474 = scalar_select %p473, %s24, 1
      %p475 = scmp.lt.s32.totalorder %s472, 15
      %s476 = scalar_select %p475, %s472, 15
      %s477 = smul.addr %s476, 2
      %s478 = smul.addr %s474, 32
      %s479 = sadd.s32 %s477, %s478
      %s480 = smul.addr %s479, 4
      %s481 = scalar_lea.vmem %s2, %s480
      %s482 = smul.u32 %s25, 8
      %s483 = sadd.s32 %s482, 8
      %p484 = scmp.lt.s32.totalorder %s483, 15
      %s485 = scalar_select %p484, %s483, 15
      %s486 = smul.u32 8, %s25
      %p487 = scmp.lt.s32.totalorder %s24, 1
      %s488 = scalar_select %p487, %s24, 1
      %p489 = scmp.lt.s32.totalorder %s486, 15
      %s490 = scalar_select %p489, %s486, 15
      %s491 = smul.addr %s490, 2
      %s492 = smul.addr %s488, 32
      %s493 = sadd.s32 %s491, %s492
      %s494 = smul.addr %s493, 4
      %s495 = scalar_lea.vmem %s6, %s494
      %s496 = smul.u32 8, %s25
      %s497 = smul.u32 %s24, 2
      %s498 = sadd.s32 %s497, %s25
      %p499 = scmp.lt.s32.totalorder %s498, 3
      %s500 = scalar_select %p499, %s498, 3
      %s501 = scalar_lea.vmem %s7, %s500
      %s502 = smul.u32 %s24, 2
      %s503 = sadd.s32 %s502, %s25
      %s504 = smul.u32 %s24, 2
      %s505 = sadd.s32 %s504, %s25
      %p506 = scmp.lt.s32.totalorder %s505, 3
      %s507 = scalar_select %p506, %s505, 3
      %s508 = scalar_lea.vmem %s8, %s507
      %s509 = smul.u32 %s24, 2
      %s510 = sadd.s32 %s509, %s25
      %v512 = vld [vmem:[%s453] sm:$0xf]
      %v513 = vld [vmem:[%s453 + $0x4] sm:$0xf]
      %v514 = vld [vmem:[%s3] sm:$0x1]
      %v515 = vld [vmem:[%s4] sm:$0x1]
      %v516 = vunpack.c.l.bf16 %v512
      %v517 = vunpack.c.l.bf16 %v513
      %v519 = vlaneseq
      %v520 = vshrl.u32 %v519, 7
      %v521 = vsub.s32 0, %v520
      %v522 = vrot.slane %v514, %v521
      %v524 = vmul.f32 %v516, %v522
      %v525 = vmul.f32 %v517, %v522
      %v527 = vlaneseq
      %v528 = vshrl.u32 %v527, 7
      %v529 = vsub.s32 0, %v528
      %v530 = vrot.slane %v515, %v529
      %v532 = vadd.f32 %v524, %v530
      %v533 = vadd.f32 %v525, %v530
      %v534 = vmax.f32 %v532, 0.0
      %v535 = vmax.f32 %v533, 0.0
      %v536 = vpack.c.bf16 %v535, %v534
      %v537 = vld [vmem:[%s467] sm:$0xf]
      %v538 = vld [vmem:[%s467 + $0x4] sm:$0xf]
      %v539 = vld [vmem:[%s467 + $0x8] sm:$0xf]
      %v540 = vld [vmem:[%s467 + $0xc] sm:$0xf]
      %v541 = vld [vmem:[%s467 + $0x10] sm:$0xf]
      %v542 = vld [vmem:[%s467 + $0x14] sm:$0xf]
      %v543 = vld [vmem:[%s467 + $0x18] sm:$0xf]
      %v544 = vld [vmem:[%s467 + $0x1c] sm:$0xf]
      %v545 = vld [vmem:[%s467 + $0x20] sm:$0xf]
      %v546 = vld [vmem:[%s467 + $0x24] sm:$0xf]
      %v547 = vld [vmem:[%s467 + $0x28] sm:$0xf]
      %v548 = vld [vmem:[%s467 + $0x2c] sm:$0xf]
      %v549 = vld [vmem:[%s467 + $0x30] sm:$0xf]
      %v550 = vld [vmem:[%s467 + $0x34] sm:$0xf]
      %v551 = vld [vmem:[%s467 + $0x38] sm:$0xf]
      %v552 = vld [vmem:[%s467 + $0x3c] sm:$0xf]
      %v553 = vunpack.c.l.bf16 %v537
      %v554 = vunpack.c.l.bf16 %v538
      %v555 = vunpack.c.l.bf16 %v539
      %v556 = vunpack.c.l.bf16 %v540
      %v557 = vunpack.c.l.bf16 %v541
      %v558 = vunpack.c.l.bf16 %v542
      %v559 = vunpack.c.l.bf16 %v543
      %v560 = vunpack.c.l.bf16 %v544
      %v561 = vunpack.c.l.bf16 %v545
      %v562 = vunpack.c.l.bf16 %v546
      %v563 = vunpack.c.l.bf16 %v547
      %v564 = vunpack.c.l.bf16 %v548
      %v565 = vunpack.c.l.bf16 %v549
      %v566 = vunpack.c.l.bf16 %v550
      %v567 = vunpack.c.l.bf16 %v551
      %v568 = vunpack.c.l.bf16 %v552
      %v569 = vmul.f32 %v553, %v522
      %v570 = vmul.f32 %v554, %v522
      %v571 = vmul.f32 %v555, %v522
      %v572 = vmul.f32 %v556, %v522
      %v573 = vmul.f32 %v557, %v522
      %v574 = vmul.f32 %v558, %v522
      %v575 = vmul.f32 %v559, %v522
      %v576 = vmul.f32 %v560, %v522
      %v577 = vmul.f32 %v561, %v522
      %v578 = vmul.f32 %v562, %v522
      %v579 = vmul.f32 %v563, %v522
      %v580 = vmul.f32 %v564, %v522
      %v581 = vmul.f32 %v565, %v522
      %v582 = vmul.f32 %v566, %v522
      %v583 = vmul.f32 %v567, %v522
      %v584 = vmul.f32 %v568, %v522
      %v585 = vadd.f32 %v569, %v530
      %v586 = vadd.f32 %v570, %v530
      %v587 = vadd.f32 %v571, %v530
      %v588 = vadd.f32 %v572, %v530
      %v589 = vadd.f32 %v573, %v530
      %v590 = vadd.f32 %v574, %v530
      %v591 = vadd.f32 %v575, %v530
      %v592 = vadd.f32 %v576, %v530
      %v593 = vadd.f32 %v577, %v530
      %v594 = vadd.f32 %v578, %v530
      %v595 = vadd.f32 %v579, %v530
      %v596 = vadd.f32 %v580, %v530
      %v597 = vadd.f32 %v581, %v530
      %v598 = vadd.f32 %v582, %v530
      %v599 = vadd.f32 %v583, %v530
      %v600 = vadd.f32 %v584, %v530
      %v601 = vmax.f32 %v585, 0.0
      %v602 = vmax.f32 %v586, 0.0
      %v603 = vmax.f32 %v587, 0.0
      %v604 = vmax.f32 %v588, 0.0
      %v605 = vmax.f32 %v589, 0.0
      %v606 = vmax.f32 %v590, 0.0
      %v607 = vmax.f32 %v591, 0.0
      %v608 = vmax.f32 %v592, 0.0
      %v609 = vmax.f32 %v593, 0.0
      %v610 = vmax.f32 %v594, 0.0
      %v611 = vmax.f32 %v595, 0.0
      %v612 = vmax.f32 %v596, 0.0
      %v613 = vmax.f32 %v597, 0.0
      %v614 = vmax.f32 %v598, 0.0
      %v615 = vmax.f32 %v599, 0.0
      %v616 = vmax.f32 %v600, 0.0
      %v617 = vpack.c.bf16 %v602, %v601
      %v618 = vpack.c.bf16 %v604, %v603
      %v619 = vpack.c.bf16 %v606, %v605
      %v620 = vpack.c.bf16 %v608, %v607
      %v621 = vpack.c.bf16 %v610, %v609
      %v622 = vpack.c.bf16 %v612, %v611
      %v623 = vpack.c.bf16 %v614, %v613
      %v624 = vpack.c.bf16 %v616, %v615
      %v625 = vld [vmem:[%s481] sm:$0xf]
      %v626 = vld [vmem:[%s481 + $0x4] sm:$0xf]
      %v627 = vunpack.c.l.bf16 %v625
      %v628 = vunpack.c.l.bf16 %v626
      %v629 = vmul.f32 %v627, %v522
      %v630 = vmul.f32 %v628, %v522
      %v631 = vadd.f32 %v629, %v530
      %v632 = vadd.f32 %v630, %v530
      %v633 = vmax.f32 %v631, 0.0
      %v634 = vmax.f32 %v632, 0.0
      %v635 = vpack.c.bf16 %v634, %v633
      %p636 = scmp.eq.s32.totalorder %s25, 0
      %s637 = scalar_select %p636, 1, 0
      %v638 = vstv %s637
      %vm639 = vcmp.eq.s32.totalorder %v638, 1
      %v640 = vsel %vm639, 0, %v536
      %p641 = scmp.eq.s32.totalorder %s25, 1
      %s642 = scalar_select %p641, 1, 0
      %v643 = vstv %s642
      %vm644 = vcmp.eq.s32.totalorder %v643, 1
      %v645 = vsel %vm644, 0, %v635
      %v647 = vshrl.u32 %v640, 16
      %v649 = vrot.slane %v647, 7
      %v650 = vshll.u32 %v640, 16
      %v652 = vor.u32 %v649, %v650
      %v654 = vshrl.u32 %v617, 16
      %v656 = vrot.slane %v654, 7
      %v657 = vshll.u32 %v617, 16
      %v659 = vor.u32 %v656, %v657
      %v661 = vshrl.u32 %v618, 16
      %v663 = vrot.slane %v661, 7
      %v664 = vshll.u32 %v618, 16
      %v666 = vor.u32 %v663, %v664
      %v668 = vshrl.u32 %v619, 16
      %v670 = vrot.slane %v668, 7
      %v671 = vshll.u32 %v619, 16
      %v673 = vor.u32 %v670, %v671
      %v675 = vshrl.u32 %v620, 16
      %v677 = vrot.slane %v675, 7
      %v678 = vshll.u32 %v620, 16
      %v680 = vor.u32 %v677, %v678
      %v682 = vshrl.u32 %v621, 16
      %v684 = vrot.slane %v682, 7
      %v685 = vshll.u32 %v621, 16
      %v687 = vor.u32 %v684, %v685
      %v689 = vshrl.u32 %v622, 16
      %v691 = vrot.slane %v689, 7
      %v692 = vshll.u32 %v622, 16
      %v694 = vor.u32 %v691, %v692
      %v696 = vshrl.u32 %v623, 16
      %v698 = vrot.slane %v696, 7
      %v699 = vshll.u32 %v623, 16
      %v701 = vor.u32 %v698, %v699
      %v703 = vshrl.u32 %v624, 16
      %v705 = vrot.slane %v703, 7
      %v706 = vshll.u32 %v624, 16
      %v708 = vor.u32 %v705, %v706
      %v710 = vshrl.u32 %v645, 16
      %v712 = vrot.slane %v710, 7
      %v713 = vshll.u32 %v645, 16
      %v715 = vor.u32 %v712, %v713
      %vm736 = vcmask 1040384
      %vm737 = vsmask.f32 256
      %vm738 = vmand %vm736, %vm737
      %v739 = vsel %vm738, 0, %v652
      %v740 = vsel %vm738, 0, %v659
      %v741 = vsel %vm738, 0, %v666
      %v742 = vsel %vm738, 0, %v673
      %v743 = vsel %vm738, 0, %v680
      %v744 = vsel %vm738, 0, %v687
      %v745 = vsel %vm738, 0, %v694
      %v746 = vsel %vm738, 0, %v701
      %v747 = vsel %vm738, 0, %v708
      %v748 = vsel %vm738, 0, %v715
      %v749 = vsel %vm738, %v649, 0
      %v750 = vsel %vm738, %v656, 0
      %v751 = vsel %vm738, %v663, 0
      %v752 = vsel %vm738, %v670, 0
      %v753 = vsel %vm738, %v677, 0
      %v754 = vsel %vm738, %v684, 0
      %v755 = vsel %vm738, %v691, 0
      %v756 = vsel %vm738, %v698, 0
      %v757 = vsel %vm738, %v705, 0
      %v758 = vsel %vm738, %v712, 0
      %v759 = vld [vmem:[%s5] sm:$0xf]
      %v760 = vld [vmem:[%s5 + $0x4] sm:$0xf]
      %v761 = vld [vmem:[%s5 + $0x8] sm:$0xf]
      %v762 = vld [vmem:[%s5 + $0xc] sm:$0xf]
      %v763 = vld [vmem:[%s5 + $0x10] sm:$0xf]
      %v764 = vld [vmem:[%s5 + $0x14] sm:$0xf]
      %v765 = vld [vmem:[%s5 + $0x18] sm:$0xf]
      %v766 = vld [vmem:[%s5 + $0x1c] sm:$0xf]
      %v767 = vld [vmem:[%s5 + $0x20] sm:$0xf]
      %v768 = vld [vmem:[%s5 + $0x24] sm:$0xf]
      %v769 = vld [vmem:[%s5 + $0x28] sm:$0xf]
      %v770 = vld [vmem:[%s5 + $0x2c] sm:$0xf]
      %v771 = vld [vmem:[%s5 + $0x30] sm:$0xf]
      %v772 = vld [vmem:[%s5 + $0x34] sm:$0xf]
      %v773 = vld [vmem:[%s5 + $0x38] sm:$0xf]
      %v774 = vld [vmem:[%s5 + $0x3c] sm:$0xf]
      %vm775 = vsmask.f32 7424
      %v777 = vshrl.u32 %v739, 16
      %v779 = vshll.u32 %v739, 16
      %v781 = vrot.slane %v779, 1
      %v782 = vor.u32 %v777, %v781
      %v784 = vshll.u32 %v749, 16
      %v786 = vrot.slane %v784, 1
      %v787 = vsel %vm775, %v782, %v786
      %v789 = vshrl.u32 %v740, 16
      %v791 = vshll.u32 %v740, 16
      %v793 = vrot.slane %v791, 1
      %v794 = vor.u32 %v789, %v793
      %v796 = vshll.u32 %v750, 16
      %v798 = vrot.slane %v796, 1
      %v799 = vsel %vm775, %v794, %v798
      %v801 = vshrl.u32 %v741, 16
      %v803 = vshll.u32 %v741, 16
      %v805 = vrot.slane %v803, 1
      %v806 = vor.u32 %v801, %v805
      %v808 = vshll.u32 %v751, 16
      %v810 = vrot.slane %v808, 1
      %v811 = vsel %vm775, %v806, %v810
      %v813 = vshrl.u32 %v742, 16
      %v815 = vshll.u32 %v742, 16
      %v817 = vrot.slane %v815, 1
      %v818 = vor.u32 %v813, %v817
      %v820 = vshll.u32 %v752, 16
      %v822 = vrot.slane %v820, 1
      %v823 = vsel %vm775, %v818, %v822
      %v825 = vshrl.u32 %v743, 16
      %v827 = vshll.u32 %v743, 16
      %v829 = vrot.slane %v827, 1
      %v830 = vor.u32 %v825, %v829
      %v832 = vshll.u32 %v753, 16
      %v834 = vrot.slane %v832, 1
      %v835 = vsel %vm775, %v830, %v834
      %v837 = vshrl.u32 %v744, 16
      %v839 = vshll.u32 %v744, 16
      %v841 = vrot.slane %v839, 1
      %v842 = vor.u32 %v837, %v841
      %v844 = vshll.u32 %v754, 16
      %v846 = vrot.slane %v844, 1
      %v847 = vsel %vm775, %v842, %v846
      %v849 = vshrl.u32 %v745, 16
      %v851 = vshll.u32 %v745, 16
      %v853 = vrot.slane %v851, 1
      %v854 = vor.u32 %v849, %v853
      %v856 = vshll.u32 %v755, 16
      %v858 = vrot.slane %v856, 1
      %v859 = vsel %vm775, %v854, %v858
      %v861 = vshrl.u32 %v746, 16
      %v863 = vshll.u32 %v746, 16
      %v865 = vrot.slane %v863, 1
      %v866 = vor.u32 %v861, %v865
      %v868 = vshll.u32 %v756, 16
      %v870 = vrot.slane %v868, 1
      %v871 = vsel %vm775, %v866, %v870
      %s880 = scalar_lea.vmem %s5, 64
      %v881 = vld [vmem:[%s880] sm:$0xf]
      %v882 = vld [vmem:[%s880 + $0x4] sm:$0xf]
      %v883 = vld [vmem:[%s880 + $0x8] sm:$0xf]
      %v884 = vld [vmem:[%s880 + $0xc] sm:$0xf]
      %v885 = vld [vmem:[%s880 + $0x10] sm:$0xf]
      %v886 = vld [vmem:[%s880 + $0x14] sm:$0xf]
      %v887 = vld [vmem:[%s880 + $0x18] sm:$0xf]
      %v888 = vld [vmem:[%s880 + $0x1c] sm:$0xf]
      %v889 = vld [vmem:[%s880 + $0x20] sm:$0xf]
      %v890 = vld [vmem:[%s880 + $0x24] sm:$0xf]
      %v891 = vld [vmem:[%s880 + $0x28] sm:$0xf]
      %v892 = vld [vmem:[%s880 + $0x2c] sm:$0xf]
      %v893 = vld [vmem:[%s880 + $0x30] sm:$0xf]
      %v894 = vld [vmem:[%s880 + $0x34] sm:$0xf]
      %v895 = vld [vmem:[%s880 + $0x38] sm:$0xf]
      %v896 = vld [vmem:[%s880 + $0x3c] sm:$0xf]
      %v913 = vunpack.c.l.b16 %v881
      %v914 = vunpack.c.l.b16 %v882
      %v915 = vunpack.c.l.b16 %v883
      %v916 = vunpack.c.l.b16 %v884
      %v917 = vunpack.c.l.b16 %v885
      %v918 = vunpack.c.l.b16 %v886
      %v919 = vunpack.c.l.b16 %v887
      %v920 = vunpack.c.l.b16 %v888
      %v921 = vunpack.c.l.b16 %v889
      %v922 = vunpack.c.l.b16 %v890
      %v923 = vunpack.c.l.b16 %v891
      %v924 = vunpack.c.l.b16 %v892
      %v925 = vunpack.c.l.b16 %v893
      %v926 = vunpack.c.l.b16 %v894
      %v927 = vunpack.c.l.b16 %v895
      %v928 = vunpack.c.l.b16 %v896
      %v929 = vpack.c.b16 %v914, %v913
      %v930 = vpack.c.b16 %v916, %v915
      %v931 = vpack.c.b16 %v918, %v917
      %v932 = vpack.c.b16 %v920, %v919
      %v933 = vpack.c.b16 %v922, %v921
      %v934 = vpack.c.b16 %v924, %v923
      %v935 = vpack.c.b16 %v926, %v925
      %v936 = vpack.c.b16 %v928, %v927
      %945 = vmatprep.subr.bf16.mxu0 0
      %946 = vmatpush1.bf16.msra.mxu0 %v929
      %947 = vmatprep.subr.bf16.mxu0 0
      %948 = vmatpush1.bf16.msra.mxu0 %v930
      %949 = vmatprep.subr.bf16.mxu0 0
      %950 = vmatpush1.bf16.msra.mxu0 %v931
      %951 = vmatprep.subr.bf16.mxu0 0
      %952 = vmatpush1.bf16.msra.mxu0 %v932
      %953 = vmatprep.subr.bf16.mxu0 0
      %954 = vmatpush1.bf16.msra.mxu0 %v933
      %955 = vmatprep.subr.bf16.mxu0 0
      %956 = vmatpush1.bf16.msra.mxu0 %v934
      %957 = vmatprep.subr.bf16.mxu0 0
      %958 = vmatpush1.bf16.msra.mxu0 %v935
      %959 = vmatprep.subr.bf16.mxu0 0
      %960 = vmatpush1.bf16.msra.mxu0 %v936
      %961 = vmatprep.subr.bf16.mxu0 0
      %962 = vmatpush1.bf16.msra.mxu0 0
      %963 = vmatprep.subr.bf16.mxu0 0
      %964 = vmatpush1.bf16.msra.mxu0 0
      %965 = vmatprep.subr.bf16.mxu0 0
      %966 = vmatpush1.bf16.msra.mxu0 0
      %967 = vmatprep.subr.bf16.mxu0 0
      %968 = vmatpush1.bf16.msra.mxu0 0
      %969 = vmatprep.subr.bf16.mxu0 0
      %970 = vmatpush1.bf16.msra.mxu0 0
      %971 = vmatprep.subr.bf16.mxu0 0
      %972 = vmatpush1.bf16.msra.mxu0 0
      %973 = vmatprep.subr.bf16.mxu0 0
      %974 = vmatpush1.bf16.msra.mxu0 0
      %975 = vmatprep.subr.bf16.mxu0 0
      %976 = vmatpush1.bf16.msra.mxu0 0
      %977 = vmatprep.mubr.bf16.mxu0 0
      %978 = vmatmul.mubr.bf16.gmra.mrb[0].mxu0 %v787
      %v979 = vpop.f32.mrb[0].mxu0
      %v980 = vadd.f32 0.0, %v979
      %v981 = vpop.f32.mrb[0].mxu0
      %v982 = vpop.f32.mrb[0].mxu0
      %v983 = vadd.f32 0.0, %v982
      %v984 = vpop.f32.mrb[0].mxu0
      %985 = vmatprep.mubr.bf16.mxu0 0
      %986 = vmatmul.mubr.bf16.gmra.mrb[0].mxu0 %v799
      %v987 = vpop.f32.mrb[0].mxu0
      %v988 = vadd.f32 0.0, %v987
      %v989 = vpop.f32.mrb[0].mxu0
      %v990 = vpop.f32.mrb[0].mxu0
      %v991 = vadd.f32 0.0, %v990
      %v992 = vpop.f32.mrb[0].mxu0
      %993 = vmatprep.mubr.bf16.mxu0 0
      %994 = vmatmul.mubr.bf16.gmra.mrb[0].mxu0 %v811
      %v995 = vpop.f32.mrb[0].mxu0
      %v996 = vadd.f32 0.0, %v995
      %v997 = vpop.f32.mrb[0].mxu0
      %v998 = vpop.f32.mrb[0].mxu0
      %v999 = vadd.f32 0.0, %v998
      %v1000 = vpop.f32.mrb[0].mxu0
      %1001 = vmatprep.mubr.bf16.mxu0 0
      %1002 = vmatmul.mubr.bf16.gmra.mrb[0].mxu0 %v823
      %v1003 = vpop.f32.mrb[0].mxu0
      %v1004 = vadd.f32 0.0, %v1003
      %v1005 = vpop.f32.mrb[0].mxu0
      %v1006 = vpop.f32.mrb[0].mxu0
      %v1007 = vadd.f32 0.0, %v1006
      %v1008 = vpop.f32.mrb[0].mxu0
      %1009 = vmatprep.mubr.bf16.mxu0 0
      %1010 = vmatmul.mubr.bf16.gmra.mrb[0].mxu0 %v835
      %v1011 = vpop.f32.mrb[0].mxu0
      %v1012 = vadd.f32 0.0, %v1011
      %v1013 = vpop.f32.mrb[0].mxu0
      %v1014 = vpop.f32.mrb[0].mxu0
      %v1015 = vadd.f32 0.0, %v1014
      %v1016 = vpop.f32.mrb[0].mxu0
      %1017 = vmatprep.mubr.bf16.mxu0 0
      %1018 = vmatmul.mubr.bf16.gmra.mrb[0].mxu0 %v847
      %v1019 = vpop.f32.mrb[0].mxu0
      %v1020 = vadd.f32 0.0, %v1019
      %v1021 = vpop.f32.mrb[0].mxu0
      %v1022 = vpop.f32.mrb[0].mxu0
      %v1023 = vadd.f32 0.0, %v1022
      %v1024 = vpop.f32.mrb[0].mxu0
      %1025 = vmatprep.mubr.bf16.mxu0 0
      %1026 = vmatmul.mubr.bf16.gmra.mrb[0].mxu0 %v859
      %v1027 = vpop.f32.mrb[0].mxu0
      %v1028 = vadd.f32 0.0, %v1027
      %v1029 = vpop.f32.mrb[0].mxu0
      %v1030 = vpop.f32.mrb[0].mxu0
      %v1031 = vadd.f32 0.0, %v1030
      %v1032 = vpop.f32.mrb[0].mxu0
      %1033 = vmatprep.mubr.bf16.mxu0 0
      %1034 = vmatmul.mubr.bf16.gmra.mrb[0].mxu0 %v871
      %v1035 = vpop.f32.mrb[0].mxu0
      %v1036 = vadd.f32 0.0, %v1035
      %v1037 = vpop.f32.mrb[0].mxu0
      %v1038 = vpop.f32.mrb[0].mxu0
      %v1039 = vadd.f32 0.0, %v1038
      %v1040 = vpop.f32.mrb[0].mxu0
      %1041 = vdwg.mxu0
      %v1058 = vunpack.c.l.b16 %v759
      %v1059 = vunpack.c.l.b16 %v760
      %v1060 = vunpack.c.l.b16 %v761
      %v1061 = vunpack.c.l.b16 %v762
      %v1062 = vunpack.c.l.b16 %v763
      %v1063 = vunpack.c.l.b16 %v764
      %v1064 = vunpack.c.l.b16 %v765
      %v1065 = vunpack.c.l.b16 %v766
      %v1066 = vunpack.c.l.b16 %v767
      %v1067 = vunpack.c.l.b16 %v768
      %v1068 = vunpack.c.l.b16 %v769
      %v1069 = vunpack.c.l.b16 %v770
      %v1070 = vunpack.c.l.b16 %v771
      %v1071 = vunpack.c.l.b16 %v772
      %v1072 = vunpack.c.l.b16 %v773
      %v1073 = vunpack.c.l.b16 %v774
      %v1074 = vpack.c.b16 %v1059, %v1058
      %v1075 = vpack.c.b16 %v1061, %v1060
      %v1076 = vpack.c.b16 %v1063, %v1062
      %v1077 = vpack.c.b16 %v1065, %v1064
      %v1078 = vpack.c.b16 %v1067, %v1066
      %v1079 = vpack.c.b16 %v1069, %v1068
      %v1080 = vpack.c.b16 %v1071, %v1070
      %v1081 = vpack.c.b16 %v1073, %v1072
      %1090 = vmatprep.subr.bf16.mxu0 0
      %1091 = vmatpush1.bf16.msra.mxu0 %v1074
      %1092 = vmatprep.subr.bf16.mxu0 0
      %1093 = vmatpush1.bf16.msra.mxu0 %v1075
      %1094 = vmatprep.subr.bf16.mxu0 0
      %1095 = vmatpush1.bf16.msra.mxu0 %v1076
      %1096 = vmatprep.subr.bf16.mxu0 0
      %1097 = vmatpush1.bf16.msra.mxu0 %v1077
      %1098 = vmatprep.subr.bf16.mxu0 0
      %1099 = vmatpush1.bf16.msra.mxu0 %v1078
      %1100 = vmatprep.subr.bf16.mxu0 0
      %1101 = vmatpush1.bf16.msra.mxu0 %v1079
      %1102 = vmatprep.subr.bf16.mxu0 0
      %1103 = vmatpush1.bf16.msra.mxu0 %v1080
      %1104 = vmatprep.subr.bf16.mxu0 0
      %1105 = vmatpush1.bf16.msra.mxu0 %v1081
      %1106 = vmatprep.subr.bf16.mxu0 0
      %1107 = vmatpush1.bf16.msra.mxu0 0
      %1108 = vmatprep.subr.bf16.mxu0 0
      %1109 = vmatpush1.bf16.msra.mxu0 0
      %1110 = vmatprep.subr.bf16.mxu0 0
      %1111 = vmatpush1.bf16.msra.mxu0 0
      %1112 = vmatprep.subr.bf16.mxu0 0
      %1113 = vmatpush1.bf16.msra.mxu0 0
      %1114 = vmatprep.subr.bf16.mxu0 0
      %1115 = vmatpush1.bf16.msra.mxu0 0
      %1116 = vmatprep.subr.bf16.mxu0 0
      %1117 = vmatpush1.bf16.msra.mxu0 0
      %1118 = vmatprep.subr.bf16.mxu0 0
      %1119 = vmatpush1.bf16.msra.mxu0 0
      %1120 = vmatprep.subr.bf16.mxu0 0
      %1121 = vmatpush1.bf16.msra.mxu0 0
      %1122 = vmatprep.mubr.bf16.mxu0 0
      %1123 = vmatmul.mubr.bf16.gmra.mrb[0].mxu0 %v739
      %v1124 = vpop.f32.mrb[0].mxu0
      %v1125 = vadd.f32 %v980, %v1124
      %v1126 = vpop.f32.mrb[0].mxu0
      %v1127 = vpop.f32.mrb[0].mxu0
      %v1128 = vadd.f32 %v983, %v1127
      %v1129 = vpop.f32.mrb[0].mxu0
      %1130 = vmatprep.mubr.bf16.mxu0 0
      %1131 = vmatmul.mubr.bf16.gmra.mrb[0].mxu0 %v740
      %v1132 = vpop.f32.mrb[0].mxu0
      %v1133 = vadd.f32 %v988, %v1132
      %v1134 = vpop.f32.mrb[0].mxu0
      %v1135 = vpop.f32.mrb[0].mxu0
      %v1136 = vadd.f32 %v991, %v1135
      %v1137 = vpop.f32.mrb[0].mxu0
      %1138 = vmatprep.mubr.bf16.mxu0 0
      %1139 = vmatmul.mubr.bf16.gmra.mrb[0].mxu0 %v741
      %v1140 = vpop.f32.mrb[0].mxu0
      %v1141 = vadd.f32 %v996, %v1140
      %v1142 = vpop.f32.mrb[0].mxu0
      %v1143 = vpop.f32.mrb[0].mxu0
      %v1144 = vadd.f32 %v999, %v1143
      %v1145 = vpop.f32.mrb[0].mxu0
      %1146 = vmatprep.mubr.bf16.mxu0 0
      %1147 = vmatmul.mubr.bf16.gmra.mrb[0].mxu0 %v742
      %v1148 = vpop.f32.mrb[0].mxu0
      %v1149 = vadd.f32 %v1004, %v1148
      %v1150 = vpop.f32.mrb[0].mxu0
      %v1151 = vpop.f32.mrb[0].mxu0
      %v1152 = vadd.f32 %v1007, %v1151
      %v1153 = vpop.f32.mrb[0].mxu0
      %1154 = vmatprep.mubr.bf16.mxu0 0
      %1155 = vmatmul.mubr.bf16.gmra.mrb[0].mxu0 %v743
      %v1156 = vpop.f32.mrb[0].mxu0
      %v1157 = vadd.f32 %v1012, %v1156
      %v1158 = vpop.f32.mrb[0].mxu0
      %v1159 = vpop.f32.mrb[0].mxu0
      %v1160 = vadd.f32 %v1015, %v1159
      %v1161 = vpop.f32.mrb[0].mxu0
      %1162 = vmatprep.mubr.bf16.mxu0 0
      %1163 = vmatmul.mubr.bf16.gmra.mrb[0].mxu0 %v744
      %v1164 = vpop.f32.mrb[0].mxu0
      %v1165 = vadd.f32 %v1020, %v1164
      %v1166 = vpop.f32.mrb[0].mxu0
      %v1167 = vpop.f32.mrb[0].mxu0
      %v1168 = vadd.f32 %v1023, %v1167
      %v1169 = vpop.f32.mrb[0].mxu0
      %1170 = vmatprep.mubr.bf16.mxu0 0
      %1171 = vmatmul.mubr.bf16.gmra.mrb[0].mxu0 %v745
      %v1172 = vpop.f32.mrb[0].mxu0
      %v1173 = vadd.f32 %v1028, %v1172
      %v1174 = vpop.f32.mrb[0].mxu0
      %v1175 = vpop.f32.mrb[0].mxu0
      %v1176 = vadd.f32 %v1031, %v1175
      %v1177 = vpop.f32.mrb[0].mxu0
      %1178 = vmatprep.mubr.bf16.mxu0 0
      %1179 = vmatmul.mubr.bf16.gmra.mrb[0].mxu0 %v746
      %v1180 = vpop.f32.mrb[0].mxu0
      %v1181 = vadd.f32 %v1036, %v1180
      %v1182 = vpop.f32.mrb[0].mxu0
      %v1183 = vpop.f32.mrb[0].mxu0
      %v1184 = vadd.f32 %v1039, %v1183
      %v1185 = vpop.f32.mrb[0].mxu0
      %1186 = vdwg.mxu0
      %vm1203 = vcmask 1046528
      %v1204 = vrot.slane %v739, 1
      %v1205 = vrot.slane %v749, 1
      %v1206 = vsel %vm1203, %v1204, %v1205
      %v1207 = vrot.slane %v740, 1
      %v1208 = vrot.slane %v750, 1
      %v1209 = vsel %vm1203, %v1207, %v1208
      %v1210 = vrot.slane %v741, 1
      %v1211 = vrot.slane %v751, 1
      %v1212 = vsel %vm1203, %v1210, %v1211
      %v1213 = vrot.slane %v742, 1
      %v1214 = vrot.slane %v752, 1
      %v1215 = vsel %vm1203, %v1213, %v1214
      %v1216 = vrot.slane %v743, 1
      %v1217 = vrot.slane %v753, 1
      %v1218 = vsel %vm1203, %v1216, %v1217
      %v1219 = vrot.slane %v744, 1
      %v1220 = vrot.slane %v754, 1
      %v1221 = vsel %vm1203, %v1219, %v1220
      %v1222 = vrot.slane %v745, 1
      %v1223 = vrot.slane %v755, 1
      %v1224 = vsel %vm1203, %v1222, %v1223
      %v1225 = vrot.slane %v746, 1
      %v1226 = vrot.slane %v756, 1
      %v1227 = vsel %vm1203, %v1225, %v1226
      %s1236 = scalar_lea.vmem %s5, 128
      %v1237 = vld [vmem:[%s1236] sm:$0xf]
      %v1238 = vld [vmem:[%s1236 + $0x4] sm:$0xf]
      %v1239 = vld [vmem:[%s1236 + $0x8] sm:$0xf]
      %v1240 = vld [vmem:[%s1236 + $0xc] sm:$0xf]
      %v1241 = vld [vmem:[%s1236 + $0x10] sm:$0xf]
      %v1242 = vld [vmem:[%s1236 + $0x14] sm:$0xf]
      %v1243 = vld [vmem:[%s1236 + $0x18] sm:$0xf]
      %v1244 = vld [vmem:[%s1236 + $0x1c] sm:$0xf]
      %v1245 = vld [vmem:[%s1236 + $0x20] sm:$0xf]
      %v1246 = vld [vmem:[%s1236 + $0x24] sm:$0xf]
      %v1247 = vld [vmem:[%s1236 + $0x28] sm:$0xf]
      %v1248 = vld [vmem:[%s1236 + $0x2c] sm:$0xf]
      %v1249 = vld [vmem:[%s1236 + $0x30] sm:$0xf]
      %v1250 = vld [vmem:[%s1236 + $0x34] sm:$0xf]
      %v1251 = vld [vmem:[%s1236 + $0x38] sm:$0xf]
      %v1252 = vld [vmem:[%s1236 + $0x3c] sm:$0xf]
      %v1269 = vunpack.c.l.b16 %v1237
      %v1270 = vunpack.c.l.b16 %v1238
      %v1271 = vunpack.c.l.b16 %v1239
      %v1272 = vunpack.c.l.b16 %v1240
      %v1273 = vunpack.c.l.b16 %v1241
      %v1274 = vunpack.c.l.b16 %v1242
      %v1275 = vunpack.c.l.b16 %v1243
      %v1276 = vunpack.c.l.b16 %v1244
      %v1277 = vunpack.c.l.b16 %v1245
      %v1278 = vunpack.c.l.b16 %v1246
      %v1279 = vunpack.c.l.b16 %v1247
      %v1280 = vunpack.c.l.b16 %v1248
      %v1281 = vunpack.c.l.b16 %v1249
      %v1282 = vunpack.c.l.b16 %v1250
      %v1283 = vunpack.c.l.b16 %v1251
      %v1284 = vunpack.c.l.b16 %v1252
      %v1285 = vpack.c.b16 %v1270, %v1269
      %v1286 = vpack.c.b16 %v1272, %v1271
      %v1287 = vpack.c.b16 %v1274, %v1273
      %v1288 = vpack.c.b16 %v1276, %v1275
      %v1289 = vpack.c.b16 %v1278, %v1277
      %v1290 = vpack.c.b16 %v1280, %v1279
      %v1291 = vpack.c.b16 %v1282, %v1281
      %v1292 = vpack.c.b16 %v1284, %v1283
      %1301 = vmatprep.subr.bf16.mxu0 0
      %1302 = vmatpush1.bf16.msra.mxu0 %v1285
      %1303 = vmatprep.subr.bf16.mxu0 0
      %1304 = vmatpush1.bf16.msra.mxu0 %v1286
      %1305 = vmatprep.subr.bf16.mxu0 0
      %1306 = vmatpush1.bf16.msra.mxu0 %v1287
      %1307 = vmatprep.subr.bf16.mxu0 0
      %1308 = vmatpush1.bf16.msra.mxu0 %v1288
      %1309 = vmatprep.subr.bf16.mxu0 0
      %1310 = vmatpush1.bf16.msra.mxu0 %v1289
      %1311 = vmatprep.subr.bf16.mxu0 0
      %1312 = vmatpush1.bf16.msra.mxu0 %v1290
      %1313 = vmatprep.subr.bf16.mxu0 0
      %1314 = vmatpush1.bf16.msra.mxu0 %v1291
      %1315 = vmatprep.subr.bf16.mxu0 0
      %1316 = vmatpush1.bf16.msra.mxu0 %v1292
      %1317 = vmatprep.subr.bf16.mxu0 0
      %1318 = vmatpush1.bf16.msra.mxu0 0
      %1319 = vmatprep.subr.bf16.mxu0 0
      %1320 = vmatpush1.bf16.msra.mxu0 0
      %1321 = vmatprep.subr.bf16.mxu0 0
      %1322 = vmatpush1.bf16.msra.mxu0 0
      %1323 = vmatprep.subr.bf16.mxu0 0
      %1324 = vmatpush1.bf16.msra.mxu0 0
      %1325 = vmatprep.subr.bf16.mxu0 0
      %1326 = vmatpush1.bf16.msra.mxu0 0
      %1327 = vmatprep.subr.bf16.mxu0 0
      %1328 = vmatpush1.bf16.msra.mxu0 0
      %1329 = vmatprep.subr.bf16.mxu0 0
      %1330 = vmatpush1.bf16.msra.mxu0 0
      %1331 = vmatprep.subr.bf16.mxu0 0
      %1332 = vmatpush1.bf16.msra.mxu0 0
      %1333 = vmatprep.mubr.bf16.mxu0 0
      %1334 = vmatmul.mubr.bf16.gmra.mrb[0].mxu0 %v1206
      %v1335 = vpop.f32.mrb[0].mxu0
      %v1336 = vadd.f32 0.0, %v1335
      %v1337 = vpop.f32.mrb[0].mxu0
      %v1338 = vpop.f32.mrb[0].mxu0
      %v1339 = vadd.f32 0.0, %v1338
      %v1340 = vpop.f32.mrb[0].mxu0
      %1341 = vmatprep.mubr.bf16.mxu0 0
      %1342 = vmatmul.mubr.bf16.gmra.mrb[0].mxu0 %v1209
      %v1343 = vpop.f32.mrb[0].mxu0
      %v1344 = vadd.f32 0.0, %v1343
      %v1345 = vpop.f32.mrb[0].mxu0
      %v1346 = vpop.f32.mrb[0].mxu0
      %v1347 = vadd.f32 0.0, %v1346
      %v1348 = vpop.f32.mrb[0].mxu0
      %1349 = vmatprep.mubr.bf16.mxu0 0
      %1350 = vmatmul.mubr.bf16.gmra.mrb[0].mxu0 %v1212
      %v1351 = vpop.f32.mrb[0].mxu0
      %v1352 = vadd.f32 0.0, %v1351
      %v1353 = vpop.f32.mrb[0].mxu0
      %v1354 = vpop.f32.mrb[0].mxu0
      %v1355 = vadd.f32 0.0, %v1354
      %v1356 = vpop.f32.mrb[0].mxu0
      %1357 = vmatprep.mubr.bf16.mxu0 0
      %1358 = vmatmul.mubr.bf16.gmra.mrb[0].mxu0 %v1215
      %v1359 = vpop.f32.mrb[0].mxu0
      %v1360 = vadd.f32 0.0, %v1359
      %v1361 = vpop.f32.mrb[0].mxu0
      %v1362 = vpop.f32.mrb[0].mxu0
      %v1363 = vadd.f32 0.0, %v1362
      %v1364 = vpop.f32.mrb[0].mxu0
      %1365 = vmatprep.mubr.bf16.mxu0 0
      %1366 = vmatmul.mubr.bf16.gmra.mrb[0].mxu0 %v1218
      %v1367 = vpop.f32.mrb[0].mxu0
      %v1368 = vadd.f32 0.0, %v1367
      %v1369 = vpop.f32.mrb[0].mxu0
      %v1370 = vpop.f32.mrb[0].mxu0
      %v1371 = vadd.f32 0.0, %v1370
      %v1372 = vpop.f32.mrb[0].mxu0
      %1373 = vmatprep.mubr.bf16.mxu0 0
      %1374 = vmatmul.mubr.bf16.gmra.mrb[0].mxu0 %v1221
      %v1375 = vpop.f32.mrb[0].mxu0
      %v1376 = vadd.f32 0.0, %v1375
      %v1377 = vpop.f32.mrb[0].mxu0
      %v1378 = vpop.f32.mrb[0].mxu0
      %v1379 = vadd.f32 0.0, %v1378
      %v1380 = vpop.f32.mrb[0].mxu0
      %1381 = vmatprep.mubr.bf16.mxu0 0
      %1382 = vmatmul.mubr.bf16.gmra.mrb[0].mxu0 %v1224
      %v1383 = vpop.f32.mrb[0].mxu0
      %v1384 = vadd.f32 0.0, %v1383
      %v1385 = vpop.f32.mrb[0].mxu0
      %v1386 = vpop.f32.mrb[0].mxu0
      %v1387 = vadd.f32 0.0, %v1386
      %v1388 = vpop.f32.mrb[0].mxu0
      %1389 = vmatprep.mubr.bf16.mxu0 0
      %1390 = vmatmul.mubr.bf16.gmra.mrb[0].mxu0 %v1227
      %v1391 = vpop.f32.mrb[0].mxu0
      %v1392 = vadd.f32 0.0, %v1391
      %v1393 = vpop.f32.mrb[0].mxu0
      %v1394 = vpop.f32.mrb[0].mxu0
      %v1395 = vadd.f32 0.0, %v1394
      %v1396 = vpop.f32.mrb[0].mxu0
      %1397 = vdwg.mxu0
      %v1398 = vadd.f32 %v1125, %v1336
      %v1399 = vadd.f32 %v1128, %v1339
      %v1400 = vadd.f32 %v1133, %v1344
      %v1401 = vadd.f32 %v1136, %v1347
      %v1402 = vadd.f32 %v1141, %v1352
      %v1403 = vadd.f32 %v1144, %v1355
      %v1404 = vadd.f32 %v1149, %v1360
      %v1405 = vadd.f32 %v1152, %v1363
      %v1406 = vadd.f32 %v1157, %v1368
      %v1407 = vadd.f32 %v1160, %v1371
      %v1408 = vadd.f32 %v1165, %v1376
      %v1409 = vadd.f32 %v1168, %v1379
      %v1410 = vadd.f32 %v1173, %v1384
      %v1411 = vadd.f32 %v1176, %v1387
      %v1412 = vadd.f32 %v1181, %v1392
      %v1413 = vadd.f32 %v1184, %v1395
      %s1414 = scalar_lea.vmem %s5, 192
      %v1415 = vld [vmem:[%s1414] sm:$0xf]
      %v1416 = vld [vmem:[%s1414 + $0x4] sm:$0xf]
      %v1417 = vld [vmem:[%s1414 + $0x8] sm:$0xf]
      %v1418 = vld [vmem:[%s1414 + $0xc] sm:$0xf]
      %v1419 = vld [vmem:[%s1414 + $0x10] sm:$0xf]
      %v1420 = vld [vmem:[%s1414 + $0x14] sm:$0xf]
      %v1421 = vld [vmem:[%s1414 + $0x18] sm:$0xf]
      %v1422 = vld [vmem:[%s1414 + $0x1c] sm:$0xf]
      %v1423 = vld [vmem:[%s1414 + $0x20] sm:$0xf]
      %v1424 = vld [vmem:[%s1414 + $0x24] sm:$0xf]
      %v1425 = vld [vmem:[%s1414 + $0x28] sm:$0xf]
      %v1426 = vld [vmem:[%s1414 + $0x2c] sm:$0xf]
      %v1427 = vld [vmem:[%s1414 + $0x30] sm:$0xf]
      %v1428 = vld [vmem:[%s1414 + $0x34] sm:$0xf]
      %v1429 = vld [vmem:[%s1414 + $0x38] sm:$0xf]
      %v1430 = vld [vmem:[%s1414 + $0x3c] sm:$0xf]
      %v1447 = vunpack.c.l.b16 %v1415
      %v1448 = vunpack.c.l.b16 %v1416
      %v1449 = vunpack.c.l.b16 %v1417
      %v1450 = vunpack.c.l.b16 %v1418
      %v1451 = vunpack.c.l.b16 %v1419
      %v1452 = vunpack.c.l.b16 %v1420
      %v1453 = vunpack.c.l.b16 %v1421
      %v1454 = vunpack.c.l.b16 %v1422
      %v1455 = vunpack.c.l.b16 %v1423
      %v1456 = vunpack.c.l.b16 %v1424
      %v1457 = vunpack.c.l.b16 %v1425
      %v1458 = vunpack.c.l.b16 %v1426
      %v1459 = vunpack.c.l.b16 %v1427
      %v1460 = vunpack.c.l.b16 %v1428
      %v1461 = vunpack.c.l.b16 %v1429
      %v1462 = vunpack.c.l.b16 %v1430
      %v1463 = vpack.c.b16 %v1448, %v1447
      %v1464 = vpack.c.b16 %v1450, %v1449
      %v1465 = vpack.c.b16 %v1452, %v1451
      %v1466 = vpack.c.b16 %v1454, %v1453
      %v1467 = vpack.c.b16 %v1456, %v1455
      %v1468 = vpack.c.b16 %v1458, %v1457
      %v1469 = vpack.c.b16 %v1460, %v1459
      %v1470 = vpack.c.b16 %v1462, %v1461
      %1479 = vmatprep.subr.bf16.mxu0 0
      %1480 = vmatpush1.bf16.msra.mxu0 %v1463
      %1481 = vmatprep.subr.bf16.mxu0 0
      %1482 = vmatpush1.bf16.msra.mxu0 %v1464
      %1483 = vmatprep.subr.bf16.mxu0 0
      %1484 = vmatpush1.bf16.msra.mxu0 %v1465
      %1485 = vmatprep.subr.bf16.mxu0 0
      %1486 = vmatpush1.bf16.msra.mxu0 %v1466
      %1487 = vmatprep.subr.bf16.mxu0 0
      %1488 = vmatpush1.bf16.msra.mxu0 %v1467
      %1489 = vmatprep.subr.bf16.mxu0 0
      %1490 = vmatpush1.bf16.msra.mxu0 %v1468
      %1491 = vmatprep.subr.bf16.mxu0 0
      %1492 = vmatpush1.bf16.msra.mxu0 %v1469
      %1493 = vmatprep.subr.bf16.mxu0 0
      %1494 = vmatpush1.bf16.msra.mxu0 %v1470
      %1495 = vmatprep.subr.bf16.mxu0 0
      %1496 = vmatpush1.bf16.msra.mxu0 0
      %1497 = vmatprep.subr.bf16.mxu0 0
      %1498 = vmatpush1.bf16.msra.mxu0 0
      %1499 = vmatprep.subr.bf16.mxu0 0
      %1500 = vmatpush1.bf16.msra.mxu0 0
      %1501 = vmatprep.subr.bf16.mxu0 0
      %1502 = vmatpush1.bf16.msra.mxu0 0
      %1503 = vmatprep.subr.bf16.mxu0 0
      %1504 = vmatpush1.bf16.msra.mxu0 0
      %1505 = vmatprep.subr.bf16.mxu0 0
      %1506 = vmatpush1.bf16.msra.mxu0 0
      %1507 = vmatprep.subr.bf16.mxu0 0
      %1508 = vmatpush1.bf16.msra.mxu0 0
      %1509 = vmatprep.subr.bf16.mxu0 0
      %1510 = vmatpush1.bf16.msra.mxu0 0
      %1511 = vmatprep.mubr.bf16.mxu0 0
      %1512 = vmatmul.mubr.bf16.gmra.mrb[0].mxu0 %v740
      %v1513 = vpop.f32.mrb[0].mxu0
      %v1514 = vadd.f32 0.0, %v1513
      %v1515 = vpop.f32.mrb[0].mxu0
      %v1516 = vpop.f32.mrb[0].mxu0
      %v1517 = vadd.f32 0.0, %v1516
      %v1518 = vpop.f32.mrb[0].mxu0
      %1519 = vmatprep.mubr.bf16.mxu0 0
      %1520 = vmatmul.mubr.bf16.gmra.mrb[0].mxu0 %v741
      %v1521 = vpop.f32.mrb[0].mxu0
      %v1522 = vadd.f32 0.0, %v1521
      %v1523 = vpop.f32.mrb[0].mxu0
      %v1524 = vpop.f32.mrb[0].mxu0
      %v1525 = vadd.f32 0.0, %v1524
      %v1526 = vpop.f32.mrb[0].mxu0
      %1527 = vmatprep.mubr.bf16.mxu0 0
      %1528 = vmatmul.mubr.bf16.gmra.mrb[0].mxu0 %v742
      %v1529 = vpop.f32.mrb[0].mxu0
      %v1530 = vadd.f32 0.0, %v1529
      %v1531 = vpop.f32.mrb[0].mxu0
      %v1532 = vpop.f32.mrb[0].mxu0
      %v1533 = vadd.f32 0.0, %v1532
      %v1534 = vpop.f32.mrb[0].mxu0
      %1535 = vmatprep.mubr.bf16.mxu0 0
      %1536 = vmatmul.mubr.bf16.gmra.mrb[0].mxu0 %v743
      %v1537 = vpop.f32.mrb[0].mxu0
      %v1538 = vadd.f32 0.0, %v1537
      %v1539 = vpop.f32.mrb[0].mxu0
      %v1540 = vpop.f32.mrb[0].mxu0
      %v1541 = vadd.f32 0.0, %v1540
      %v1542 = vpop.f32.mrb[0].mxu0
      %1543 = vmatprep.mubr.bf16.mxu0 0
      %1544 = vmatmul.mubr.bf16.gmra.mrb[0].mxu0 %v744
      %v1545 = vpop.f32.mrb[0].mxu0
      %v1546 = vadd.f32 0.0, %v1545
      %v1547 = vpop.f32.mrb[0].mxu0
      %v1548 = vpop.f32.mrb[0].mxu0
      %v1549 = vadd.f32 0.0, %v1548
      %v1550 = vpop.f32.mrb[0].mxu0
      %1551 = vmatprep.mubr.bf16.mxu0 0
      %1552 = vmatmul.mubr.bf16.gmra.mrb[0].mxu0 %v745
      %v1553 = vpop.f32.mrb[0].mxu0
      %v1554 = vadd.f32 0.0, %v1553
      %v1555 = vpop.f32.mrb[0].mxu0
      %v1556 = vpop.f32.mrb[0].mxu0
      %v1557 = vadd.f32 0.0, %v1556
      %v1558 = vpop.f32.mrb[0].mxu0
      %1559 = vmatprep.mubr.bf16.mxu0 0
      %1560 = vmatmul.mubr.bf16.gmra.mrb[0].mxu0 %v746
      %v1561 = vpop.f32.mrb[0].mxu0
      %v1562 = vadd.f32 0.0, %v1561
      %v1563 = vpop.f32.mrb[0].mxu0
      %v1564 = vpop.f32.mrb[0].mxu0
      %v1565 = vadd.f32 0.0, %v1564
      %v1566 = vpop.f32.mrb[0].mxu0
      %1567 = vmatprep.mubr.bf16.mxu0 0
      %1568 = vmatmul.mubr.bf16.gmra.mrb[0].mxu0 %v747
      %v1569 = vpop.f32.mrb[0].mxu0
      %v1570 = vadd.f32 0.0, %v1569
      %v1571 = vpop.f32.mrb[0].mxu0
      %v1572 = vpop.f32.mrb[0].mxu0
      %v1573 = vadd.f32 0.0, %v1572
      %v1574 = vpop.f32.mrb[0].mxu0
      %1575 = vdwg.mxu0
      %v1576 = vadd.f32 %v1398, %v1514
      %v1577 = vadd.f32 %v1399, %v1517
      %v1578 = vadd.f32 %v1400, %v1522
      %v1579 = vadd.f32 %v1401, %v1525
      %v1580 = vadd.f32 %v1402, %v1530
      %v1581 = vadd.f32 %v1403, %v1533
      %v1582 = vadd.f32 %v1404, %v1538
      %v1583 = vadd.f32 %v1405, %v1541
      %v1584 = vadd.f32 %v1406, %v1546
      %v1585 = vadd.f32 %v1407, %v1549
      %v1586 = vadd.f32 %v1408, %v1554
      %v1587 = vadd.f32 %v1409, %v1557
      %v1588 = vadd.f32 %v1410, %v1562
      %v1589 = vadd.f32 %v1411, %v1565
      %v1590 = vadd.f32 %v1412, %v1570
      %v1591 = vadd.f32 %v1413, %v1573
      %v1593 = vshrl.u32 %v747, 16
      %v1595 = vshll.u32 %v747, 16
      %v1597 = vrot.slane %v1595, 1
      %v1598 = vor.u32 %v1593, %v1597
      %v1600 = vshll.u32 %v757, 16
      %v1602 = vrot.slane %v1600, 1
      %v1603 = vsel %vm775, %v1598, %v1602
      %s1605 = scalar_lea.vmem %s5, 256
      %v1606 = vld [vmem:[%s1605] sm:$0xf]
      %v1607 = vld [vmem:[%s1605 + $0x4] sm:$0xf]
      %v1608 = vld [vmem:[%s1605 + $0x8] sm:$0xf]
      %v1609 = vld [vmem:[%s1605 + $0xc] sm:$0xf]
      %v1610 = vld [vmem:[%s1605 + $0x10] sm:$0xf]
      %v1611 = vld [vmem:[%s1605 + $0x14] sm:$0xf]
      %v1612 = vld [vmem:[%s1605 + $0x18] sm:$0xf]
      %v1613 = vld [vmem:[%s1605 + $0x1c] sm:$0xf]
      %v1614 = vld [vmem:[%s1605 + $0x20] sm:$0xf]
      %v1615 = vld [vmem:[%s1605 + $0x24] sm:$0xf]
      %v1616 = vld [vmem:[%s1605 + $0x28] sm:$0xf]
      %v1617 = vld [vmem:[%s1605 + $0x2c] sm:$0xf]
      %v1618 = vld [vmem:[%s1605 + $0x30] sm:$0xf]
      %v1619 = vld [vmem:[%s1605 + $0x34] sm:$0xf]
      %v1620 = vld [vmem:[%s1605 + $0x38] sm:$0xf]
      %v1621 = vld [vmem:[%s1605 + $0x3c] sm:$0xf]
      %v1638 = vunpack.c.l.b16 %v1606
      %v1639 = vunpack.c.l.b16 %v1607
      %v1640 = vunpack.c.l.b16 %v1608
      %v1641 = vunpack.c.l.b16 %v1609
      %v1642 = vunpack.c.l.b16 %v1610
      %v1643 = vunpack.c.l.b16 %v1611
      %v1644 = vunpack.c.l.b16 %v1612
      %v1645 = vunpack.c.l.b16 %v1613
      %v1646 = vunpack.c.l.b16 %v1614
      %v1647 = vunpack.c.l.b16 %v1615
      %v1648 = vunpack.c.l.b16 %v1616
      %v1649 = vunpack.c.l.b16 %v1617
      %v1650 = vunpack.c.l.b16 %v1618
      %v1651 = vunpack.c.l.b16 %v1619
      %v1652 = vunpack.c.l.b16 %v1620
      %v1653 = vunpack.c.l.b16 %v1621
      %v1654 = vpack.c.b16 %v1639, %v1638
      %v1655 = vpack.c.b16 %v1641, %v1640
      %v1656 = vpack.c.b16 %v1643, %v1642
      %v1657 = vpack.c.b16 %v1645, %v1644
      %v1658 = vpack.c.b16 %v1647, %v1646
      %v1659 = vpack.c.b16 %v1649, %v1648
      %v1660 = vpack.c.b16 %v1651, %v1650
      %v1661 = vpack.c.b16 %v1653, %v1652
      %1670 = vmatprep.subr.bf16.mxu0 0
      %1671 = vmatpush1.bf16.msra.mxu0 %v1654
      %1672 = vmatprep.subr.bf16.mxu0 0
      %1673 = vmatpush1.bf16.msra.mxu0 %v1655
      %1674 = vmatprep.subr.bf16.mxu0 0
      %1675 = vmatpush1.bf16.msra.mxu0 %v1656
      %1676 = vmatprep.subr.bf16.mxu0 0
      %1677 = vmatpush1.bf16.msra.mxu0 %v1657
      %1678 = vmatprep.subr.bf16.mxu0 0
      %1679 = vmatpush1.bf16.msra.mxu0 %v1658
      %1680 = vmatprep.subr.bf16.mxu0 0
      %1681 = vmatpush1.bf16.msra.mxu0 %v1659
      %1682 = vmatprep.subr.bf16.mxu0 0
      %1683 = vmatpush1.bf16.msra.mxu0 %v1660
      %1684 = vmatprep.subr.bf16.mxu0 0
      %1685 = vmatpush1.bf16.msra.mxu0 %v1661
      %1686 = vmatprep.subr.bf16.mxu0 0
      %1687 = vmatpush1.bf16.msra.mxu0 0
      %1688 = vmatprep.subr.bf16.mxu0 0
      %1689 = vmatpush1.bf16.msra.mxu0 0
      %1690 = vmatprep.subr.bf16.mxu0 0
      %1691 = vmatpush1.bf16.msra.mxu0 0
      %1692 = vmatprep.subr.bf16.mxu0 0
      %1693 = vmatpush1.bf16.msra.mxu0 0
      %1694 = vmatprep.subr.bf16.mxu0 0
      %1695 = vmatpush1.bf16.msra.mxu0 0
      %1696 = vmatprep.subr.bf16.mxu0 0
      %1697 = vmatpush1.bf16.msra.mxu0 0
      %1698 = vmatprep.subr.bf16.mxu0 0
      %1699 = vmatpush1.bf16.msra.mxu0 0
      %1700 = vmatprep.subr.bf16.mxu0 0
      %1701 = vmatpush1.bf16.msra.mxu0 0
      %1702 = vmatprep.mubr.bf16.mxu0 0
      %1703 = vmatmul.mubr.bf16.gmra.mrb[0].mxu0 %v799
      %v1704 = vpop.f32.mrb[0].mxu0
      %v1705 = vadd.f32 0.0, %v1704
      %v1706 = vpop.f32.mrb[0].mxu0
      %v1707 = vpop.f32.mrb[0].mxu0
      %v1708 = vadd.f32 0.0, %v1707
      %v1709 = vpop.f32.mrb[0].mxu0
      %1710 = vmatprep.mubr.bf16.mxu0 0
      %1711 = vmatmul.mubr.bf16.gmra.mrb[0].mxu0 %v811
      %v1712 = vpop.f32.mrb[0].mxu0
      %v1713 = vadd.f32 0.0, %v1712
      %v1714 = vpop.f32.mrb[0].mxu0
      %v1715 = vpop.f32.mrb[0].mxu0
      %v1716 = vadd.f32 0.0, %v1715
      %v1717 = vpop.f32.mrb[0].mxu0
      %1718 = vmatprep.mubr.bf16.mxu0 0
      %1719 = vmatmul.mubr.bf16.gmra.mrb[0].mxu0 %v823
      %v1720 = vpop.f32.mrb[0].mxu0
      %v1721 = vadd.f32 0.0, %v1720
      %v1722 = vpop.f32.mrb[0].mxu0
      %v1723 = vpop.f32.mrb[0].mxu0
      %v1724 = vadd.f32 0.0, %v1723
      %v1725 = vpop.f32.mrb[0].mxu0
      %1726 = vmatprep.mubr.bf16.mxu0 0
      %1727 = vmatmul.mubr.bf16.gmra.mrb[0].mxu0 %v835
      %v1728 = vpop.f32.mrb[0].mxu0
      %v1729 = vadd.f32 0.0, %v1728
      %v1730 = vpop.f32.mrb[0].mxu0
      %v1731 = vpop.f32.mrb[0].mxu0
      %v1732 = vadd.f32 0.0, %v1731
      %v1733 = vpop.f32.mrb[0].mxu0
      %1734 = vmatprep.mubr.bf16.mxu0 0
      %1735 = vmatmul.mubr.bf16.gmra.mrb[0].mxu0 %v847
      %v1736 = vpop.f32.mrb[0].mxu0
      %v1737 = vadd.f32 0.0, %v1736
      %v1738 = vpop.f32.mrb[0].mxu0
      %v1739 = vpop.f32.mrb[0].mxu0
      %v1740 = vadd.f32 0.0, %v1739
      %v1741 = vpop.f32.mrb[0].mxu0
      %1742 = vmatprep.mubr.bf16.mxu0 0
      %1743 = vmatmul.mubr.bf16.gmra.mrb[0].mxu0 %v859
      %v1744 = vpop.f32.mrb[0].mxu0
      %v1745 = vadd.f32 0.0, %v1744
      %v1746 = vpop.f32.mrb[0].mxu0
      %v1747 = vpop.f32.mrb[0].mxu0
      %v1748 = vadd.f32 0.0, %v1747
      %v1749 = vpop.f32.mrb[0].mxu0
      %1750 = vmatprep.mubr.bf16.mxu0 0
      %1751 = vmatmul.mubr.bf16.gmra.mrb[0].mxu0 %v871
      %v1752 = vpop.f32.mrb[0].mxu0
      %v1753 = vadd.f32 0.0, %v1752
      %v1754 = vpop.f32.mrb[0].mxu0
      %v1755 = vpop.f32.mrb[0].mxu0
      %v1756 = vadd.f32 0.0, %v1755
      %v1757 = vpop.f32.mrb[0].mxu0
      %1758 = vmatprep.mubr.bf16.mxu0 0
      %1759 = vmatmul.mubr.bf16.gmra.mrb[0].mxu0 %v1603
      %v1760 = vpop.f32.mrb[0].mxu0
      %v1761 = vadd.f32 0.0, %v1760
      %v1762 = vpop.f32.mrb[0].mxu0
      %v1763 = vpop.f32.mrb[0].mxu0
      %v1764 = vadd.f32 0.0, %v1763
      %v1765 = vpop.f32.mrb[0].mxu0
      %1766 = vdwg.mxu0
      %v1767 = vadd.f32 %v1576, %v1705
      %v1768 = vadd.f32 %v1577, %v1708
      %v1769 = vadd.f32 %v1578, %v1713
      %v1770 = vadd.f32 %v1579, %v1716
      %v1771 = vadd.f32 %v1580, %v1721
      %v1772 = vadd.f32 %v1581, %v1724
      %v1773 = vadd.f32 %v1582, %v1729
      %v1774 = vadd.f32 %v1583, %v1732
      %v1775 = vadd.f32 %v1584, %v1737
      %v1776 = vadd.f32 %v1585, %v1740
      %v1777 = vadd.f32 %v1586, %v1745
      %v1778 = vadd.f32 %v1587, %v1748
      %v1779 = vadd.f32 %v1588, %v1753
      %v1780 = vadd.f32 %v1589, %v1756
      %v1781 = vadd.f32 %v1590, %v1761
      %v1782 = vadd.f32 %v1591, %v1764
      %v1785 = vrot.slane %v747, 1
      %v1786 = vrot.slane %v757, 1
      %v1787 = vsel %vm1203, %v1785, %v1786
      %s1789 = scalar_lea.vmem %s5, 320
      %v1790 = vld [vmem:[%s1789] sm:$0xf]
      %v1791 = vld [vmem:[%s1789 + $0x4] sm:$0xf]
      %v1792 = vld [vmem:[%s1789 + $0x8] sm:$0xf]
      %v1793 = vld [vmem:[%s1789 + $0xc] sm:$0xf]
      %v1794 = vld [vmem:[%s1789 + $0x10] sm:$0xf]
      %v1795 = vld [vmem:[%s1789 + $0x14] sm:$0xf]
      %v1796 = vld [vmem:[%s1789 + $0x18] sm:$0xf]
      %v1797 = vld [vmem:[%s1789 + $0x1c] sm:$0xf]
      %v1798 = vld [vmem:[%s1789 + $0x20] sm:$0xf]
      %v1799 = vld [vmem:[%s1789 + $0x24] sm:$0xf]
      %v1800 = vld [vmem:[%s1789 + $0x28] sm:$0xf]
      %v1801 = vld [vmem:[%s1789 + $0x2c] sm:$0xf]
      %v1802 = vld [vmem:[%s1789 + $0x30] sm:$0xf]
      %v1803 = vld [vmem:[%s1789 + $0x34] sm:$0xf]
      %v1804 = vld [vmem:[%s1789 + $0x38] sm:$0xf]
      %v1805 = vld [vmem:[%s1789 + $0x3c] sm:$0xf]
      %v1822 = vunpack.c.l.b16 %v1790
      %v1823 = vunpack.c.l.b16 %v1791
      %v1824 = vunpack.c.l.b16 %v1792
      %v1825 = vunpack.c.l.b16 %v1793
      %v1826 = vunpack.c.l.b16 %v1794
      %v1827 = vunpack.c.l.b16 %v1795
      %v1828 = vunpack.c.l.b16 %v1796
      %v1829 = vunpack.c.l.b16 %v1797
      %v1830 = vunpack.c.l.b16 %v1798
      %v1831 = vunpack.c.l.b16 %v1799
      %v1832 = vunpack.c.l.b16 %v1800
      %v1833 = vunpack.c.l.b16 %v1801
      %v1834 = vunpack.c.l.b16 %v1802
      %v1835 = vunpack.c.l.b16 %v1803
      %v1836 = vunpack.c.l.b16 %v1804
      %v1837 = vunpack.c.l.b16 %v1805
      %v1838 = vpack.c.b16 %v1823, %v1822
      %v1839 = vpack.c.b16 %v1825, %v1824
      %v1840 = vpack.c.b16 %v1827, %v1826
      %v1841 = vpack.c.b16 %v1829, %v1828
      %v1842 = vpack.c.b16 %v1831, %v1830
      %v1843 = vpack.c.b16 %v1833, %v1832
      %v1844 = vpack.c.b16 %v1835, %v1834
      %v1845 = vpack.c.b16 %v1837, %v1836
      %1854 = vmatprep.subr.bf16.mxu0 0
      %1855 = vmatpush1.bf16.msra.mxu0 %v1838
      %1856 = vmatprep.subr.bf16.mxu0 0
      %1857 = vmatpush1.bf16.msra.mxu0 %v1839
      %1858 = vmatprep.subr.bf16.mxu0 0
      %1859 = vmatpush1.bf16.msra.mxu0 %v1840
      %1860 = vmatprep.subr.bf16.mxu0 0
      %1861 = vmatpush1.bf16.msra.mxu0 %v1841
      %1862 = vmatprep.subr.bf16.mxu0 0
      %1863 = vmatpush1.bf16.msra.mxu0 %v1842
      %1864 = vmatprep.subr.bf16.mxu0 0
      %1865 = vmatpush1.bf16.msra.mxu0 %v1843
      %1866 = vmatprep.subr.bf16.mxu0 0
      %1867 = vmatpush1.bf16.msra.mxu0 %v1844
      %1868 = vmatprep.subr.bf16.mxu0 0
      %1869 = vmatpush1.bf16.msra.mxu0 %v1845
      %1870 = vmatprep.subr.bf16.mxu0 0
      %1871 = vmatpush1.bf16.msra.mxu0 0
      %1872 = vmatprep.subr.bf16.mxu0 0
      %1873 = vmatpush1.bf16.msra.mxu0 0
      %1874 = vmatprep.subr.bf16.mxu0 0
      %1875 = vmatpush1.bf16.msra.mxu0 0
      %1876 = vmatprep.subr.bf16.mxu0 0
      %1877 = vmatpush1.bf16.msra.mxu0 0
      %1878 = vmatprep.subr.bf16.mxu0 0
      %1879 = vmatpush1.bf16.msra.mxu0 0
      %1880 = vmatprep.subr.bf16.mxu0 0
      %1881 = vmatpush1.bf16.msra.mxu0 0
      %1882 = vmatprep.subr.bf16.mxu0 0
      %1883 = vmatpush1.bf16.msra.mxu0 0
      %1884 = vmatprep.subr.bf16.mxu0 0
      %1885 = vmatpush1.bf16.msra.mxu0 0
      %1886 = vmatprep.mubr.bf16.mxu0 0
      %1887 = vmatmul.mubr.bf16.gmra.mrb[0].mxu0 %v1209
      %v1888 = vpop.f32.mrb[0].mxu0
      %v1889 = vadd.f32 0.0, %v1888
      %v1890 = vpop.f32.mrb[0].mxu0
      %v1891 = vpop.f32.mrb[0].mxu0
      %v1892 = vadd.f32 0.0, %v1891
      %v1893 = vpop.f32.mrb[0].mxu0
      %1894 = vmatprep.mubr.bf16.mxu0 0
      %1895 = vmatmul.mubr.bf16.gmra.mrb[0].mxu0 %v1212
      %v1896 = vpop.f32.mrb[0].mxu0
      %v1897 = vadd.f32 0.0, %v1896
      %v1898 = vpop.f32.mrb[0].mxu0
      %v1899 = vpop.f32.mrb[0].mxu0
      %v1900 = vadd.f32 0.0, %v1899
      %v1901 = vpop.f32.mrb[0].mxu0
      %1902 = vmatprep.mubr.bf16.mxu0 0
      %1903 = vmatmul.mubr.bf16.gmra.mrb[0].mxu0 %v1215
      %v1904 = vpop.f32.mrb[0].mxu0
      %v1905 = vadd.f32 0.0, %v1904
      %v1906 = vpop.f32.mrb[0].mxu0
      %v1907 = vpop.f32.mrb[0].mxu0
      %v1908 = vadd.f32 0.0, %v1907
      %v1909 = vpop.f32.mrb[0].mxu0
      %1910 = vmatprep.mubr.bf16.mxu0 0
      %1911 = vmatmul.mubr.bf16.gmra.mrb[0].mxu0 %v1218
      %v1912 = vpop.f32.mrb[0].mxu0
      %v1913 = vadd.f32 0.0, %v1912
      %v1914 = vpop.f32.mrb[0].mxu0
      %v1915 = vpop.f32.mrb[0].mxu0
      %v1916 = vadd.f32 0.0, %v1915
      %v1917 = vpop.f32.mrb[0].mxu0
      %1918 = vmatprep.mubr.bf16.mxu0 0
      %1919 = vmatmul.mubr.bf16.gmra.mrb[0].mxu0 %v1221
      %v1920 = vpop.f32.mrb[0].mxu0
      %v1921 = vadd.f32 0.0, %v1920
      %v1922 = vpop.f32.mrb[0].mxu0
      %v1923 = vpop.f32.mrb[0].mxu0
      %v1924 = vadd.f32 0.0, %v1923
      %v1925 = vpop.f32.mrb[0].mxu0
      %1926 = vmatprep.mubr.bf16.mxu0 0
      %1927 = vmatmul.mubr.bf16.gmra.mrb[0].mxu0 %v1224
      %v1928 = vpop.f32.mrb[0].mxu0
      %v1929 = vadd.f32 0.0, %v1928
      %v1930 = vpop.f32.mrb[0].mxu0
      %v1931 = vpop.f32.mrb[0].mxu0
      %v1932 = vadd.f32 0.0, %v1931
      %v1933 = vpop.f32.mrb[0].mxu0
      %1934 = vmatprep.mubr.bf16.mxu0 0
      %1935 = vmatmul.mubr.bf16.gmra.mrb[0].mxu0 %v1227
      %v1936 = vpop.f32.mrb[0].mxu0
      %v1937 = vadd.f32 0.0, %v1936
      %v1938 = vpop.f32.mrb[0].mxu0
      %v1939 = vpop.f32.mrb[0].mxu0
      %v1940 = vadd.f32 0.0, %v1939
      %v1941 = vpop.f32.mrb[0].mxu0
      %1942 = vmatprep.mubr.bf16.mxu0 0
      %1943 = vmatmul.mubr.bf16.gmra.mrb[0].mxu0 %v1787
      %v1944 = vpop.f32.mrb[0].mxu0
      %v1945 = vadd.f32 0.0, %v1944
      %v1946 = vpop.f32.mrb[0].mxu0
      %v1947 = vpop.f32.mrb[0].mxu0
      %v1948 = vadd.f32 0.0, %v1947
      %v1949 = vpop.f32.mrb[0].mxu0
      %1950 = vdwg.mxu0
      %v1951 = vadd.f32 %v1767, %v1889
      %v1952 = vadd.f32 %v1768, %v1892
      %v1953 = vadd.f32 %v1769, %v1897
      %v1954 = vadd.f32 %v1770, %v1900
      %v1955 = vadd.f32 %v1771, %v1905
      %v1956 = vadd.f32 %v1772, %v1908
      %v1957 = vadd.f32 %v1773, %v1913
      %v1958 = vadd.f32 %v1774, %v1916
      %v1959 = vadd.f32 %v1775, %v1921
      %v1960 = vadd.f32 %v1776, %v1924
      %v1961 = vadd.f32 %v1777, %v1929
      %v1962 = vadd.f32 %v1778, %v1932
      %v1963 = vadd.f32 %v1779, %v1937
      %v1964 = vadd.f32 %v1780, %v1940
      %v1965 = vadd.f32 %v1781, %v1945
      %v1966 = vadd.f32 %v1782, %v1948
      %s1967 = scalar_lea.vmem %s5, 384
      %v1968 = vld [vmem:[%s1967] sm:$0xf]
      %v1969 = vld [vmem:[%s1967 + $0x4] sm:$0xf]
      %v1970 = vld [vmem:[%s1967 + $0x8] sm:$0xf]
      %v1971 = vld [vmem:[%s1967 + $0xc] sm:$0xf]
      %v1972 = vld [vmem:[%s1967 + $0x10] sm:$0xf]
      %v1973 = vld [vmem:[%s1967 + $0x14] sm:$0xf]
      %v1974 = vld [vmem:[%s1967 + $0x18] sm:$0xf]
      %v1975 = vld [vmem:[%s1967 + $0x1c] sm:$0xf]
      %v1976 = vld [vmem:[%s1967 + $0x20] sm:$0xf]
      %v1977 = vld [vmem:[%s1967 + $0x24] sm:$0xf]
      %v1978 = vld [vmem:[%s1967 + $0x28] sm:$0xf]
      %v1979 = vld [vmem:[%s1967 + $0x2c] sm:$0xf]
      %v1980 = vld [vmem:[%s1967 + $0x30] sm:$0xf]
      %v1981 = vld [vmem:[%s1967 + $0x34] sm:$0xf]
      %v1982 = vld [vmem:[%s1967 + $0x38] sm:$0xf]
      %v1983 = vld [vmem:[%s1967 + $0x3c] sm:$0xf]
      %v2000 = vunpack.c.l.b16 %v1968
      %v2001 = vunpack.c.l.b16 %v1969
      %v2002 = vunpack.c.l.b16 %v1970
      %v2003 = vunpack.c.l.b16 %v1971
      %v2004 = vunpack.c.l.b16 %v1972
      %v2005 = vunpack.c.l.b16 %v1973
      %v2006 = vunpack.c.l.b16 %v1974
      %v2007 = vunpack.c.l.b16 %v1975
      %v2008 = vunpack.c.l.b16 %v1976
      %v2009 = vunpack.c.l.b16 %v1977
      %v2010 = vunpack.c.l.b16 %v1978
      %v2011 = vunpack.c.l.b16 %v1979
      %v2012 = vunpack.c.l.b16 %v1980
      %v2013 = vunpack.c.l.b16 %v1981
      %v2014 = vunpack.c.l.b16 %v1982
      %v2015 = vunpack.c.l.b16 %v1983
      %v2016 = vpack.c.b16 %v2001, %v2000
      %v2017 = vpack.c.b16 %v2003, %v2002
      %v2018 = vpack.c.b16 %v2005, %v2004
      %v2019 = vpack.c.b16 %v2007, %v2006
      %v2020 = vpack.c.b16 %v2009, %v2008
      %v2021 = vpack.c.b16 %v2011, %v2010
      %v2022 = vpack.c.b16 %v2013, %v2012
      %v2023 = vpack.c.b16 %v2015, %v2014
      %2032 = vmatprep.subr.bf16.mxu0 0
      %2033 = vmatpush1.bf16.msra.mxu0 %v2016
      %2034 = vmatprep.subr.bf16.mxu0 0
      %2035 = vmatpush1.bf16.msra.mxu0 %v2017
      %2036 = vmatprep.subr.bf16.mxu0 0
      %2037 = vmatpush1.bf16.msra.mxu0 %v2018
      %2038 = vmatprep.subr.bf16.mxu0 0
      %2039 = vmatpush1.bf16.msra.mxu0 %v2019
      %2040 = vmatprep.subr.bf16.mxu0 0
      %2041 = vmatpush1.bf16.msra.mxu0 %v2020
      %2042 = vmatprep.subr.bf16.mxu0 0
      %2043 = vmatpush1.bf16.msra.mxu0 %v2021
      %2044 = vmatprep.subr.bf16.mxu0 0
      %2045 = vmatpush1.bf16.msra.mxu0 %v2022
      %2046 = vmatprep.subr.bf16.mxu0 0
      %2047 = vmatpush1.bf16.msra.mxu0 %v2023
      %2048 = vmatprep.subr.bf16.mxu0 0
      %2049 = vmatpush1.bf16.msra.mxu0 0
      %2050 = vmatprep.subr.bf16.mxu0 0
      %2051 = vmatpush1.bf16.msra.mxu0 0
      %2052 = vmatprep.subr.bf16.mxu0 0
      %2053 = vmatpush1.bf16.msra.mxu0 0
      %2054 = vmatprep.subr.bf16.mxu0 0
      %2055 = vmatpush1.bf16.msra.mxu0 0
      %2056 = vmatprep.subr.bf16.mxu0 0
      %2057 = vmatpush1.bf16.msra.mxu0 0
      %2058 = vmatprep.subr.bf16.mxu0 0
      %2059 = vmatpush1.bf16.msra.mxu0 0
      %2060 = vmatprep.subr.bf16.mxu0 0
      %2061 = vmatpush1.bf16.msra.mxu0 0
      %2062 = vmatprep.subr.bf16.mxu0 0
      %2063 = vmatpush1.bf16.msra.mxu0 0
      %2064 = vmatprep.mubr.bf16.mxu0 0
      %2065 = vmatmul.mubr.bf16.gmra.mrb[0].mxu0 %v741
      %v2066 = vpop.f32.mrb[0].mxu0
      %v2067 = vadd.f32 0.0, %v2066
      %v2068 = vpop.f32.mrb[0].mxu0
      %v2069 = vpop.f32.mrb[0].mxu0
      %v2070 = vadd.f32 0.0, %v2069
      %v2071 = vpop.f32.mrb[0].mxu0
      %2072 = vmatprep.mubr.bf16.mxu0 0
      %2073 = vmatmul.mubr.bf16.gmra.mrb[0].mxu0 %v742
      %v2074 = vpop.f32.mrb[0].mxu0
      %v2075 = vadd.f32 0.0, %v2074
      %v2076 = vpop.f32.mrb[0].mxu0
      %v2077 = vpop.f32.mrb[0].mxu0
      %v2078 = vadd.f32 0.0, %v2077
      %v2079 = vpop.f32.mrb[0].mxu0
      %2080 = vmatprep.mubr.bf16.mxu0 0
      %2081 = vmatmul.mubr.bf16.gmra.mrb[0].mxu0 %v743
      %v2082 = vpop.f32.mrb[0].mxu0
      %v2083 = vadd.f32 0.0, %v2082
      %v2084 = vpop.f32.mrb[0].mxu0
      %v2085 = vpop.f32.mrb[0].mxu0
      %v2086 = vadd.f32 0.0, %v2085
      %v2087 = vpop.f32.mrb[0].mxu0
      %2088 = vmatprep.mubr.bf16.mxu0 0
      %2089 = vmatmul.mubr.bf16.gmra.mrb[0].mxu0 %v744
      %v2090 = vpop.f32.mrb[0].mxu0
      %v2091 = vadd.f32 0.0, %v2090
      %v2092 = vpop.f32.mrb[0].mxu0
      %v2093 = vpop.f32.mrb[0].mxu0
      %v2094 = vadd.f32 0.0, %v2093
      %v2095 = vpop.f32.mrb[0].mxu0
      %2096 = vmatprep.mubr.bf16.mxu0 0
      %2097 = vmatmul.mubr.bf16.gmra.mrb[0].mxu0 %v745
      %v2098 = vpop.f32.mrb[0].mxu0
      %v2099 = vadd.f32 0.0, %v2098
      %v2100 = vpop.f32.mrb[0].mxu0
      %v2101 = vpop.f32.mrb[0].mxu0
      %v2102 = vadd.f32 0.0, %v2101
      %v2103 = vpop.f32.mrb[0].mxu0
      %2104 = vmatprep.mubr.bf16.mxu0 0
      %2105 = vmatmul.mubr.bf16.gmra.mrb[0].mxu0 %v746
      %v2106 = vpop.f32.mrb[0].mxu0
      %v2107 = vadd.f32 0.0, %v2106
      %v2108 = vpop.f32.mrb[0].mxu0
      %v2109 = vpop.f32.mrb[0].mxu0
      %v2110 = vadd.f32 0.0, %v2109
      %v2111 = vpop.f32.mrb[0].mxu0
      %2112 = vmatprep.mubr.bf16.mxu0 0
      %2113 = vmatmul.mubr.bf16.gmra.mrb[0].mxu0 %v747
      %v2114 = vpop.f32.mrb[0].mxu0
      %v2115 = vadd.f32 0.0, %v2114
      %v2116 = vpop.f32.mrb[0].mxu0
      %v2117 = vpop.f32.mrb[0].mxu0
      %v2118 = vadd.f32 0.0, %v2117
      %v2119 = vpop.f32.mrb[0].mxu0
      %2120 = vmatprep.mubr.bf16.mxu0 0
      %2121 = vmatmul.mubr.bf16.gmra.mrb[0].mxu0 %v748
      %v2122 = vpop.f32.mrb[0].mxu0
      %v2123 = vadd.f32 0.0, %v2122
      %v2124 = vpop.f32.mrb[0].mxu0
      %v2125 = vpop.f32.mrb[0].mxu0
      %v2126 = vadd.f32 0.0, %v2125
      %v2127 = vpop.f32.mrb[0].mxu0
      %2128 = vdwg.mxu0
      %v2129 = vadd.f32 %v1951, %v2067
      %v2130 = vadd.f32 %v1952, %v2070
      %v2131 = vadd.f32 %v1953, %v2075
      %v2132 = vadd.f32 %v1954, %v2078
      %v2133 = vadd.f32 %v1955, %v2083
      %v2134 = vadd.f32 %v1956, %v2086
      %v2135 = vadd.f32 %v1957, %v2091
      %v2136 = vadd.f32 %v1958, %v2094
      %v2137 = vadd.f32 %v1959, %v2099
      %v2138 = vadd.f32 %v1960, %v2102
      %v2139 = vadd.f32 %v1961, %v2107
      %v2140 = vadd.f32 %v1962, %v2110
      %v2141 = vadd.f32 %v1963, %v2115
      %v2142 = vadd.f32 %v1964, %v2118
      %v2143 = vadd.f32 %v1965, %v2123
      %v2144 = vadd.f32 %v1966, %v2126
      %v2146 = vshrl.u32 %v748, 16
      %v2148 = vshll.u32 %v748, 16
      %v2150 = vrot.slane %v2148, 1
      %v2151 = vor.u32 %v2146, %v2150
      %v2153 = vshll.u32 %v758, 16
      %v2155 = vrot.slane %v2153, 1
      %v2156 = vsel %vm775, %v2151, %v2155
      %s2158 = scalar_lea.vmem %s5, 448
      %v2159 = vld [vmem:[%s2158] sm:$0xf]
      %v2160 = vld [vmem:[%s2158 + $0x4] sm:$0xf]
      %v2161 = vld [vmem:[%s2158 + $0x8] sm:$0xf]
      %v2162 = vld [vmem:[%s2158 + $0xc] sm:$0xf]
      %v2163 = vld [vmem:[%s2158 + $0x10] sm:$0xf]
      %v2164 = vld [vmem:[%s2158 + $0x14] sm:$0xf]
      %v2165 = vld [vmem:[%s2158 + $0x18] sm:$0xf]
      %v2166 = vld [vmem:[%s2158 + $0x1c] sm:$0xf]
      %v2167 = vld [vmem:[%s2158 + $0x20] sm:$0xf]
      %v2168 = vld [vmem:[%s2158 + $0x24] sm:$0xf]
      %v2169 = vld [vmem:[%s2158 + $0x28] sm:$0xf]
      %v2170 = vld [vmem:[%s2158 + $0x2c] sm:$0xf]
      %v2171 = vld [vmem:[%s2158 + $0x30] sm:$0xf]
      %v2172 = vld [vmem:[%s2158 + $0x34] sm:$0xf]
      %v2173 = vld [vmem:[%s2158 + $0x38] sm:$0xf]
      %v2174 = vld [vmem:[%s2158 + $0x3c] sm:$0xf]
      %v2191 = vunpack.c.l.b16 %v2159
      %v2192 = vunpack.c.l.b16 %v2160
      %v2193 = vunpack.c.l.b16 %v2161
      %v2194 = vunpack.c.l.b16 %v2162
      %v2195 = vunpack.c.l.b16 %v2163
      %v2196 = vunpack.c.l.b16 %v2164
      %v2197 = vunpack.c.l.b16 %v2165
      %v2198 = vunpack.c.l.b16 %v2166
      %v2199 = vunpack.c.l.b16 %v2167
      %v2200 = vunpack.c.l.b16 %v2168
      %v2201 = vunpack.c.l.b16 %v2169
      %v2202 = vunpack.c.l.b16 %v2170
      %v2203 = vunpack.c.l.b16 %v2171
      %v2204 = vunpack.c.l.b16 %v2172
      %v2205 = vunpack.c.l.b16 %v2173
      %v2206 = vunpack.c.l.b16 %v2174
      %v2207 = vpack.c.b16 %v2192, %v2191
      %v2208 = vpack.c.b16 %v2194, %v2193
      %v2209 = vpack.c.b16 %v2196, %v2195
      %v2210 = vpack.c.b16 %v2198, %v2197
      %v2211 = vpack.c.b16 %v2200, %v2199
      %v2212 = vpack.c.b16 %v2202, %v2201
      %v2213 = vpack.c.b16 %v2204, %v2203
      %v2214 = vpack.c.b16 %v2206, %v2205
      %2223 = vmatprep.subr.bf16.mxu0 0
      %2224 = vmatpush1.bf16.msra.mxu0 %v2207
      %2225 = vmatprep.subr.bf16.mxu0 0
      %2226 = vmatpush1.bf16.msra.mxu0 %v2208
      %2227 = vmatprep.subr.bf16.mxu0 0
      %2228 = vmatpush1.bf16.msra.mxu0 %v2209
      %2229 = vmatprep.subr.bf16.mxu0 0
      %2230 = vmatpush1.bf16.msra.mxu0 %v2210
      %2231 = vmatprep.subr.bf16.mxu0 0
      %2232 = vmatpush1.bf16.msra.mxu0 %v2211
      %2233 = vmatprep.subr.bf16.mxu0 0
      %2234 = vmatpush1.bf16.msra.mxu0 %v2212
      %2235 = vmatprep.subr.bf16.mxu0 0
      %2236 = vmatpush1.bf16.msra.mxu0 %v2213
      %2237 = vmatprep.subr.bf16.mxu0 0
      %2238 = vmatpush1.bf16.msra.mxu0 %v2214
      %2239 = vmatprep.subr.bf16.mxu0 0
      %2240 = vmatpush1.bf16.msra.mxu0 0
      %2241 = vmatprep.subr.bf16.mxu0 0
      %2242 = vmatpush1.bf16.msra.mxu0 0
      %2243 = vmatprep.subr.bf16.mxu0 0
      %2244 = vmatpush1.bf16.msra.mxu0 0
      %2245 = vmatprep.subr.bf16.mxu0 0
      %2246 = vmatpush1.bf16.msra.mxu0 0
      %2247 = vmatprep.subr.bf16.mxu0 0
      %2248 = vmatpush1.bf16.msra.mxu0 0
      %2249 = vmatprep.subr.bf16.mxu0 0
      %2250 = vmatpush1.bf16.msra.mxu0 0
      %2251 = vmatprep.subr.bf16.mxu0 0
      %2252 = vmatpush1.bf16.msra.mxu0 0
      %2253 = vmatprep.subr.bf16.mxu0 0
      %2254 = vmatpush1.bf16.msra.mxu0 0
      %2255 = vmatprep.mubr.bf16.mxu0 0
      %2256 = vmatmul.mubr.bf16.gmra.mrb[0].mxu0 %v811
      %v2257 = vpop.f32.mrb[0].mxu0
      %v2258 = vadd.f32 0.0, %v2257
      %v2259 = vpop.f32.mrb[0].mxu0
      %v2260 = vpop.f32.mrb[0].mxu0
      %v2261 = vadd.f32 0.0, %v2260
      %v2262 = vpop.f32.mrb[0].mxu0
      %2263 = vmatprep.mubr.bf16.mxu0 0
      %2264 = vmatmul.mubr.bf16.gmra.mrb[0].mxu0 %v823
      %v2265 = vpop.f32.mrb[0].mxu0
      %v2266 = vadd.f32 0.0, %v2265
      %v2267 = vpop.f32.mrb[0].mxu0
      %v2268 = vpop.f32.mrb[0].mxu0
      %v2269 = vadd.f32 0.0, %v2268
      %v2270 = vpop.f32.mrb[0].mxu0
      %2271 = vmatprep.mubr.bf16.mxu0 0
      %2272 = vmatmul.mubr.bf16.gmra.mrb[0].mxu0 %v835
      %v2273 = vpop.f32.mrb[0].mxu0
      %v2274 = vadd.f32 0.0, %v2273
      %v2275 = vpop.f32.mrb[0].mxu0
      %v2276 = vpop.f32.mrb[0].mxu0
      %v2277 = vadd.f32 0.0, %v2276
      %v2278 = vpop.f32.mrb[0].mxu0
      %2279 = vmatprep.mubr.bf16.mxu0 0
      %2280 = vmatmul.mubr.bf16.gmra.mrb[0].mxu0 %v847
      %v2281 = vpop.f32.mrb[0].mxu0
      %v2282 = vadd.f32 0.0, %v2281
      %v2283 = vpop.f32.mrb[0].mxu0
      %v2284 = vpop.f32.mrb[0].mxu0
      %v2285 = vadd.f32 0.0, %v2284
      %v2286 = vpop.f32.mrb[0].mxu0
      %2287 = vmatprep.mubr.bf16.mxu0 0
      %2288 = vmatmul.mubr.bf16.gmra.mrb[0].mxu0 %v859
      %v2289 = vpop.f32.mrb[0].mxu0
      %v2290 = vadd.f32 0.0, %v2289
      %v2291 = vpop.f32.mrb[0].mxu0
      %v2292 = vpop.f32.mrb[0].mxu0
      %v2293 = vadd.f32 0.0, %v2292
      %v2294 = vpop.f32.mrb[0].mxu0
      %2295 = vmatprep.mubr.bf16.mxu0 0
      %2296 = vmatmul.mubr.bf16.gmra.mrb[0].mxu0 %v871
      %v2297 = vpop.f32.mrb[0].mxu0
      %v2298 = vadd.f32 0.0, %v2297
      %v2299 = vpop.f32.mrb[0].mxu0
      %v2300 = vpop.f32.mrb[0].mxu0
      %v2301 = vadd.f32 0.0, %v2300
      %v2302 = vpop.f32.mrb[0].mxu0
      %2303 = vmatprep.mubr.bf16.mxu0 0
      %2304 = vmatmul.mubr.bf16.gmra.mrb[0].mxu0 %v1603
      %v2305 = vpop.f32.mrb[0].mxu0
      %v2306 = vadd.f32 0.0, %v2305
      %v2307 = vpop.f32.mrb[0].mxu0
      %v2308 = vpop.f32.mrb[0].mxu0
      %v2309 = vadd.f32 0.0, %v2308
      %v2310 = vpop.f32.mrb[0].mxu0
      %2311 = vmatprep.mubr.bf16.mxu0 0
      %2312 = vmatmul.mubr.bf16.gmra.mrb[0].mxu0 %v2156
      %v2313 = vpop.f32.mrb[0].mxu0
      %v2314 = vadd.f32 0.0, %v2313
      %v2315 = vpop.f32.mrb[0].mxu0
      %v2316 = vpop.f32.mrb[0].mxu0
      %v2317 = vadd.f32 0.0, %v2316
      %v2318 = vpop.f32.mrb[0].mxu0
      %2319 = vdwg.mxu0
      %v2320 = vadd.f32 %v2129, %v2258
      %v2321 = vadd.f32 %v2130, %v2261
      %v2322 = vadd.f32 %v2131, %v2266
      %v2323 = vadd.f32 %v2132, %v2269
      %v2324 = vadd.f32 %v2133, %v2274
      %v2325 = vadd.f32 %v2134, %v2277
      %v2326 = vadd.f32 %v2135, %v2282
      %v2327 = vadd.f32 %v2136, %v2285
      %v2328 = vadd.f32 %v2137, %v2290
      %v2329 = vadd.f32 %v2138, %v2293
      %v2330 = vadd.f32 %v2139, %v2298
      %v2331 = vadd.f32 %v2140, %v2301
      %v2332 = vadd.f32 %v2141, %v2306
      %v2333 = vadd.f32 %v2142, %v2309
      %v2334 = vadd.f32 %v2143, %v2314
      %v2335 = vadd.f32 %v2144, %v2317
      %v2338 = vrot.slane %v748, 1
      %v2339 = vrot.slane %v758, 1
      %v2340 = vsel %vm1203, %v2338, %v2339
      %s2342 = scalar_lea.vmem %s5, 512
      %v2343 = vld [vmem:[%s2342] sm:$0xf]
      %v2344 = vld [vmem:[%s2342 + $0x4] sm:$0xf]
      %v2345 = vld [vmem:[%s2342 + $0x8] sm:$0xf]
      %v2346 = vld [vmem:[%s2342 + $0xc] sm:$0xf]
      %v2347 = vld [vmem:[%s2342 + $0x10] sm:$0xf]
      %v2348 = vld [vmem:[%s2342 + $0x14] sm:$0xf]
      %v2349 = vld [vmem:[%s2342 + $0x18] sm:$0xf]
      %v2350 = vld [vmem:[%s2342 + $0x1c] sm:$0xf]
      %v2351 = vld [vmem:[%s2342 + $0x20] sm:$0xf]
      %v2352 = vld [vmem:[%s2342 + $0x24] sm:$0xf]
      %v2353 = vld [vmem:[%s2342 + $0x28] sm:$0xf]
      %v2354 = vld [vmem:[%s2342 + $0x2c] sm:$0xf]
      %v2355 = vld [vmem:[%s2342 + $0x30] sm:$0xf]
      %v2356 = vld [vmem:[%s2342 + $0x34] sm:$0xf]
      %v2357 = vld [vmem:[%s2342 + $0x38] sm:$0xf]
      %v2358 = vld [vmem:[%s2342 + $0x3c] sm:$0xf]
      %v2375 = vunpack.c.l.b16 %v2343
      %v2376 = vunpack.c.l.b16 %v2344
      %v2377 = vunpack.c.l.b16 %v2345
      %v2378 = vunpack.c.l.b16 %v2346
      %v2379 = vunpack.c.l.b16 %v2347
      %v2380 = vunpack.c.l.b16 %v2348
      %v2381 = vunpack.c.l.b16 %v2349
      %v2382 = vunpack.c.l.b16 %v2350
      %v2383 = vunpack.c.l.b16 %v2351
      %v2384 = vunpack.c.l.b16 %v2352
      %v2385 = vunpack.c.l.b16 %v2353
      %v2386 = vunpack.c.l.b16 %v2354
      %v2387 = vunpack.c.l.b16 %v2355
      %v2388 = vunpack.c.l.b16 %v2356
      %v2389 = vunpack.c.l.b16 %v2357
      %v2390 = vunpack.c.l.b16 %v2358
      %v2391 = vpack.c.b16 %v2376, %v2375
      %v2392 = vpack.c.b16 %v2378, %v2377
      %v2393 = vpack.c.b16 %v2380, %v2379
      %v2394 = vpack.c.b16 %v2382, %v2381
      %v2395 = vpack.c.b16 %v2384, %v2383
      %v2396 = vpack.c.b16 %v2386, %v2385
      %v2397 = vpack.c.b16 %v2388, %v2387
      %v2398 = vpack.c.b16 %v2390, %v2389
      %2407 = vmatprep.subr.bf16.mxu0 0
      %2408 = vmatpush1.bf16.msra.mxu0 %v2391
      %2409 = vmatprep.subr.bf16.mxu0 0
      %2410 = vmatpush1.bf16.msra.mxu0 %v2392
      %2411 = vmatprep.subr.bf16.mxu0 0
      %2412 = vmatpush1.bf16.msra.mxu0 %v2393
      %2413 = vmatprep.subr.bf16.mxu0 0
      %2414 = vmatpush1.bf16.msra.mxu0 %v2394
      %2415 = vmatprep.subr.bf16.mxu0 0
      %2416 = vmatpush1.bf16.msra.mxu0 %v2395
      %2417 = vmatprep.subr.bf16.mxu0 0
      %2418 = vmatpush1.bf16.msra.mxu0 %v2396
      %2419 = vmatprep.subr.bf16.mxu0 0
      %2420 = vmatpush1.bf16.msra.mxu0 %v2397
      %2421 = vmatprep.subr.bf16.mxu0 0
      %2422 = vmatpush1.bf16.msra.mxu0 %v2398
      %2423 = vmatprep.subr.bf16.mxu0 0
      %2424 = vmatpush1.bf16.msra.mxu0 0
      %2425 = vmatprep.subr.bf16.mxu0 0
      %2426 = vmatpush1.bf16.msra.mxu0 0
      %2427 = vmatprep.subr.bf16.mxu0 0
      %2428 = vmatpush1.bf16.msra.mxu0 0
      %2429 = vmatprep.subr.bf16.mxu0 0
      %2430 = vmatpush1.bf16.msra.mxu0 0
      %2431 = vmatprep.subr.bf16.mxu0 0
      %2432 = vmatpush1.bf16.msra.mxu0 0
      %2433 = vmatprep.subr.bf16.mxu0 0
      %2434 = vmatpush1.bf16.msra.mxu0 0
      %2435 = vmatprep.subr.bf16.mxu0 0
      %2436 = vmatpush1.bf16.msra.mxu0 0
      %2437 = vmatprep.subr.bf16.mxu0 0
      %2438 = vmatpush1.bf16.msra.mxu0 0
      %2439 = vmatprep.mubr.bf16.mxu0 0
      %2440 = vmatmul.mubr.bf16.gmra.mrb[0].mxu0 %v1212
      %v2441 = vpop.f32.mrb[0].mxu0
      %v2442 = vadd.f32 0.0, %v2441
      %v2443 = vpop.f32.mrb[0].mxu0
      %v2444 = vpop.f32.mrb[0].mxu0
      %v2445 = vadd.f32 0.0, %v2444
      %v2446 = vpop.f32.mrb[0].mxu0
      %2447 = vmatprep.mubr.bf16.mxu0 0
      %2448 = vmatmul.mubr.bf16.gmra.mrb[0].mxu0 %v1215
      %v2449 = vpop.f32.mrb[0].mxu0
      %v2450 = vadd.f32 0.0, %v2449
      %v2451 = vpop.f32.mrb[0].mxu0
      %v2452 = vpop.f32.mrb[0].mxu0
      %v2453 = vadd.f32 0.0, %v2452
      %v2454 = vpop.f32.mrb[0].mxu0
      %2455 = vmatprep.mubr.bf16.mxu0 0
      %2456 = vmatmul.mubr.bf16.gmra.mrb[0].mxu0 %v1218
      %v2457 = vpop.f32.mrb[0].mxu0
      %v2458 = vadd.f32 0.0, %v2457
      %v2459 = vpop.f32.mrb[0].mxu0
      %v2460 = vpop.f32.mrb[0].mxu0
      %v2461 = vadd.f32 0.0, %v2460
      %v2462 = vpop.f32.mrb[0].mxu0
      %2463 = vmatprep.mubr.bf16.mxu0 0
      %2464 = vmatmul.mubr.bf16.gmra.mrb[0].mxu0 %v1221
      %v2465 = vpop.f32.mrb[0].mxu0
      %v2466 = vadd.f32 0.0, %v2465
      %v2467 = vpop.f32.mrb[0].mxu0
      %v2468 = vpop.f32.mrb[0].mxu0
      %v2469 = vadd.f32 0.0, %v2468
      %v2470 = vpop.f32.mrb[0].mxu0
      %2471 = vmatprep.mubr.bf16.mxu0 0
      %2472 = vmatmul.mubr.bf16.gmra.mrb[0].mxu0 %v1224
      %v2473 = vpop.f32.mrb[0].mxu0
      %v2474 = vadd.f32 0.0, %v2473
      %v2475 = vpop.f32.mrb[0].mxu0
      %v2476 = vpop.f32.mrb[0].mxu0
      %v2477 = vadd.f32 0.0, %v2476
      %v2478 = vpop.f32.mrb[0].mxu0
      %2479 = vmatprep.mubr.bf16.mxu0 0
      %2480 = vmatmul.mubr.bf16.gmra.mrb[0].mxu0 %v1227
      %v2481 = vpop.f32.mrb[0].mxu0
      %v2482 = vadd.f32 0.0, %v2481
      %v2483 = vpop.f32.mrb[0].mxu0
      %v2484 = vpop.f32.mrb[0].mxu0
      %v2485 = vadd.f32 0.0, %v2484
      %v2486 = vpop.f32.mrb[0].mxu0
      %2487 = vmatprep.mubr.bf16.mxu0 0
      %2488 = vmatmul.mubr.bf16.gmra.mrb[0].mxu0 %v1787
      %v2489 = vpop.f32.mrb[0].mxu0
      %v2490 = vadd.f32 0.0, %v2489
      %v2491 = vpop.f32.mrb[0].mxu0
      %v2492 = vpop.f32.mrb[0].mxu0
      %v2493 = vadd.f32 0.0, %v2492
      %v2494 = vpop.f32.mrb[0].mxu0
      %2495 = vmatprep.mubr.bf16.mxu0 0
      %2496 = vmatmul.mubr.bf16.gmra.mrb[0].mxu0 %v2340
      %v2497 = vpop.f32.mrb[0].mxu0
      %v2498 = vadd.f32 0.0, %v2497
      %v2499 = vpop.f32.mrb[0].mxu0
      %v2500 = vpop.f32.mrb[0].mxu0
      %v2501 = vadd.f32 0.0, %v2500
      %v2502 = vpop.f32.mrb[0].mxu0
      %2503 = vdwg.mxu0
      %v2504 = vadd.f32 %v2320, %v2442
      %v2505 = vadd.f32 %v2321, %v2445
      %v2506 = vadd.f32 %v2322, %v2450
      %v2507 = vadd.f32 %v2323, %v2453
      %v2508 = vadd.f32 %v2324, %v2458
      %v2509 = vadd.f32 %v2325, %v2461
      %v2510 = vadd.f32 %v2326, %v2466
      %v2511 = vadd.f32 %v2327, %v2469
      %v2512 = vadd.f32 %v2328, %v2474
      %v2513 = vadd.f32 %v2329, %v2477
      %v2514 = vadd.f32 %v2330, %v2482
      %v2515 = vadd.f32 %v2331, %v2485
      %v2516 = vadd.f32 %v2332, %v2490
      %v2517 = vadd.f32 %v2333, %v2493
      %v2518 = vadd.f32 %v2334, %v2498
      %v2519 = vadd.f32 %v2335, %v2501
      %v2520 = vpack.c.bf16 %v2505, %v2504
      %v2521 = vpack.c.bf16 %v2507, %v2506
      %v2522 = vpack.c.bf16 %v2509, %v2508
      %v2523 = vpack.c.bf16 %v2511, %v2510
      %v2524 = vpack.c.bf16 %v2513, %v2512
      %v2525 = vpack.c.bf16 %v2515, %v2514
      %v2526 = vpack.c.bf16 %v2517, %v2516
      %v2527 = vpack.c.bf16 %v2519, %v2518
      %v2536 = vunpack.c.l.b16 %v2520
      %v2537 = vunpack.c.h.b16 %v2520
      %v2538 = vunpack.c.l.b16 %v2521
      %v2539 = vunpack.c.h.b16 %v2521
      %v2540 = vunpack.c.l.b16 %v2522
      %v2541 = vunpack.c.h.b16 %v2522
      %v2542 = vunpack.c.l.b16 %v2523
      %v2543 = vunpack.c.h.b16 %v2523
      %v2544 = vunpack.c.l.b16 %v2524
      %v2545 = vunpack.c.h.b16 %v2524
      %v2546 = vunpack.c.l.b16 %v2525
      %v2547 = vunpack.c.h.b16 %v2525
      %v2548 = vunpack.c.l.b16 %v2526
      %v2549 = vunpack.c.h.b16 %v2526
      %v2550 = vunpack.c.l.b16 %v2527
      %v2551 = vunpack.c.h.b16 %v2527
      %v2552 = vpack.c.b16 %v2536, %v2536
      %v2553 = vpack.c.b16 %v2537, %v2537
      %v2554 = vpack.c.b16 %v2538, %v2538
      %v2555 = vpack.c.b16 %v2539, %v2539
      %v2556 = vpack.c.b16 %v2540, %v2540
      %v2557 = vpack.c.b16 %v2541, %v2541
      %v2558 = vpack.c.b16 %v2542, %v2542
      %v2559 = vpack.c.b16 %v2543, %v2543
      %v2560 = vpack.c.b16 %v2544, %v2544
      %v2561 = vpack.c.b16 %v2545, %v2545
      %v2562 = vpack.c.b16 %v2546, %v2546
      %v2563 = vpack.c.b16 %v2547, %v2547
      %v2564 = vpack.c.b16 %v2548, %v2548
      %v2565 = vpack.c.b16 %v2549, %v2549
      %v2566 = vpack.c.b16 %v2550, %v2550
      %v2567 = vpack.c.b16 %v2551, %v2551
      %2584 = vst [vmem:[%s495] sm:$0xf] %v2552
      %2585 = vst [vmem:[%s495 + $0x4] sm:$0xf] %v2553
      %2586 = vst [vmem:[%s495 + $0x8] sm:$0xf] %v2554
      %2587 = vst [vmem:[%s495 + $0xc] sm:$0xf] %v2555
      %2588 = vst [vmem:[%s495 + $0x10] sm:$0xf] %v2556
      %2589 = vst [vmem:[%s495 + $0x14] sm:$0xf] %v2557
      %2590 = vst [vmem:[%s495 + $0x18] sm:$0xf] %v2558
      %2591 = vst [vmem:[%s495 + $0x1c] sm:$0xf] %v2559
      %2592 = vst [vmem:[%s495 + $0x20] sm:$0xf] %v2560
      %2593 = vst [vmem:[%s495 + $0x24] sm:$0xf] %v2561
      %2594 = vst [vmem:[%s495 + $0x28] sm:$0xf] %v2562
      %2595 = vst [vmem:[%s495 + $0x2c] sm:$0xf] %v2563
      %2596 = vst [vmem:[%s495 + $0x30] sm:$0xf] %v2564
      %2597 = vst [vmem:[%s495 + $0x34] sm:$0xf] %v2565
      %2598 = vst [vmem:[%s495 + $0x38] sm:$0xf] %v2566
      %2599 = vst [vmem:[%s495 + $0x3c] sm:$0xf] %v2567
      %v2600 = vadd.f32 %v2504, %v2505
      %v2601 = vadd.f32 %v2600, %v2506
      %v2602 = vadd.f32 %v2601, %v2507
      %v2603 = vadd.f32 %v2602, %v2508
      %v2604 = vadd.f32 %v2603, %v2509
      %v2605 = vadd.f32 %v2604, %v2510
      %v2606 = vadd.f32 %v2605, %v2511
      %v2607 = vadd.f32 %v2606, %v2512
      %v2608 = vadd.f32 %v2607, %v2513
      %v2609 = vadd.f32 %v2608, %v2514
      %v2610 = vadd.f32 %v2609, %v2515
      %v2611 = vadd.f32 %v2610, %v2516
      %v2612 = vadd.f32 %v2611, %v2517
      %v2613 = vadd.f32 %v2612, %v2518
      %v2614 = vadd.f32 %v2613, %v2519
      %v2615 = vrot.slane %v2614, 4
      %v2616 = vadd.f32 %v2614, %v2615
      %v2617 = vrot.slane %v2616, 2
      %v2618 = vadd.f32 %v2616, %v2617
      %v2619 = vrot.slane %v2618, 1
      %v2620 = vadd.f32 %v2618, %v2619
      %2621 = vst [vmem:[%s501] sm:$0x1] %v2620
      %v2622 = vmul.f32 %v2504, %v2504
      %v2623 = vmul.f32 %v2505, %v2505
      %v2624 = vmul.f32 %v2506, %v2506
      %v2625 = vmul.f32 %v2507, %v2507
      %v2626 = vmul.f32 %v2508, %v2508
      %v2627 = vmul.f32 %v2509, %v2509
      %v2628 = vmul.f32 %v2510, %v2510
      %v2629 = vmul.f32 %v2511, %v2511
      %v2630 = vmul.f32 %v2512, %v2512
      %v2631 = vmul.f32 %v2513, %v2513
      %v2632 = vmul.f32 %v2514, %v2514
      %v2633 = vmul.f32 %v2515, %v2515
      %v2634 = vmul.f32 %v2516, %v2516
      %v2635 = vmul.f32 %v2517, %v2517
      %v2636 = vmul.f32 %v2518, %v2518
      %v2637 = vmul.f32 %v2519, %v2519
      %v2638 = vadd.f32 %v2622, %v2623
      %v2639 = vadd.f32 %v2638, %v2624
      %v2640 = vadd.f32 %v2639, %v2625
      %v2641 = vadd.f32 %v2640, %v2626
      %v2642 = vadd.f32 %v2641, %v2627
      %v2643 = vadd.f32 %v2642, %v2628
      %v2644 = vadd.f32 %v2643, %v2629
      %v2645 = vadd.f32 %v2644, %v2630
      %v2646 = vadd.f32 %v2645, %v2631
      %v2647 = vadd.f32 %v2646, %v2632
      %v2648 = vadd.f32 %v2647, %v2633
      %v2649 = vadd.f32 %v2648, %v2634
      %v2650 = vadd.f32 %v2649, %v2635
      %v2651 = vadd.f32 %v2650, %v2636
      %v2652 = vadd.f32 %v2651, %v2637
      %v2653 = vrot.slane %v2652, 4
      %v2654 = vadd.f32 %v2652, %v2653
      %v2655 = vrot.slane %v2654, 2
      %v2656 = vadd.f32 %v2654, %v2655
      %v2657 = vrot.slane %v2656, 1
      %v2658 = vadd.f32 %v2656, %v2657
      %2659 = vst [vmem:[%s508] sm:$0x1] %v2658
      %s2660 = smul.u32 8, %s25
      %p2661 = scmp.lt.s32.totalorder %s24, 1
      %s2662 = scalar_select %p2661, %s24, 1
      %p2663 = scmp.lt.s32.totalorder %s2660, 15
      %s2664 = scalar_select %p2663, %s2660, 15
      %s2665 = smul.addr %s2664, 2
      %s2666 = smul.addr %s2662, 32
      %s2667 = sadd.s32 %s2665, %s2666
      %s2668 = smul.addr %s2667, 4
      %s2669 = scalar_lea.vmem %s6, %s2668
      %s2670 = smul.u32 %s24, 2
      %s2671 = sadd.s32 %s2670, %s25
      %p2672 = scmp.lt.s32.totalorder %s2671, 3
      %s2673 = scalar_select %p2672, %s2671, 3
      %s2674 = scalar_lea.vmem %s7, %s2673
      %s2675 = smul.u32 %s24, 2
      %s2676 = sadd.s32 %s2675, %s25
      %p2677 = scmp.lt.s32.totalorder %s2676, 3
      %s2678 = scalar_select %p2677, %s2676, 3
      %s2679 = scalar_lea.vmem %s8, %s2678
      // Predicated region
      $region45: #{forward.4} parent=43 // pred_check
        %p2680 = pneg %p215
      $region46: #{forward.4} parent=43 // pred_check_branch
        %2682 = sbr.rel (%p2680) target = $region48
      $region47: #{forward.4} parent=43 // pred_region
        %s2683 = smul.u32 8, %s25
      $region48: #{forward.4} parent=43 // pred_fallthru
        _
      // Predicated region
      $region49: #{forward.4} parent=43 // pred_check
        %p2684 = pneg %p245
      $region50: #{forward.4} parent=43 // pred_check_branch
        %2686 = sbr.rel (%p2684) target = $region52
      $region51: #{forward.4} parent=43 // pred_region
        %s2687 = smul.u32 %s24, 2
        %s2688 = sadd.s32 %s2687, %s25
      $region52: #{forward.4} parent=43 // pred_fallthru
        _
      // Predicated region
      $region53: #{forward.4} parent=43 // pred_check
        %p2689 = pneg %p275
      $region54: #{forward.4} parent=43 // pred_check_branch
        %2691 = sbr.rel (%p2689) target = $region56
      $region55: #{forward.4} parent=43 // pred_region
        %s2692 = smul.u32 %s24, 2
        %s2693 = sadd.s32 %s2692, %s25
      $region56: #{forward.4} parent=43 // pred_fallthru
        _
    $region44: #{forward.4} parent=5 // pred_fallthru
      _
    %p2694 = scmp.le.s32.totalorder 2, %s15
    // Predicated region
    $region57: #{forward.4} parent=5 // pred_check
      %p2695 = pneg %p2694
    $region58: #{forward.4} parent=5 // pred_check_branch
      %2697 = sbr.rel (%p2695) target = $region60
    $region59: #{forward.4} parent=5 // pred_region
      %s2698 = ssub.s32 %s15, 2
      // Predicated region
      $region61: #{forward.4} parent=59 // pred_check
        %p2699 = pneg %p221
      $region62: #{forward.4} parent=59 // pred_check_branch
        %2701 = sbr.rel (%p2699) target = $region64
      $region63: #{forward.4} parent=59 // pred_region
        %s2702 = smul.u32 8, %s27
        %p2703 = scmp.lt.s32.totalorder %s26, 1
        %s2704 = scalar_select %p2703, %s26, 1
        %p2705 = scmp.lt.s32.totalorder %s2702, 15
        %s2706 = scalar_select %p2705, %s2702, 15
        %s2707 = smul.addr %s2706, 2
        %s2708 = smul.addr %s2704, 32
        %s2709 = sadd.s32 %s2707, %s2708
        %s2710 = smul.addr %s2709, 4
        %s2711 = scalar_lea.vmem %s6, %s2710
      $region64: #{forward.4} parent=59 // pred_fallthru
        _
      // Predicated region
      $region65: #{forward.4} parent=59 // pred_check
        %p2712 = pneg %p251
      $region66: #{forward.4} parent=59 // pred_check_branch
        %2714 = sbr.rel (%p2712) target = $region68
      $region67: #{forward.4} parent=59 // pred_region
        %s2715 = smul.u32 %s26, 2
        %s2716 = sadd.s32 %s2715, %s27
        %p2717 = scmp.lt.s32.totalorder %s2716, 3
        %s2718 = scalar_select %p2717, %s2716, 3
        %s2719 = scalar_lea.vmem %s7, %s2718
      $region68: #{forward.4} parent=59 // pred_fallthru
        _
      // Predicated region
      $region69: #{forward.4} parent=59 // pred_check
        %p2720 = pneg %p281
      $region70: #{forward.4} parent=59 // pred_check_branch
        %2722 = sbr.rel (%p2720) target = $region72
      $region71: #{forward.4} parent=59 // pred_region
        %s2723 = smul.u32 %s26, 2
        %s2724 = sadd.s32 %s2723, %s27
        %p2725 = scmp.lt.s32.totalorder %s2724, 3
        %s2726 = scalar_select %p2725, %s2724, 3
        %s2727 = scalar_lea.vmem %s8, %s2726
      $region72: #{forward.4} parent=59 // pred_fallthru
        _
    $region60: #{forward.4} parent=5 // pred_fallthru
      _
  $region6: #{forward.4} parent=0 // loop_footer
    %s19 = sadd.s32 1, %s15
  $region7: #{forward.4} parent=0 // loop_footer_branch
    %14 = sbr.rel target = $region3
  $region8: #{forward.4} parent=0 // loop_exit
    _

</llo_original>
